<compile_context>
chip_gen: v7x
topology: tpu7x:2x2x1
jax: 0.10.0
libtpu: 0.0.40
codegen_flags: <defaults>
</compile_context>

<pallas_src>
import jax
import jax.numpy as jnp
from jax import lax
from jax.experimental import pallas as pl
from jax.experimental.pallas import tpu as pltpu

# ----------------------------- hyperparameters -----------------------------
VOCAB = 64        # V
EMBED = 32        # D
CTX = 8           # C (context length)
HEADS = 4
LAYERS = 2
FF = 4            # ff_expansion
BATCH = 2
HEAD_SIZE = EMBED // HEADS
EPS = 1e-5
NEG_INF = -1e30
VPAD = ((VOCAB + 127) // 128) * 128      # lane-dense logits width (128)
N_LAYER_W = 11                           # weight tensors per block


# ------------------------------ kernel helpers ------------------------------
def _layernorm(x, gamma, beta):
    # x: (N, D), gamma/beta: (1, D); biased variance, eps=1e-5 (torch LayerNorm)
    mu = jnp.mean(x, axis=-1, keepdims=True)
    xc = x - mu
    var = jnp.mean(xc * xc, axis=-1, keepdims=True)
    return xc * lax.rsqrt(var + EPS) * gamma + beta


def _block(x, ln1_g, ln1_b, wqkv, wo, bo, ln2_g, ln2_b, w1, b1, w2, b2):
    """Pre-norm transformer block on flattened activations x: (B*C, D)."""
    BC, D = x.shape

    # ---- self-attention branch: x + proj(concat_heads(attn(LN1(x)))) ----
    h = _layernorm(x, ln1_g, ln1_b)                                   # (BC, D)
    qkv = jnp.dot(h, wqkv, preferred_element_type=jnp.float32)       # (BC, 3D)
    q = qkv[:, 0 * D:1 * D].reshape(BATCH, CTX, D)
    k = qkv[:, 1 * D:2 * D].reshape(BATCH, CTX, D)
    v = qkv[:, 2 * D:3 * D].reshape(BATCH, CTX, D)

    row = lax.broadcasted_iota(jnp.int32, (CTX, CTX), 0)
    col = lax.broadcasted_iota(jnp.int32, (CTX, CTX), 1)
    causal = (row >= col)[None, :, :]                                 # (1, C, C)

    scale = HEAD_SIZE ** -0.5
    # Output projection folded per head (mathematically identical to
    # concat(heads) @ Wo); avoids a lane-granular concatenate.  Start from bias.
    att = jnp.zeros_like(x) + bo                                      # (BC, D)
    for hd in range(HEADS):
        sl = slice(hd * HEAD_SIZE, (hd + 1) * HEAD_SIZE)
        qh, kh, vh = q[:, :, sl], k[:, :, sl], v[:, :, sl]            # (B, C, hs)
        # batched over B, contraction over hs — no explicit transpose
        s = jnp.einsum('bqd,bkd->bqk', qh, kh,
                       preferred_element_type=jnp.float32) * scale    # (B, C, C)
        s = jnp.where(causal, s, NEG_INF)
        s = s - jnp.max(s, axis=-1, keepdims=True)
        e = jnp.exp(s)
        p = e * pl.reciprocal(jnp.sum(e, axis=-1, keepdims=True), approx=True)
        ho = jnp.einsum('bqk,bkd->bqd', p, vh,
                        preferred_element_type=jnp.float32)           # (B, C, hs)
        att = att + jnp.dot(ho.reshape(BC, HEAD_SIZE), wo[sl, :],
                            preferred_element_type=jnp.float32)
    x = x + att

    # ---- feed-forward branch: x + W2(relu(W1(LN2(x)))) ----
    h2 = _layernorm(x, ln2_g, ln2_b)
    f = jnp.maximum(jnp.dot(h2, w1, preferred_element_type=jnp.float32) + b1, 0.0)
    return x + jnp.dot(f, w2, preferred_element_type=jnp.float32) + b2


# ------------------------------ fused kernel ------------------------------
def fwd_kernel(idx_ref, tok_ref, pos_ref, *refs):
    # refs layout: [LAYERS * 11 block weights] + [lnf_g, lnf_b, w_lm, b_lm]
    #              + [o_ref] + [x_scratch]
    x_scratch = refs[-1]
    o_ref = refs[-2]
    lnf_g_ref, lnf_b_ref, w_lm_ref, b_lm_ref = refs[-6:-2]
    layer_refs = refs[:LAYERS * N_LAYER_W]

    BC = BATCH * CTX

    # ---- in-kernel embedding: tok_emb[idx] + pos_emb, assembled in VMEM ----
    for n in range(BC):
        tid = idx_ref[n]                                   # SMEM scalar
        x_scratch[pl.ds(n, 1), :] = (tok_ref[pl.ds(tid, 1), :]
                                     + pos_ref[pl.ds(n % CTX, 1), :])
    x = x_scratch[...]                                     # (BC, D)

    # ---- transformer blocks (weights resident in VMEM, x stays on-chip) ----
    for l in range(LAYERS):
        w = [r[...] for r in layer_refs[l * N_LAYER_W:(l + 1) * N_LAYER_W]]
        x = _block(x, *w)

    # ---- final LayerNorm + lm_head (lane-dense, 128-wide padded logits) ----
    h = _layernorm(x, lnf_g_ref[...], lnf_b_ref[...])
    o_ref[...] = (jnp.dot(h, w_lm_ref[...], preferred_element_type=jnp.float32)
                  + b_lm_ref[...])


# ------------------------------ pallas wrapper ------------------------------
def _full_spec(shape):
    nd = len(shape)
    # index_map receives (grid idx, scalar-prefetch ref); constant block index
    return pl.BlockSpec(shape, lambda i, idx, _n=nd: (0,) * _n)


@jax.jit
def transformer_forward(idx, params):
    """Returns (logits, loss). targets=None path: loss is None."""
    B, C = idx.shape
    idx_flat = idx.reshape(B * C).astype(jnp.int32)

    weights = [params["tok_emb"], params["pos_emb"]]
    for blk in params["blocks"]:
        weights += [blk[k] for k in ("ln1_g", "ln1_b", "wqkv", "wo", "bo",
                                     "ln2_g", "ln2_b", "w1", "b1", "w2", "b2")]
    weights += [params["lnf_g"], params["lnf_b"],
                params["w_lm_pad"], params["b_lm_pad"]]

    out = pl.pallas_call(
        fwd_kernel,
        out_shape=jax.ShapeDtypeStruct((B * C, VPAD), jnp.float32),
        grid_spec=pltpu.PrefetchScalarGridSpec(
            num_scalar_prefetch=1,
            grid=(1,),                      # single fused invocation
            in_specs=[_full_spec(w.shape) for w in weights],
            out_specs=pl.BlockSpec((B * C, VPAD), lambda i, idx: (0, 0)),
            scratch_shapes=[pltpu.VMEM((B * C, EMBED), jnp.float32)],
        ),
        compiler_params=pltpu.CompilerParams(dimension_semantics=("arbitrary",)),
    )(idx_flat, *weights)

    logits = out[:, :VOCAB].reshape(B, C, VOCAB)
    return logits, None


# ------------------------------ param init ------------------------------
def init_params(key):
    keys = iter(jax.random.split(key, 64))

    def nrm(shape, scale=0.02):
        return (scale * jax.random.normal(next(keys), shape)).astype(jnp.float32)

    w_lm = nrm((EMBED, VOCAB))
    b_lm = jnp.zeros((1, VOCAB), jnp.float32)
    params = {
        "tok_emb": nrm((VOCAB, EMBED), 1.0),
        "pos_emb": nrm((CTX, EMBED), 1.0),
        "lnf_g": jnp.ones((1, EMBED), jnp.float32),
        "lnf_b": jnp.zeros((1, EMBED), jnp.float32),
        # lm_head padded to 128 output lanes (cols >= VOCAB are zero; the
        # wrapper slices them away) so the only HBM store is lane-dense.
        "w_lm_pad": jnp.pad(w_lm, ((0, 0), (0, VPAD - VOCAB))),
        "b_lm_pad": jnp.pad(b_lm, ((0, 0), (0, VPAD - VOCAB))),
        "blocks": [],
    }
    for _ in range(LAYERS):
        params["blocks"].append({
            "ln1_g": jnp.ones((1, EMBED), jnp.float32),
            "ln1_b": jnp.zeros((1, EMBED), jnp.float32),
            # fused QKV projection, columns = [Wq | Wk | Wv], no bias
            "wqkv": nrm((EMBED, 3 * EMBED)),
            "wo": nrm((EMBED, EMBED)),
            "bo": jnp.zeros((1, EMBED), jnp.float32),
            "ln2_g": jnp.ones((1, EMBED), jnp.float32),
            "ln2_b": jnp.zeros((1, EMBED), jnp.float32),
            "w1": nrm((EMBED, FF * EMBED)),
            "b1": jnp.zeros((1, FF * EMBED), jnp.float32),
            "w2": nrm((FF * EMBED, EMBED)),
            "b2": jnp.zeros((1, EMBED), jnp.float32),
        })
    return params


if __name__ == "__main__":
    key = jax.random.PRNGKey(0)
    pkey, ikey = jax.random.split(key)
    params = init_params(pkey)
    idx = jax.random.randint(ikey, (BATCH, CTX), 0, VOCAB, dtype=jnp.int32)

    logits, loss = transformer_forward(idx, params)
    logits = jax.block_until_ready(logits)

    assert logits.shape == (BATCH, CTX, VOCAB), logits.shape
    assert logits.dtype == jnp.float32
    assert loss is None
    assert bool(jnp.all(jnp.isfinite(logits)))
    # TODO(synk): cross-entropy loss (targets path) and generate() sampling loop
    # are host-side glue in the reference; not part of the kernel hot path.
    print("KERNEL_OK")
</pallas_src>

<mosaic_0001>
module attributes {stable_mosaic.version = 11 : i64} {
  func.func @fwd_kernel(%arg0: i32, %arg1: memref<16xi32, #tpu.memory_space<smem>>, %arg2: memref<64x32xf32, #tpu.memory_space<vmem>>, %arg3: memref<8x32xf32, #tpu.memory_space<vmem>>, %arg4: memref<1x32xf32, #tpu.memory_space<vmem>>, %arg5: memref<1x32xf32, #tpu.memory_space<vmem>>, %arg6: memref<32x96xf32, #tpu.memory_space<vmem>>, %arg7: memref<32x32xf32, #tpu.memory_space<vmem>>, %arg8: memref<1x32xf32, #tpu.memory_space<vmem>>, %arg9: memref<1x32xf32, #tpu.memory_space<vmem>>, %arg10: memref<1x32xf32, #tpu.memory_space<vmem>>, %arg11: memref<32x128xf32, #tpu.memory_space<vmem>>, %arg12: memref<1x128xf32, #tpu.memory_space<vmem>>, %arg13: memref<128x32xf32, #tpu.memory_space<vmem>>, %arg14: memref<1x32xf32, #tpu.memory_space<vmem>>, %arg15: memref<1x32xf32, #tpu.memory_space<vmem>>, %arg16: memref<1x32xf32, #tpu.memory_space<vmem>>, %arg17: memref<32x96xf32, #tpu.memory_space<vmem>>, %arg18: memref<32x32xf32, #tpu.memory_space<vmem>>, %arg19: memref<1x32xf32, #tpu.memory_space<vmem>>, %arg20: memref<1x32xf32, #tpu.memory_space<vmem>>, %arg21: memref<1x32xf32, #tpu.memory_space<vmem>>, %arg22: memref<32x128xf32, #tpu.memory_space<vmem>>, %arg23: memref<1x128xf32, #tpu.memory_space<vmem>>, %arg24: memref<128x32xf32, #tpu.memory_space<vmem>>, %arg25: memref<1x32xf32, #tpu.memory_space<vmem>>, %arg26: memref<1x32xf32, #tpu.memory_space<vmem>>, %arg27: memref<1x32xf32, #tpu.memory_space<vmem>>, %arg28: memref<32x128xf32, #tpu.memory_space<vmem>>, %arg29: memref<1x128xf32, #tpu.memory_space<vmem>>, %arg30: memref<16x128xf32, #tpu.memory_space<vmem>>, %arg31: memref<16x32xf32, #tpu.memory_space<vmem>>) attributes {dimension_semantics = [#tpu.dimension_semantics<arbitrary>], iteration_bounds = array<i64: 1>, scalar_prefetch = 1 : i64, scratch_operands = 1 : i64, tpu.core_type = #tpu.core_type<tc>, window_params = [{pipeline_mode = #tpu.pipeline_mode<synchronous>, transform_indices = @transform_0, window_bounds = array<i64: 64, 32>}, {pipeline_mode = #tpu.pipeline_mode<synchronous>, transform_indices = @transform_1, window_bounds = array<i64: 8, 32>}, {pipeline_mode = #tpu.pipeline_mode<synchronous>, transform_indices = @transform_2, window_bounds = array<i64: 1, 32>}, {pipeline_mode = #tpu.pipeline_mode<synchronous>, transform_indices = @transform_3, window_bounds = array<i64: 1, 32>}, {pipeline_mode = #tpu.pipeline_mode<synchronous>, transform_indices = @transform_4, window_bounds = array<i64: 32, 96>}, {pipeline_mode = #tpu.pipeline_mode<synchronous>, transform_indices = @transform_5, window_bounds = array<i64: 32, 32>}, {pipeline_mode = #tpu.pipeline_mode<synchronous>, transform_indices = @transform_6, window_bounds = array<i64: 1, 32>}, {pipeline_mode = #tpu.pipeline_mode<synchronous>, transform_indices = @transform_7, window_bounds = array<i64: 1, 32>}, {pipeline_mode = #tpu.pipeline_mode<synchronous>, transform_indices = @transform_8, window_bounds = array<i64: 1, 32>}, {pipeline_mode = #tpu.pipeline_mode<synchronous>, transform_indices = @transform_9, window_bounds = array<i64: 32, 128>}, {pipeline_mode = #tpu.pipeline_mode<synchronous>, transform_indices = @transform_10, window_bounds = array<i64: 1, 128>}, {pipeline_mode = #tpu.pipeline_mode<synchronous>, transform_indices = @transform_11, window_bounds = array<i64: 128, 32>}, {pipeline_mode = #tpu.pipeline_mode<synchronous>, transform_indices = @transform_12, window_bounds = array<i64: 1, 32>}, {pipeline_mode = #tpu.pipeline_mode<synchronous>, transform_indices = @transform_13, window_bounds = array<i64: 1, 32>}, {pipeline_mode = #tpu.pipeline_mode<synchronous>, transform_indices = @transform_14, window_bounds = array<i64: 1, 32>}, {pipeline_mode = #tpu.pipeline_mode<synchronous>, transform_indices = @transform_15, window_bounds = array<i64: 32, 96>}, {pipeline_mode = #tpu.pipeline_mode<synchronous>, transform_indices = @transform_16, window_bounds = array<i64: 32, 32>}, {pipeline_mode = #tpu.pipeline_mode<synchronous>, transform_indices = @transform_17, window_bounds = array<i64: 1, 32>}, {pipeline_mode = #tpu.pipeline_mode<synchronous>, transform_indices = @transform_18, window_bounds = array<i64: 1, 32>}, {pipeline_mode = #tpu.pipeline_mode<synchronous>, transform_indices = @transform_19, window_bounds = array<i64: 1, 32>}, {pipeline_mode = #tpu.pipeline_mode<synchronous>, transform_indices = @transform_20, window_bounds = array<i64: 32, 128>}, {pipeline_mode = #tpu.pipeline_mode<synchronous>, transform_indices = @transform_21, window_bounds = array<i64: 1, 128>}, {pipeline_mode = #tpu.pipeline_mode<synchronous>, transform_indices = @transform_22, window_bounds = array<i64: 128, 32>}, {pipeline_mode = #tpu.pipeline_mode<synchronous>, transform_indices = @transform_23, window_bounds = array<i64: 1, 32>}, {pipeline_mode = #tpu.pipeline_mode<synchronous>, transform_indices = @transform_24, window_bounds = array<i64: 1, 32>}, {pipeline_mode = #tpu.pipeline_mode<synchronous>, transform_indices = @transform_25, window_bounds = array<i64: 1, 32>}, {pipeline_mode = #tpu.pipeline_mode<synchronous>, transform_indices = @transform_26, window_bounds = array<i64: 32, 128>}, {pipeline_mode = #tpu.pipeline_mode<synchronous>, transform_indices = @transform_27, window_bounds = array<i64: 1, 128>}, {pipeline_mode = #tpu.pipeline_mode<synchronous>, transform_indices = @transform_28, window_bounds = array<i64: 16, 128>}]} {
    %c0 = arith.constant 0 : index
    %0 = memref.load %arg1[%c0] : memref<16xi32, #tpu.memory_space<smem>>
    %1 = arith.index_cast %0 : i32 to index
    %c0_0 = arith.constant 0 : index
    %2 = vector.load %arg2[%1, %c0_0] : memref<64x32xf32, #tpu.memory_space<vmem>>, vector<1x32xf32>
    %c0_1 = arith.constant 0 : index
    %c0_2 = arith.constant 0 : index
    %3 = vector.load %arg3[%c0_1, %c0_2] : memref<8x32xf32, #tpu.memory_space<vmem>>, vector<1x32xf32>
    %4 = arith.addf %2, %3 : vector<1x32xf32>
    %c0_3 = arith.constant 0 : index
    %c0_4 = arith.constant 0 : index
    %5 = vector.load %arg31[%c0_3, %c0_4] : memref<16x32xf32, #tpu.memory_space<vmem>>, vector<1x32xf32>
    tpu.vector_store %arg31[%c0_3, %c0_4], %4 {strides = array<i32>} : memref<16x32xf32, #tpu.memory_space<vmem>>, vector<1x32xf32>,
    %c1 = arith.constant 1 : index
    %6 = memref.load %arg1[%c1] : memref<16xi32, #tpu.memory_space<smem>>
    %7 = arith.index_cast %6 : i32 to index
    %c0_5 = arith.constant 0 : index
    %8 = vector.load %arg2[%7, %c0_5] : memref<64x32xf32, #tpu.memory_space<vmem>>, vector<1x32xf32>
    %c1_6 = arith.constant 1 : index
    %c0_7 = arith.constant 0 : index
    %9 = vector.load %arg3[%c1_6, %c0_7] : memref<8x32xf32, #tpu.memory_space<vmem>>, vector<1x32xf32>
    %10 = arith.addf %8, %9 : vector<1x32xf32>
    %c1_8 = arith.constant 1 : index
    %c0_9 = arith.constant 0 : index
    %11 = vector.load %arg31[%c1_8, %c0_9] : memref<16x32xf32, #tpu.memory_space<vmem>>, vector<1x32xf32>
    tpu.vector_store %arg31[%c1_8, %c0_9], %10 {strides = array<i32>} : memref<16x32xf32, #tpu.memory_space<vmem>>, vector<1x32xf32>,
    %c2 = arith.constant 2 : index
    %12 = memref.load %arg1[%c2] : memref<16xi32, #tpu.memory_space<smem>>
    %13 = arith.index_cast %12 : i32 to index
    %c0_10 = arith.constant 0 : index
    %14 = vector.load %arg2[%13, %c0_10] : memref<64x32xf32, #tpu.memory_space<vmem>>, vector<1x32xf32>
    %c2_11 = arith.constant 2 : index
    %c0_12 = arith.constant 0 : index
    %15 = vector.load %arg3[%c2_11, %c0_12] : memref<8x32xf32, #tpu.memory_space<vmem>>, vector<1x32xf32>
    %16 = arith.addf %14, %15 : vector<1x32xf32>
    %c2_13 = arith.constant 2 : index
    %c0_14 = arith.constant 0 : index
    %17 = vector.load %arg31[%c2_13, %c0_14] : memref<16x32xf32, #tpu.memory_space<vmem>>, vector<1x32xf32>
    tpu.vector_store %arg31[%c2_13, %c0_14], %16 {strides = array<i32>} : memref<16x32xf32, #tpu.memory_space<vmem>>, vector<1x32xf32>,
    %c3 = arith.constant 3 : index
    %18 = memref.load %arg1[%c3] : memref<16xi32, #tpu.memory_space<smem>>
    %19 = arith.index_cast %18 : i32 to index
    %c0_15 = arith.constant 0 : index
    %20 = vector.load %arg2[%19, %c0_15] : memref<64x32xf32, #tpu.memory_space<vmem>>, vector<1x32xf32>
    %c3_16 = arith.constant 3 : index
    %c0_17 = arith.constant 0 : index
    %21 = vector.load %arg3[%c3_16, %c0_17] : memref<8x32xf32, #tpu.memory_space<vmem>>, vector<1x32xf32>
    %22 = arith.addf %20, %21 : vector<1x32xf32>
    %c3_18 = arith.constant 3 : index
    %c0_19 = arith.constant 0 : index
    %23 = vector.load %arg31[%c3_18, %c0_19] : memref<16x32xf32, #tpu.memory_space<vmem>>, vector<1x32xf32>
    tpu.vector_store %arg31[%c3_18, %c0_19], %22 {strides = array<i32>} : memref<16x32xf32, #tpu.memory_space<vmem>>, vector<1x32xf32>,
    %c4 = arith.constant 4 : index
    %24 = memref.load %arg1[%c4] : memref<16xi32, #tpu.memory_space<smem>>
    %25 = arith.index_cast %24 : i32 to index
    %c0_20 = arith.constant 0 : index
    %26 = vector.load %arg2[%25, %c0_20] : memref<64x32xf32, #tpu.memory_space<vmem>>, vector<1x32xf32>
    %c4_21 = arith.constant 4 : index
    %c0_22 = arith.constant 0 : index
    %27 = vector.load %arg3[%c4_21, %c0_22] : memref<8x32xf32, #tpu.memory_space<vmem>>, vector<1x32xf32>
    %28 = arith.addf %26, %27 : vector<1x32xf32>
    %c4_23 = arith.constant 4 : index
    %c0_24 = arith.constant 0 : index
    %29 = vector.load %arg31[%c4_23, %c0_24] : memref<16x32xf32, #tpu.memory_space<vmem>>, vector<1x32xf32>
    tpu.vector_store %arg31[%c4_23, %c0_24], %28 {strides = array<i32>} : memref<16x32xf32, #tpu.memory_space<vmem>>, vector<1x32xf32>,
    %c5 = arith.constant 5 : index
    %30 = memref.load %arg1[%c5] : memref<16xi32, #tpu.memory_space<smem>>
    %31 = arith.index_cast %30 : i32 to index
    %c0_25 = arith.constant 0 : index
    %32 = vector.load %arg2[%31, %c0_25] : memref<64x32xf32, #tpu.memory_space<vmem>>, vector<1x32xf32>
    %c5_26 = arith.constant 5 : index
    %c0_27 = arith.constant 0 : index
    %33 = vector.load %arg3[%c5_26, %c0_27] : memref<8x32xf32, #tpu.memory_space<vmem>>, vector<1x32xf32>
    %34 = arith.addf %32, %33 : vector<1x32xf32>
    %c5_28 = arith.constant 5 : index
    %c0_29 = arith.constant 0 : index
    %35 = vector.load %arg31[%c5_28, %c0_29] : memref<16x32xf32, #tpu.memory_space<vmem>>, vector<1x32xf32>
    tpu.vector_store %arg31[%c5_28, %c0_29], %34 {strides = array<i32>} : memref<16x32xf32, #tpu.memory_space<vmem>>, vector<1x32xf32>,
    %c6 = arith.constant 6 : index
    %36 = memref.load %arg1[%c6] : memref<16xi32, #tpu.memory_space<smem>>
    %37 = arith.index_cast %36 : i32 to index
    %c0_30 = arith.constant 0 : index
    %38 = vector.load %arg2[%37, %c0_30] : memref<64x32xf32, #tpu.memory_space<vmem>>, vector<1x32xf32>
    %c6_31 = arith.constant 6 : index
    %c0_32 = arith.constant 0 : index
    %39 = vector.load %arg3[%c6_31, %c0_32] : memref<8x32xf32, #tpu.memory_space<vmem>>, vector<1x32xf32>
    %40 = arith.addf %38, %39 : vector<1x32xf32>
    %c6_33 = arith.constant 6 : index
    %c0_34 = arith.constant 0 : index
    %41 = vector.load %arg31[%c6_33, %c0_34] : memref<16x32xf32, #tpu.memory_space<vmem>>, vector<1x32xf32>
    tpu.vector_store %arg31[%c6_33, %c0_34], %40 {strides = array<i32>} : memref<16x32xf32, #tpu.memory_space<vmem>>, vector<1x32xf32>,
    %c7 = arith.constant 7 : index
    %42 = memref.load %arg1[%c7] : memref<16xi32, #tpu.memory_space<smem>>
    %43 = arith.index_cast %42 : i32 to index
    %c0_35 = arith.constant 0 : index
    %44 = vector.load %arg2[%43, %c0_35] : memref<64x32xf32, #tpu.memory_space<vmem>>, vector<1x32xf32>
    %c7_36 = arith.constant 7 : index
    %c0_37 = arith.constant 0 : index
    %45 = vector.load %arg3[%c7_36, %c0_37] : memref<8x32xf32, #tpu.memory_space<vmem>>, vector<1x32xf32>
    %46 = arith.addf %44, %45 : vector<1x32xf32>
    %c7_38 = arith.constant 7 : index
    %c0_39 = arith.constant 0 : index
    %47 = vector.load %arg31[%c7_38, %c0_39] : memref<16x32xf32, #tpu.memory_space<vmem>>, vector<1x32xf32>
    tpu.vector_store %arg31[%c7_38, %c0_39], %46 {strides = array<i32>} : memref<16x32xf32, #tpu.memory_space<vmem>>, vector<1x32xf32>,
    %c8 = arith.constant 8 : index
    %48 = memref.load %arg1[%c8] : memref<16xi32, #tpu.memory_space<smem>>
    %49 = arith.index_cast %48 : i32 to index
    %c0_40 = arith.constant 0 : index
    %50 = vector.load %arg2[%49, %c0_40] : memref<64x32xf32, #tpu.memory_space<vmem>>, vector<1x32xf32>
    %c0_41 = arith.constant 0 : index
    %c0_42 = arith.constant 0 : index
    %51 = vector.load %arg3[%c0_41, %c0_42] : memref<8x32xf32, #tpu.memory_space<vmem>>, vector<1x32xf32>
    %52 = arith.addf %50, %51 : vector<1x32xf32>
    %c8_43 = arith.constant 8 : index
    %c0_44 = arith.constant 0 : index
    %53 = vector.load %arg31[%c8_43, %c0_44] : memref<16x32xf32, #tpu.memory_space<vmem>>, vector<1x32xf32>
    tpu.vector_store %arg31[%c8_43, %c0_44], %52 {strides = array<i32>} : memref<16x32xf32, #tpu.memory_space<vmem>>, vector<1x32xf32>,
    %c9 = arith.constant 9 : index
    %54 = memref.load %arg1[%c9] : memref<16xi32, #tpu.memory_space<smem>>
    %55 = arith.index_cast %54 : i32 to index
    %c0_45 = arith.constant 0 : index
    %56 = vector.load %arg2[%55, %c0_45] : memref<64x32xf32, #tpu.memory_space<vmem>>, vector<1x32xf32>
    %c1_46 = arith.constant 1 : index
    %c0_47 = arith.constant 0 : index
    %57 = vector.load %arg3[%c1_46, %c0_47] : memref<8x32xf32, #tpu.memory_space<vmem>>, vector<1x32xf32>
    %58 = arith.addf %56, %57 : vector<1x32xf32>
    %c9_48 = arith.constant 9 : index
    %c0_49 = arith.constant 0 : index
    %59 = vector.load %arg31[%c9_48, %c0_49] : memref<16x32xf32, #tpu.memory_space<vmem>>, vector<1x32xf32>
    tpu.vector_store %arg31[%c9_48, %c0_49], %58 {strides = array<i32>} : memref<16x32xf32, #tpu.memory_space<vmem>>, vector<1x32xf32>,
    %c10 = arith.constant 10 : index
    %60 = memref.load %arg1[%c10] : memref<16xi32, #tpu.memory_space<smem>>
    %61 = arith.index_cast %60 : i32 to index
    %c0_50 = arith.constant 0 : index
    %62 = vector.load %arg2[%61, %c0_50] : memref<64x32xf32, #tpu.memory_space<vmem>>, vector<1x32xf32>
    %c2_51 = arith.constant 2 : index
    %c0_52 = arith.constant 0 : index
    %63 = vector.load %arg3[%c2_51, %c0_52] : memref<8x32xf32, #tpu.memory_space<vmem>>, vector<1x32xf32>
    %64 = arith.addf %62, %63 : vector<1x32xf32>
    %c10_53 = arith.constant 10 : index
    %c0_54 = arith.constant 0 : index
    %65 = vector.load %arg31[%c10_53, %c0_54] : memref<16x32xf32, #tpu.memory_space<vmem>>, vector<1x32xf32>
    tpu.vector_store %arg31[%c10_53, %c0_54], %64 {strides = array<i32>} : memref<16x32xf32, #tpu.memory_space<vmem>>, vector<1x32xf32>,
    %c11 = arith.constant 11 : index
    %66 = memref.load %arg1[%c11] : memref<16xi32, #tpu.memory_space<smem>>
    %67 = arith.index_cast %66 : i32 to index
    %c0_55 = arith.constant 0 : index
    %68 = vector.load %arg2[%67, %c0_55] : memref<64x32xf32, #tpu.memory_space<vmem>>, vector<1x32xf32>
    %c3_56 = arith.constant 3 : index
    %c0_57 = arith.constant 0 : index
    %69 = vector.load %arg3[%c3_56, %c0_57] : memref<8x32xf32, #tpu.memory_space<vmem>>, vector<1x32xf32>
    %70 = arith.addf %68, %69 : vector<1x32xf32>
    %c11_58 = arith.constant 11 : index
    %c0_59 = arith.constant 0 : index
    %71 = vector.load %arg31[%c11_58, %c0_59] : memref<16x32xf32, #tpu.memory_space<vmem>>, vector<1x32xf32>
    tpu.vector_store %arg31[%c11_58, %c0_59], %70 {strides = array<i32>} : memref<16x32xf32, #tpu.memory_space<vmem>>, vector<1x32xf32>,
    %c12 = arith.constant 12 : index
    %72 = memref.load %arg1[%c12] : memref<16xi32, #tpu.memory_space<smem>>
    %73 = arith.index_cast %72 : i32 to index
    %c0_60 = arith.constant 0 : index
    %74 = vector.load %arg2[%73, %c0_60] : memref<64x32xf32, #tpu.memory_space<vmem>>, vector<1x32xf32>
    %c4_61 = arith.constant 4 : index
    %c0_62 = arith.constant 0 : index
    %75 = vector.load %arg3[%c4_61, %c0_62] : memref<8x32xf32, #tpu.memory_space<vmem>>, vector<1x32xf32>
    %76 = arith.addf %74, %75 : vector<1x32xf32>
    %c12_63 = arith.constant 12 : index
    %c0_64 = arith.constant 0 : index
    %77 = vector.load %arg31[%c12_63, %c0_64] : memref<16x32xf32, #tpu.memory_space<vmem>>, vector<1x32xf32>
    tpu.vector_store %arg31[%c12_63, %c0_64], %76 {strides = array<i32>} : memref<16x32xf32, #tpu.memory_space<vmem>>, vector<1x32xf32>,
    %c13 = arith.constant 13 : index
    %78 = memref.load %arg1[%c13] : memref<16xi32, #tpu.memory_space<smem>>
    %79 = arith.index_cast %78 : i32 to index
    %c0_65 = arith.constant 0 : index
    %80 = vector.load %arg2[%79, %c0_65] : memref<64x32xf32, #tpu.memory_space<vmem>>, vector<1x32xf32>
    %c5_66 = arith.constant 5 : index
    %c0_67 = arith.constant 0 : index
    %81 = vector.load %arg3[%c5_66, %c0_67] : memref<8x32xf32, #tpu.memory_space<vmem>>, vector<1x32xf32>
    %82 = arith.addf %80, %81 : vector<1x32xf32>
    %c13_68 = arith.constant 13 : index
    %c0_69 = arith.constant 0 : index
    %83 = vector.load %arg31[%c13_68, %c0_69] : memref<16x32xf32, #tpu.memory_space<vmem>>, vector<1x32xf32>
    tpu.vector_store %arg31[%c13_68, %c0_69], %82 {strides = array<i32>} : memref<16x32xf32, #tpu.memory_space<vmem>>, vector<1x32xf32>,
    %c14 = arith.constant 14 : index
    %84 = memref.load %arg1[%c14] : memref<16xi32, #tpu.memory_space<smem>>
    %85 = arith.index_cast %84 : i32 to index
    %c0_70 = arith.constant 0 : index
    %86 = vector.load %arg2[%85, %c0_70] : memref<64x32xf32, #tpu.memory_space<vmem>>, vector<1x32xf32>
    %c6_71 = arith.constant 6 : index
    %c0_72 = arith.constant 0 : index
    %87 = vector.load %arg3[%c6_71, %c0_72] : memref<8x32xf32, #tpu.memory_space<vmem>>, vector<1x32xf32>
    %88 = arith.addf %86, %87 : vector<1x32xf32>
    %c14_73 = arith.constant 14 : index
    %c0_74 = arith.constant 0 : index
    %89 = vector.load %arg31[%c14_73, %c0_74] : memref<16x32xf32, #tpu.memory_space<vmem>>, vector<1x32xf32>
    tpu.vector_store %arg31[%c14_73, %c0_74], %88 {strides = array<i32>} : memref<16x32xf32, #tpu.memory_space<vmem>>, vector<1x32xf32>,
    %c15 = arith.constant 15 : index
    %90 = memref.load %arg1[%c15] : memref<16xi32, #tpu.memory_space<smem>>
    %91 = arith.index_cast %90 : i32 to index
    %c0_75 = arith.constant 0 : index
    %92 = vector.load %arg2[%91, %c0_75] : memref<64x32xf32, #tpu.memory_space<vmem>>, vector<1x32xf32>
    %c7_76 = arith.constant 7 : index
    %c0_77 = arith.constant 0 : index
    %93 = vector.load %arg3[%c7_76, %c0_77] : memref<8x32xf32, #tpu.memory_space<vmem>>, vector<1x32xf32>
    %94 = arith.addf %92, %93 : vector<1x32xf32>
    %c15_78 = arith.constant 15 : index
    %c0_79 = arith.constant 0 : index
    %95 = vector.load %arg31[%c15_78, %c0_79] : memref<16x32xf32, #tpu.memory_space<vmem>>, vector<1x32xf32>
    tpu.vector_store %arg31[%c15_78, %c0_79], %94 {strides = array<i32>} : memref<16x32xf32, #tpu.memory_space<vmem>>, vector<1x32xf32>,
    %c0_80 = arith.constant 0 : index
    %c0_81 = arith.constant 0 : index
    %96 = vector.load %arg31[%c0_80, %c0_81] : memref<16x32xf32, #tpu.memory_space<vmem>>, vector<16x32xf32>
    %c0_82 = arith.constant 0 : index
    %c0_83 = arith.constant 0 : index
    %97 = vector.load %arg4[%c0_82, %c0_83] : memref<1x32xf32, #tpu.memory_space<vmem>>, vector<1x32xf32>
    %c0_84 = arith.constant 0 : index
    %c0_85 = arith.constant 0 : index
    %98 = vector.load %arg5[%c0_84, %c0_85] : memref<1x32xf32, #tpu.memory_space<vmem>>, vector<1x32xf32>
    %c0_86 = arith.constant 0 : index
    %c0_87 = arith.constant 0 : index
    %99 = vector.load %arg6[%c0_86, %c0_87] : memref<32x96xf32, #tpu.memory_space<vmem>>, vector<32x96xf32>
    %c0_88 = arith.constant 0 : index
    %c0_89 = arith.constant 0 : index
    %100 = vector.load %arg7[%c0_88, %c0_89] : memref<32x32xf32, #tpu.memory_space<vmem>>, vector<32x32xf32>
    %c0_90 = arith.constant 0 : index
    %c0_91 = arith.constant 0 : index
    %101 = vector.load %arg8[%c0_90, %c0_91] : memref<1x32xf32, #tpu.memory_space<vmem>>, vector<1x32xf32>
    %c0_92 = arith.constant 0 : index
    %c0_93 = arith.constant 0 : index
    %102 = vector.load %arg9[%c0_92, %c0_93] : memref<1x32xf32, #tpu.memory_space<vmem>>, vector<1x32xf32>
    %c0_94 = arith.constant 0 : index
    %c0_95 = arith.constant 0 : index
    %103 = vector.load %arg10[%c0_94, %c0_95] : memref<1x32xf32, #tpu.memory_space<vmem>>, vector<1x32xf32>
    %c0_96 = arith.constant 0 : index
    %c0_97 = arith.constant 0 : index
    %104 = vector.load %arg11[%c0_96, %c0_97] : memref<32x128xf32, #tpu.memory_space<vmem>>, vector<32x128xf32>
    %c0_98 = arith.constant 0 : index
    %c0_99 = arith.constant 0 : index
    %105 = vector.load %arg12[%c0_98, %c0_99] : memref<1x128xf32, #tpu.memory_space<vmem>>, vector<1x128xf32>
    %c0_100 = arith.constant 0 : index
    %c0_101 = arith.constant 0 : index
    %106 = vector.load %arg13[%c0_100, %c0_101] : memref<128x32xf32, #tpu.memory_space<vmem>>, vector<128x32xf32>
    %c0_102 = arith.constant 0 : index
    %c0_103 = arith.constant 0 : index
    %107 = vector.load %arg14[%c0_102, %c0_103] : memref<1x32xf32, #tpu.memory_space<vmem>>, vector<1x32xf32>
    %cst = arith.constant dense<0.000000e+00> : vector<16xf32>
    %108 = vector.multi_reduction <add>, %96, %cst [1] : vector<16x32xf32> to vector<16xf32>
    %109 = vector.shape_cast %108 : vector<16xf32> to vector<16x1xf32>
    %cst_104 = arith.constant 3.200000e+01 : f32
    %110 = vector.broadcast %cst_104 : f32 to vector<16x1xf32>
    %111 = arith.divf %109, %110 : vector<16x1xf32>
    %112 = vector.broadcast %111 : vector<16x1xf32> to vector<16x32xf32>
    %113 = arith.subf %96, %112 : vector<16x32xf32>
    %114 = arith.mulf %113, %113 : vector<16x32xf32>
    %cst_105 = arith.constant dense<0.000000e+00> : vector<16xf32>
    %115 = vector.multi_reduction <add>, %114, %cst_105 [1] : vector<16x32xf32> to vector<16xf32>
    %116 = vector.shape_cast %115 : vector<16xf32> to vector<16x1xf32>
    %cst_106 = arith.constant 3.200000e+01 : f32
    %117 = vector.broadcast %cst_106 : f32 to vector<16x1xf32>
    %118 = arith.divf %116, %117 : vector<16x1xf32>
    %cst_107 = arith.constant 9.99999974E-6 : f32
    %119 = vector.broadcast %cst_107 : f32 to vector<16x1xf32>
    %120 = arith.addf %118, %119 : vector<16x1xf32>
    %121 = math.rsqrt %120 : vector<16x1xf32>
    %122 = vector.broadcast %121 : vector<16x1xf32> to vector<16x32xf32>
    %123 = arith.mulf %113, %122 : vector<16x32xf32>
    %124 = vector.broadcast %97 : vector<1x32xf32> to vector<16x32xf32>
    %125 = arith.mulf %123, %124 : vector<16x32xf32>
    %126 = vector.broadcast %98 : vector<1x32xf32> to vector<16x32xf32>
    %127 = arith.addf %125, %126 : vector<16x32xf32>
    %cst_108 = arith.constant dense<0.000000e+00> : vector<16x96xf32>
    %128 = tpu.matmul %127, %99, %cst_108 {dimension_numbers = #tpu.dot_dimension_numbers<[1], [0], [0], [1], [0, 0, 1, 1], [], []>} : vector<16x32xf32>, vector<32x96xf32>, vector<16x96xf32> -> vector<16x96xf32>
    %129 = vector.extract_strided_slice %128 {offsets = [0, 0], sizes = [16, 32], strides = [1, 1]} : vector<16x96xf32> to vector<16x32xf32>
    %130 = vector.shape_cast %129 : vector<16x32xf32> to vector<2x8x32xf32>
    %131 = vector.extract_strided_slice %128 {offsets = [0, 32], sizes = [16, 32], strides = [1, 1]} : vector<16x96xf32> to vector<16x32xf32>
    %132 = vector.shape_cast %131 : vector<16x32xf32> to vector<2x8x32xf32>
    %133 = vector.extract_strided_slice %128 {offsets = [0, 64], sizes = [16, 32], strides = [1, 1]} : vector<16x96xf32> to vector<16x32xf32>
    %134 = vector.shape_cast %133 : vector<16x32xf32> to vector<2x8x32xf32>
    %135 = tpu.iota {dimensions = array<i32: 0>} : vector<8x8xi32>
    %136 = tpu.iota {dimensions = array<i32: 1>} : vector<8x8xi32>
    %137 = arith.cmpi sge, %135, %136 : vector<8x8xi32>
    %138 = vector.shape_cast %137 : vector<8x8xi1> to vector<1x8x8xi1>
    %cst_109 = arith.constant 0.000000e+00 : f32
    %139 = vector.broadcast %cst_109 : f32 to vector<16x32xf32>
    %140 = vector.broadcast %101 : vector<1x32xf32> to vector<16x32xf32>
    %141 = arith.addf %139, %140 : vector<16x32xf32>
    %142 = vector.extract_strided_slice %130 {offsets = [0, 0, 0], sizes = [2, 8, 8], strides = [1, 1, 1]} : vector<2x8x32xf32> to vector<2x8x8xf32>
    %143 = vector.extract_strided_slice %132 {offsets = [0, 0, 0], sizes = [2, 8, 8], strides = [1, 1, 1]} : vector<2x8x32xf32> to vector<2x8x8xf32>
    %144 = vector.extract_strided_slice %134 {offsets = [0, 0, 0], sizes = [2, 8, 8], strides = [1, 1, 1]} : vector<2x8x32xf32> to vector<2x8x8xf32>
    "tpu.trace_start"() <{level = 10 : i32, message = "bqd,bkd->bqk"}> : () -> ()
    %cst_110 = arith.constant dense<0.000000e+00> : vector<2x8x8xf32>
    %145 = tpu.matmul %142, %143, %cst_110 {dimension_numbers = #tpu.dot_dimension_numbers<[2], [2], [1], [1], [0, 0, 0, 1, 1, 1], [0], [0]>} : vector<2x8x8xf32>, vector<2x8x8xf32>, vector<2x8x8xf32> -> vector<2x8x8xf32>
    "tpu.trace_stop"() : () -> ()
    %cst_111 = arith.constant 0.353553385 : f32
    %146 = vector.broadcast %cst_111 : f32 to vector<2x8x8xf32>
    %147 = arith.mulf %145, %146 : vector<2x8x8xf32>
    %cst_112 = arith.constant -1.000000e+30 : f32
    %148 = vector.shape_cast %138 : vector<1x8x8xi1> to vector<1x8x8xi1>
    %149 = vector.broadcast %148 : vector<1x8x8xi1> to vector<2x8x8xi1>
    %150 = vector.broadcast %cst_112 : f32 to vector<2x8x8xf32>
    %151 = arith.select %149, %147, %150 : vector<2x8x8xi1>, vector<2x8x8xf32>
    %cst_113 = arith.constant dense<0xFF800000> : vector<2x8xf32>
    %152 = vector.multi_reduction <maximumf>, %151, %cst_113 [2] : vector<2x8x8xf32> to vector<2x8xf32>
    %153 = vector.shape_cast %152 : vector<2x8xf32> to vector<2x8x1xf32>
    %154 = vector.broadcast %153 : vector<2x8x1xf32> to vector<2x8x8xf32>
    %155 = arith.subf %151, %154 : vector<2x8x8xf32>
    %156 = math.exp %155 : vector<2x8x8xf32>
    %cst_114 = arith.constant dense<0.000000e+00> : vector<2x8xf32>
    %157 = vector.multi_reduction <add>, %156, %cst_114 [2] : vector<2x8x8xf32> to vector<2x8xf32>
    %158 = vector.shape_cast %157 : vector<2x8xf32> to vector<2x8x1xf32>
    %159 = tpu.reciprocal %158 {approx = true} : vector<2x8x1xf32> -> vector<2x8x1xf32>
    %160 = vector.broadcast %159 : vector<2x8x1xf32> to vector<2x8x8xf32>
    %161 = arith.mulf %156, %160 : vector<2x8x8xf32>
    "tpu.trace_start"() <{level = 10 : i32, message = "bqk,bkd->bqd"}> : () -> ()
    %cst_115 = arith.constant dense<0.000000e+00> : vector<2x8x8xf32>
    %162 = tpu.matmul %161, %144, %cst_115 {dimension_numbers = #tpu.dot_dimension_numbers<[2], [1], [1], [2], [0, 0, 0, 1, 1, 2], [0], [0]>} : vector<2x8x8xf32>, vector<2x8x8xf32>, vector<2x8x8xf32> -> vector<2x8x8xf32>
    "tpu.trace_stop"() : () -> ()
    %163 = vector.shape_cast %162 : vector<2x8x8xf32> to vector<16x8xf32>
    %164 = vector.extract_strided_slice %100 {offsets = [0, 0], sizes = [8, 32], strides = [1, 1]} : vector<32x32xf32> to vector<8x32xf32>
    %cst_116 = arith.constant dense<0.000000e+00> : vector<16x32xf32>
    %165 = tpu.matmul %163, %164, %cst_116 {dimension_numbers = #tpu.dot_dimension_numbers<[1], [0], [0], [1], [0, 0, 1, 1], [], []>} : vector<16x8xf32>, vector<8x32xf32>, vector<16x32xf32> -> vector<16x32xf32>
    %166 = arith.addf %141, %165 : vector<16x32xf32>
    %167 = vector.extract_strided_slice %130 {offsets = [0, 0, 8], sizes = [2, 8, 8], strides = [1, 1, 1]} : vector<2x8x32xf32> to vector<2x8x8xf32>
    %168 = vector.extract_strided_slice %132 {offsets = [0, 0, 8], sizes = [2, 8, 8], strides = [1, 1, 1]} : vector<2x8x32xf32> to vector<2x8x8xf32>
    %169 = vector.extract_strided_slice %134 {offsets = [0, 0, 8], sizes = [2, 8, 8], strides = [1, 1, 1]} : vector<2x8x32xf32> to vector<2x8x8xf32>
    "tpu.trace_start"() <{level = 10 : i32, message = "bqd,bkd->bqk"}> : () -> ()
    %cst_117 = arith.constant dense<0.000000e+00> : vector<2x8x8xf32>
    %170 = tpu.matmul %167, %168, %cst_117 {dimension_numbers = #tpu.dot_dimension_numbers<[2], [2], [1], [1], [0, 0, 0, 1, 1, 1], [0], [0]>} : vector<2x8x8xf32>, vector<2x8x8xf32>, vector<2x8x8xf32> -> vector<2x8x8xf32>
    "tpu.trace_stop"() : () -> ()
    %cst_118 = arith.constant 0.353553385 : f32
    %171 = vector.broadcast %cst_118 : f32 to vector<2x8x8xf32>
    %172 = arith.mulf %170, %171 : vector<2x8x8xf32>
    %cst_119 = arith.constant -1.000000e+30 : f32
    %173 = vector.shape_cast %138 : vector<1x8x8xi1> to vector<1x8x8xi1>
    %174 = vector.broadcast %173 : vector<1x8x8xi1> to vector<2x8x8xi1>
    %175 = vector.broadcast %cst_119 : f32 to vector<2x8x8xf32>
    %176 = arith.select %174, %172, %175 : vector<2x8x8xi1>, vector<2x8x8xf32>
    %cst_120 = arith.constant dense<0xFF800000> : vector<2x8xf32>
    %177 = vector.multi_reduction <maximumf>, %176, %cst_120 [2] : vector<2x8x8xf32> to vector<2x8xf32>
    %178 = vector.shape_cast %177 : vector<2x8xf32> to vector<2x8x1xf32>
    %179 = vector.broadcast %178 : vector<2x8x1xf32> to vector<2x8x8xf32>
    %180 = arith.subf %176, %179 : vector<2x8x8xf32>
    %181 = math.exp %180 : vector<2x8x8xf32>
    %cst_121 = arith.constant dense<0.000000e+00> : vector<2x8xf32>
    %182 = vector.multi_reduction <add>, %181, %cst_121 [2] : vector<2x8x8xf32> to vector<2x8xf32>
    %183 = vector.shape_cast %182 : vector<2x8xf32> to vector<2x8x1xf32>
    %184 = tpu.reciprocal %183 {approx = true} : vector<2x8x1xf32> -> vector<2x8x1xf32>
    %185 = vector.broadcast %184 : vector<2x8x1xf32> to vector<2x8x8xf32>
    %186 = arith.mulf %181, %185 : vector<2x8x8xf32>
    "tpu.trace_start"() <{level = 10 : i32, message = "bqk,bkd->bqd"}> : () -> ()
    %cst_122 = arith.constant dense<0.000000e+00> : vector<2x8x8xf32>
    %187 = tpu.matmul %186, %169, %cst_122 {dimension_numbers = #tpu.dot_dimension_numbers<[2], [1], [1], [2], [0, 0, 0, 1, 1, 2], [0], [0]>} : vector<2x8x8xf32>, vector<2x8x8xf32>, vector<2x8x8xf32> -> vector<2x8x8xf32>
    "tpu.trace_stop"() : () -> ()
    %188 = vector.shape_cast %187 : vector<2x8x8xf32> to vector<16x8xf32>
    %189 = vector.extract_strided_slice %100 {offsets = [8, 0], sizes = [8, 32], strides = [1, 1]} : vector<32x32xf32> to vector<8x32xf32>
    %cst_123 = arith.constant dense<0.000000e+00> : vector<16x32xf32>
    %190 = tpu.matmul %188, %189, %cst_123 {dimension_numbers = #tpu.dot_dimension_numbers<[1], [0], [0], [1], [0, 0, 1, 1], [], []>} : vector<16x8xf32>, vector<8x32xf32>, vector<16x32xf32> -> vector<16x32xf32>
    %191 = arith.addf %166, %190 : vector<16x32xf32>
    %192 = vector.extract_strided_slice %130 {offsets = [0, 0, 16], sizes = [2, 8, 8], strides = [1, 1, 1]} : vector<2x8x32xf32> to vector<2x8x8xf32>
    %193 = vector.extract_strided_slice %132 {offsets = [0, 0, 16], sizes = [2, 8, 8], strides = [1, 1, 1]} : vector<2x8x32xf32> to vector<2x8x8xf32>
    %194 = vector.extract_strided_slice %134 {offsets = [0, 0, 16], sizes = [2, 8, 8], strides = [1, 1, 1]} : vector<2x8x32xf32> to vector<2x8x8xf32>
    "tpu.trace_start"() <{level = 10 : i32, message = "bqd,bkd->bqk"}> : () -> ()
    %cst_124 = arith.constant dense<0.000000e+00> : vector<2x8x8xf32>
    %195 = tpu.matmul %192, %193, %cst_124 {dimension_numbers = #tpu.dot_dimension_numbers<[2], [2], [1], [1], [0, 0, 0, 1, 1, 1], [0], [0]>} : vector<2x8x8xf32>, vector<2x8x8xf32>, vector<2x8x8xf32> -> vector<2x8x8xf32>
    "tpu.trace_stop"() : () -> ()
    %cst_125 = arith.constant 0.353553385 : f32
    %196 = vector.broadcast %cst_125 : f32 to vector<2x8x8xf32>
    %197 = arith.mulf %195, %196 : vector<2x8x8xf32>
    %cst_126 = arith.constant -1.000000e+30 : f32
    %198 = vector.shape_cast %138 : vector<1x8x8xi1> to vector<1x8x8xi1>
    %199 = vector.broadcast %198 : vector<1x8x8xi1> to vector<2x8x8xi1>
    %200 = vector.broadcast %cst_126 : f32 to vector<2x8x8xf32>
    %201 = arith.select %199, %197, %200 : vector<2x8x8xi1>, vector<2x8x8xf32>
    %cst_127 = arith.constant dense<0xFF800000> : vector<2x8xf32>
    %202 = vector.multi_reduction <maximumf>, %201, %cst_127 [2] : vector<2x8x8xf32> to vector<2x8xf32>
    %203 = vector.shape_cast %202 : vector<2x8xf32> to vector<2x8x1xf32>
    %204 = vector.broadcast %203 : vector<2x8x1xf32> to vector<2x8x8xf32>
    %205 = arith.subf %201, %204 : vector<2x8x8xf32>
    %206 = math.exp %205 : vector<2x8x8xf32>
    %cst_128 = arith.constant dense<0.000000e+00> : vector<2x8xf32>
    %207 = vector.multi_reduction <add>, %206, %cst_128 [2] : vector<2x8x8xf32> to vector<2x8xf32>
    %208 = vector.shape_cast %207 : vector<2x8xf32> to vector<2x8x1xf32>
    %209 = tpu.reciprocal %208 {approx = true} : vector<2x8x1xf32> -> vector<2x8x1xf32>
    %210 = vector.broadcast %209 : vector<2x8x1xf32> to vector<2x8x8xf32>
    %211 = arith.mulf %206, %210 : vector<2x8x8xf32>
    "tpu.trace_start"() <{level = 10 : i32, message = "bqk,bkd->bqd"}> : () -> ()
    %cst_129 = arith.constant dense<0.000000e+00> : vector<2x8x8xf32>
    %212 = tpu.matmul %211, %194, %cst_129 {dimension_numbers = #tpu.dot_dimension_numbers<[2], [1], [1], [2], [0, 0, 0, 1, 1, 2], [0], [0]>} : vector<2x8x8xf32>, vector<2x8x8xf32>, vector<2x8x8xf32> -> vector<2x8x8xf32>
    "tpu.trace_stop"() : () -> ()
    %213 = vector.shape_cast %212 : vector<2x8x8xf32> to vector<16x8xf32>
    %214 = vector.extract_strided_slice %100 {offsets = [16, 0], sizes = [8, 32], strides = [1, 1]} : vector<32x32xf32> to vector<8x32xf32>
    %cst_130 = arith.constant dense<0.000000e+00> : vector<16x32xf32>
    %215 = tpu.matmul %213, %214, %cst_130 {dimension_numbers = #tpu.dot_dimension_numbers<[1], [0], [0], [1], [0, 0, 1, 1], [], []>} : vector<16x8xf32>, vector<8x32xf32>, vector<16x32xf32> -> vector<16x32xf32>
    %216 = arith.addf %191, %215 : vector<16x32xf32>
    %217 = vector.extract_strided_slice %130 {offsets = [0, 0, 24], sizes = [2, 8, 8], strides = [1, 1, 1]} : vector<2x8x32xf32> to vector<2x8x8xf32>
    %218 = vector.extract_strided_slice %132 {offsets = [0, 0, 24], sizes = [2, 8, 8], strides = [1, 1, 1]} : vector<2x8x32xf32> to vector<2x8x8xf32>
    %219 = vector.extract_strided_slice %134 {offsets = [0, 0, 24], sizes = [2, 8, 8], strides = [1, 1, 1]} : vector<2x8x32xf32> to vector<2x8x8xf32>
    "tpu.trace_start"() <{level = 10 : i32, message = "bqd,bkd->bqk"}> : () -> ()
    %cst_131 = arith.constant dense<0.000000e+00> : vector<2x8x8xf32>
    %220 = tpu.matmul %217, %218, %cst_131 {dimension_numbers = #tpu.dot_dimension_numbers<[2], [2], [1], [1], [0, 0, 0, 1, 1, 1], [0], [0]>} : vector<2x8x8xf32>, vector<2x8x8xf32>, vector<2x8x8xf32> -> vector<2x8x8xf32>
    "tpu.trace_stop"() : () -> ()
    %cst_132 = arith.constant 0.353553385 : f32
    %221 = vector.broadcast %cst_132 : f32 to vector<2x8x8xf32>
    %222 = arith.mulf %220, %221 : vector<2x8x8xf32>
    %cst_133 = arith.constant -1.000000e+30 : f32
    %223 = vector.shape_cast %138 : vector<1x8x8xi1> to vector<1x8x8xi1>
    %224 = vector.broadcast %223 : vector<1x8x8xi1> to vector<2x8x8xi1>
    %225 = vector.broadcast %cst_133 : f32 to vector<2x8x8xf32>
    %226 = arith.select %224, %222, %225 : vector<2x8x8xi1>, vector<2x8x8xf32>
    %cst_134 = arith.constant dense<0xFF800000> : vector<2x8xf32>
    %227 = vector.multi_reduction <maximumf>, %226, %cst_134 [2] : vector<2x8x8xf32> to vector<2x8xf32>
    %228 = vector.shape_cast %227 : vector<2x8xf32> to vector<2x8x1xf32>
    %229 = vector.broadcast %228 : vector<2x8x1xf32> to vector<2x8x8xf32>
    %230 = arith.subf %226, %229 : vector<2x8x8xf32>
    %231 = math.exp %230 : vector<2x8x8xf32>
    %cst_135 = arith.constant dense<0.000000e+00> : vector<2x8xf32>
    %232 = vector.multi_reduction <add>, %231, %cst_135 [2] : vector<2x8x8xf32> to vector<2x8xf32>
    %233 = vector.shape_cast %232 : vector<2x8xf32> to vector<2x8x1xf32>
    %234 = tpu.reciprocal %233 {approx = true} : vector<2x8x1xf32> -> vector<2x8x1xf32>
    %235 = vector.broadcast %234 : vector<2x8x1xf32> to vector<2x8x8xf32>
    %236 = arith.mulf %231, %235 : vector<2x8x8xf32>
    "tpu.trace_start"() <{level = 10 : i32, message = "bqk,bkd->bqd"}> : () -> ()
    %cst_136 = arith.constant dense<0.000000e+00> : vector<2x8x8xf32>
    %237 = tpu.matmul %236, %219, %cst_136 {dimension_numbers = #tpu.dot_dimension_numbers<[2], [1], [1], [2], [0, 0, 0, 1, 1, 2], [0], [0]>} : vector<2x8x8xf32>, vector<2x8x8xf32>, vector<2x8x8xf32> -> vector<2x8x8xf32>
    "tpu.trace_stop"() : () -> ()
    %238 = vector.shape_cast %237 : vector<2x8x8xf32> to vector<16x8xf32>
    %239 = vector.extract_strided_slice %100 {offsets = [24, 0], sizes = [8, 32], strides = [1, 1]} : vector<32x32xf32> to vector<8x32xf32>
    %cst_137 = arith.constant dense<0.000000e+00> : vector<16x32xf32>
    %240 = tpu.matmul %238, %239, %cst_137 {dimension_numbers = #tpu.dot_dimension_numbers<[1], [0], [0], [1], [0, 0, 1, 1], [], []>} : vector<16x8xf32>, vector<8x32xf32>, vector<16x32xf32> -> vector<16x32xf32>
    %241 = arith.addf %216, %240 : vector<16x32xf32>
    %242 = arith.addf %96, %241 : vector<16x32xf32>
    %cst_138 = arith.constant dense<0.000000e+00> : vector<16xf32>
    %243 = vector.multi_reduction <add>, %242, %cst_138 [1] : vector<16x32xf32> to vector<16xf32>
    %244 = vector.shape_cast %243 : vector<16xf32> to vector<16x1xf32>
    %cst_139 = arith.constant 3.200000e+01 : f32
    %245 = vector.broadcast %cst_139 : f32 to vector<16x1xf32>
    %246 = arith.divf %244, %245 : vector<16x1xf32>
    %247 = vector.broadcast %246 : vector<16x1xf32> to vector<16x32xf32>
    %248 = arith.subf %242, %247 : vector<16x32xf32>
    %249 = arith.mulf %248, %248 : vector<16x32xf32>
    %cst_140 = arith.constant dense<0.000000e+00> : vector<16xf32>
    %250 = vector.multi_reduction <add>, %249, %cst_140 [1] : vector<16x32xf32> to vector<16xf32>
    %251 = vector.shape_cast %250 : vector<16xf32> to vector<16x1xf32>
    %cst_141 = arith.constant 3.200000e+01 : f32
    %252 = vector.broadcast %cst_141 : f32 to vector<16x1xf32>
    %253 = arith.divf %251, %252 : vector<16x1xf32>
    %cst_142 = arith.constant 9.99999974E-6 : f32
    %254 = vector.broadcast %cst_142 : f32 to vector<16x1xf32>
    %255 = arith.addf %253, %254 : vector<16x1xf32>
    %256 = math.rsqrt %255 : vector<16x1xf32>
    %257 = vector.broadcast %256 : vector<16x1xf32> to vector<16x32xf32>
    %258 = arith.mulf %248, %257 : vector<16x32xf32>
    %259 = vector.broadcast %102 : vector<1x32xf32> to vector<16x32xf32>
    %260 = arith.mulf %258, %259 : vector<16x32xf32>
    %261 = vector.broadcast %103 : vector<1x32xf32> to vector<16x32xf32>
    %262 = arith.addf %260, %261 : vector<16x32xf32>
    %cst_143 = arith.constant dense<0.000000e+00> : vector<16x128xf32>
    %263 = tpu.matmul %262, %104, %cst_143 {dimension_numbers = #tpu.dot_dimension_numbers<[1], [0], [0], [1], [0, 0, 1, 1], [], []>} : vector<16x32xf32>, vector<32x128xf32>, vector<16x128xf32> -> vector<16x128xf32>
    %264 = vector.broadcast %105 : vector<1x128xf32> to vector<16x128xf32>
    %265 = arith.addf %263, %264 : vector<16x128xf32>
    %cst_144 = arith.constant 0.000000e+00 : f32
    %266 = vector.broadcast %cst_144 : f32 to vector<16x128xf32>
    %267 = arith.maximumf %265, %266 : vector<16x128xf32>
    %cst_145 = arith.constant dense<0.000000e+00> : vector<16x32xf32>
    %268 = tpu.matmul %267, %106, %cst_145 {dimension_numbers = #tpu.dot_dimension_numbers<[1], [0], [0], [1], [0, 0, 1, 1], [], []>} : vector<16x128xf32>, vector<128x32xf32>, vector<16x32xf32> -> vector<16x32xf32>
    %269 = arith.addf %242, %268 : vector<16x32xf32>
    %270 = vector.broadcast %107 : vector<1x32xf32> to vector<16x32xf32>
    %271 = arith.addf %269, %270 : vector<16x32xf32>
    %c0_146 = arith.constant 0 : index
    %c0_147 = arith.constant 0 : index
    %272 = vector.load %arg15[%c0_146, %c0_147] : memref<1x32xf32, #tpu.memory_space<vmem>>, vector<1x32xf32>
    %c0_148 = arith.constant 0 : index
    %c0_149 = arith.constant 0 : index
    %273 = vector.load %arg16[%c0_148, %c0_149] : memref<1x32xf32, #tpu.memory_space<vmem>>, vector<1x32xf32>
    %c0_150 = arith.constant 0 : index
    %c0_151 = arith.constant 0 : index
    %274 = vector.load %arg17[%c0_150, %c0_151] : memref<32x96xf32, #tpu.memory_space<vmem>>, vector<32x96xf32>
    %c0_152 = arith.constant 0 : index
    %c0_153 = arith.constant 0 : index
    %275 = vector.load %arg18[%c0_152, %c0_153] : memref<32x32xf32, #tpu.memory_space<vmem>>, vector<32x32xf32>
    %c0_154 = arith.constant 0 : index
    %c0_155 = arith.constant 0 : index
    %276 = vector.load %arg19[%c0_154, %c0_155] : memref<1x32xf32, #tpu.memory_space<vmem>>, vector<1x32xf32>
    %c0_156 = arith.constant 0 : index
    %c0_157 = arith.constant 0 : index
    %277 = vector.load %arg20[%c0_156, %c0_157] : memref<1x32xf32, #tpu.memory_space<vmem>>, vector<1x32xf32>
    %c0_158 = arith.constant 0 : index
    %c0_159 = arith.constant 0 : index
    %278 = vector.load %arg21[%c0_158, %c0_159] : memref<1x32xf32, #tpu.memory_space<vmem>>, vector<1x32xf32>
    %c0_160 = arith.constant 0 : index
    %c0_161 = arith.constant 0 : index
    %279 = vector.load %arg22[%c0_160, %c0_161] : memref<32x128xf32, #tpu.memory_space<vmem>>, vector<32x128xf32>
    %c0_162 = arith.constant 0 : index
    %c0_163 = arith.constant 0 : index
    %280 = vector.load %arg23[%c0_162, %c0_163] : memref<1x128xf32, #tpu.memory_space<vmem>>, vector<1x128xf32>
    %c0_164 = arith.constant 0 : index
    %c0_165 = arith.constant 0 : index
    %281 = vector.load %arg24[%c0_164, %c0_165] : memref<128x32xf32, #tpu.memory_space<vmem>>, vector<128x32xf32>
    %c0_166 = arith.constant 0 : index
    %c0_167 = arith.constant 0 : index
    %282 = vector.load %arg25[%c0_166, %c0_167] : memref<1x32xf32, #tpu.memory_space<vmem>>, vector<1x32xf32>
    %cst_168 = arith.constant dense<0.000000e+00> : vector<16xf32>
    %283 = vector.multi_reduction <add>, %271, %cst_168 [1] : vector<16x32xf32> to vector<16xf32>
    %284 = vector.shape_cast %283 : vector<16xf32> to vector<16x1xf32>
    %cst_169 = arith.constant 3.200000e+01 : f32
    %285 = vector.broadcast %cst_169 : f32 to vector<16x1xf32>
    %286 = arith.divf %284, %285 : vector<16x1xf32>
    %287 = vector.broadcast %286 : vector<16x1xf32> to vector<16x32xf32>
    %288 = arith.subf %271, %287 : vector<16x32xf32>
    %289 = arith.mulf %288, %288 : vector<16x32xf32>
    %cst_170 = arith.constant dense<0.000000e+00> : vector<16xf32>
    %290 = vector.multi_reduction <add>, %289, %cst_170 [1] : vector<16x32xf32> to vector<16xf32>
    %291 = vector.shape_cast %290 : vector<16xf32> to vector<16x1xf32>
    %cst_171 = arith.constant 3.200000e+01 : f32
    %292 = vector.broadcast %cst_171 : f32 to vector<16x1xf32>
    %293 = arith.divf %291, %292 : vector<16x1xf32>
    %cst_172 = arith.constant 9.99999974E-6 : f32
    %294 = vector.broadcast %cst_172 : f32 to vector<16x1xf32>
    %295 = arith.addf %293, %294 : vector<16x1xf32>
    %296 = math.rsqrt %295 : vector<16x1xf32>
    %297 = vector.broadcast %296 : vector<16x1xf32> to vector<16x32xf32>
    %298 = arith.mulf %288, %297 : vector<16x32xf32>
    %299 = vector.broadcast %272 : vector<1x32xf32> to vector<16x32xf32>
    %300 = arith.mulf %298, %299 : vector<16x32xf32>
    %301 = vector.broadcast %273 : vector<1x32xf32> to vector<16x32xf32>
    %302 = arith.addf %300, %301 : vector<16x32xf32>
    %cst_173 = arith.constant dense<0.000000e+00> : vector<16x96xf32>
    %303 = tpu.matmul %302, %274, %cst_173 {dimension_numbers = #tpu.dot_dimension_numbers<[1], [0], [0], [1], [0, 0, 1, 1], [], []>} : vector<16x32xf32>, vector<32x96xf32>, vector<16x96xf32> -> vector<16x96xf32>
    %304 = vector.extract_strided_slice %303 {offsets = [0, 0], sizes = [16, 32], strides = [1, 1]} : vector<16x96xf32> to vector<16x32xf32>
    %305 = vector.shape_cast %304 : vector<16x32xf32> to vector<2x8x32xf32>
    %306 = vector.extract_strided_slice %303 {offsets = [0, 32], sizes = [16, 32], strides = [1, 1]} : vector<16x96xf32> to vector<16x32xf32>
    %307 = vector.shape_cast %306 : vector<16x32xf32> to vector<2x8x32xf32>
    %308 = vector.extract_strided_slice %303 {offsets = [0, 64], sizes = [16, 32], strides = [1, 1]} : vector<16x96xf32> to vector<16x32xf32>
    %309 = vector.shape_cast %308 : vector<16x32xf32> to vector<2x8x32xf32>
    %310 = tpu.iota {dimensions = array<i32: 0>} : vector<8x8xi32>
    %311 = tpu.iota {dimensions = array<i32: 1>} : vector<8x8xi32>
    %312 = arith.cmpi sge, %310, %311 : vector<8x8xi32>
    %313 = vector.shape_cast %312 : vector<8x8xi1> to vector<1x8x8xi1>
    %cst_174 = arith.constant 0.000000e+00 : f32
    %314 = vector.broadcast %cst_174 : f32 to vector<16x32xf32>
    %315 = vector.broadcast %276 : vector<1x32xf32> to vector<16x32xf32>
    %316 = arith.addf %314, %315 : vector<16x32xf32>
    %317 = vector.extract_strided_slice %305 {offsets = [0, 0, 0], sizes = [2, 8, 8], strides = [1, 1, 1]} : vector<2x8x32xf32> to vector<2x8x8xf32>
    %318 = vector.extract_strided_slice %307 {offsets = [0, 0, 0], sizes = [2, 8, 8], strides = [1, 1, 1]} : vector<2x8x32xf32> to vector<2x8x8xf32>
    %319 = vector.extract_strided_slice %309 {offsets = [0, 0, 0], sizes = [2, 8, 8], strides = [1, 1, 1]} : vector<2x8x32xf32> to vector<2x8x8xf32>
    "tpu.trace_start"() <{level = 10 : i32, message = "bqd,bkd->bqk"}> : () -> ()
    %cst_175 = arith.constant dense<0.000000e+00> : vector<2x8x8xf32>
    %320 = tpu.matmul %317, %318, %cst_175 {dimension_numbers = #tpu.dot_dimension_numbers<[2], [2], [1], [1], [0, 0, 0, 1, 1, 1], [0], [0]>} : vector<2x8x8xf32>, vector<2x8x8xf32>, vector<2x8x8xf32> -> vector<2x8x8xf32>
    "tpu.trace_stop"() : () -> ()
    %cst_176 = arith.constant 0.353553385 : f32
    %321 = vector.broadcast %cst_176 : f32 to vector<2x8x8xf32>
    %322 = arith.mulf %320, %321 : vector<2x8x8xf32>
    %cst_177 = arith.constant -1.000000e+30 : f32
    %323 = vector.shape_cast %313 : vector<1x8x8xi1> to vector<1x8x8xi1>
    %324 = vector.broadcast %323 : vector<1x8x8xi1> to vector<2x8x8xi1>
    %325 = vector.broadcast %cst_177 : f32 to vector<2x8x8xf32>
    %326 = arith.select %324, %322, %325 : vector<2x8x8xi1>, vector<2x8x8xf32>
    %cst_178 = arith.constant dense<0xFF800000> : vector<2x8xf32>
    %327 = vector.multi_reduction <maximumf>, %326, %cst_178 [2] : vector<2x8x8xf32> to vector<2x8xf32>
    %328 = vector.shape_cast %327 : vector<2x8xf32> to vector<2x8x1xf32>
    %329 = vector.broadcast %328 : vector<2x8x1xf32> to vector<2x8x8xf32>
    %330 = arith.subf %326, %329 : vector<2x8x8xf32>
    %331 = math.exp %330 : vector<2x8x8xf32>
    %cst_179 = arith.constant dense<0.000000e+00> : vector<2x8xf32>
    %332 = vector.multi_reduction <add>, %331, %cst_179 [2] : vector<2x8x8xf32> to vector<2x8xf32>
    %333 = vector.shape_cast %332 : vector<2x8xf32> to vector<2x8x1xf32>
    %334 = tpu.reciprocal %333 {approx = true} : vector<2x8x1xf32> -> vector<2x8x1xf32>
    %335 = vector.broadcast %334 : vector<2x8x1xf32> to vector<2x8x8xf32>
    %336 = arith.mulf %331, %335 : vector<2x8x8xf32>
    "tpu.trace_start"() <{level = 10 : i32, message = "bqk,bkd->bqd"}> : () -> ()
    %cst_180 = arith.constant dense<0.000000e+00> : vector<2x8x8xf32>
    %337 = tpu.matmul %336, %319, %cst_180 {dimension_numbers = #tpu.dot_dimension_numbers<[2], [1], [1], [2], [0, 0, 0, 1, 1, 2], [0], [0]>} : vector<2x8x8xf32>, vector<2x8x8xf32>, vector<2x8x8xf32> -> vector<2x8x8xf32>
    "tpu.trace_stop"() : () -> ()
    %338 = vector.shape_cast %337 : vector<2x8x8xf32> to vector<16x8xf32>
    %339 = vector.extract_strided_slice %275 {offsets = [0, 0], sizes = [8, 32], strides = [1, 1]} : vector<32x32xf32> to vector<8x32xf32>
    %cst_181 = arith.constant dense<0.000000e+00> : vector<16x32xf32>
    %340 = tpu.matmul %338, %339, %cst_181 {dimension_numbers = #tpu.dot_dimension_numbers<[1], [0], [0], [1], [0, 0, 1, 1], [], []>} : vector<16x8xf32>, vector<8x32xf32>, vector<16x32xf32> -> vector<16x32xf32>
    %341 = arith.addf %316, %340 : vector<16x32xf32>
    %342 = vector.extract_strided_slice %305 {offsets = [0, 0, 8], sizes = [2, 8, 8], strides = [1, 1, 1]} : vector<2x8x32xf32> to vector<2x8x8xf32>
    %343 = vector.extract_strided_slice %307 {offsets = [0, 0, 8], sizes = [2, 8, 8], strides = [1, 1, 1]} : vector<2x8x32xf32> to vector<2x8x8xf32>
    %344 = vector.extract_strided_slice %309 {offsets = [0, 0, 8], sizes = [2, 8, 8], strides = [1, 1, 1]} : vector<2x8x32xf32> to vector<2x8x8xf32>
    "tpu.trace_start"() <{level = 10 : i32, message = "bqd,bkd->bqk"}> : () -> ()
    %cst_182 = arith.constant dense<0.000000e+00> : vector<2x8x8xf32>
    %345 = tpu.matmul %342, %343, %cst_182 {dimension_numbers = #tpu.dot_dimension_numbers<[2], [2], [1], [1], [0, 0, 0, 1, 1, 1], [0], [0]>} : vector<2x8x8xf32>, vector<2x8x8xf32>, vector<2x8x8xf32> -> vector<2x8x8xf32>
    "tpu.trace_stop"() : () -> ()
    %cst_183 = arith.constant 0.353553385 : f32
    %346 = vector.broadcast %cst_183 : f32 to vector<2x8x8xf32>
    %347 = arith.mulf %345, %346 : vector<2x8x8xf32>
    %cst_184 = arith.constant -1.000000e+30 : f32
    %348 = vector.shape_cast %313 : vector<1x8x8xi1> to vector<1x8x8xi1>
    %349 = vector.broadcast %348 : vector<1x8x8xi1> to vector<2x8x8xi1>
    %350 = vector.broadcast %cst_184 : f32 to vector<2x8x8xf32>
    %351 = arith.select %349, %347, %350 : vector<2x8x8xi1>, vector<2x8x8xf32>
    %cst_185 = arith.constant dense<0xFF800000> : vector<2x8xf32>
    %352 = vector.multi_reduction <maximumf>, %351, %cst_185 [2] : vector<2x8x8xf32> to vector<2x8xf32>
    %353 = vector.shape_cast %352 : vector<2x8xf32> to vector<2x8x1xf32>
    %354 = vector.broadcast %353 : vector<2x8x1xf32> to vector<2x8x8xf32>
    %355 = arith.subf %351, %354 : vector<2x8x8xf32>
    %356 = math.exp %355 : vector<2x8x8xf32>
    %cst_186 = arith.constant dense<0.000000e+00> : vector<2x8xf32>
    %357 = vector.multi_reduction <add>, %356, %cst_186 [2] : vector<2x8x8xf32> to vector<2x8xf32>
    %358 = vector.shape_cast %357 : vector<2x8xf32> to vector<2x8x1xf32>
    %359 = tpu.reciprocal %358 {approx = true} : vector<2x8x1xf32> -> vector<2x8x1xf32>
    %360 = vector.broadcast %359 : vector<2x8x1xf32> to vector<2x8x8xf32>
    %361 = arith.mulf %356, %360 : vector<2x8x8xf32>
    "tpu.trace_start"() <{level = 10 : i32, message = "bqk,bkd->bqd"}> : () -> ()
    %cst_187 = arith.constant dense<0.000000e+00> : vector<2x8x8xf32>
    %362 = tpu.matmul %361, %344, %cst_187 {dimension_numbers = #tpu.dot_dimension_numbers<[2], [1], [1], [2], [0, 0, 0, 1, 1, 2], [0], [0]>} : vector<2x8x8xf32>, vector<2x8x8xf32>, vector<2x8x8xf32> -> vector<2x8x8xf32>
    "tpu.trace_stop"() : () -> ()
    %363 = vector.shape_cast %362 : vector<2x8x8xf32> to vector<16x8xf32>
    %364 = vector.extract_strided_slice %275 {offsets = [8, 0], sizes = [8, 32], strides = [1, 1]} : vector<32x32xf32> to vector<8x32xf32>
    %cst_188 = arith.constant dense<0.000000e+00> : vector<16x32xf32>
    %365 = tpu.matmul %363, %364, %cst_188 {dimension_numbers = #tpu.dot_dimension_numbers<[1], [0], [0], [1], [0, 0, 1, 1], [], []>} : vector<16x8xf32>, vector<8x32xf32>, vector<16x32xf32> -> vector<16x32xf32>
    %366 = arith.addf %341, %365 : vector<16x32xf32>
    %367 = vector.extract_strided_slice %305 {offsets = [0, 0, 16], sizes = [2, 8, 8], strides = [1, 1, 1]} : vector<2x8x32xf32> to vector<2x8x8xf32>
    %368 = vector.extract_strided_slice %307 {offsets = [0, 0, 16], sizes = [2, 8, 8], strides = [1, 1, 1]} : vector<2x8x32xf32> to vector<2x8x8xf32>
    %369 = vector.extract_strided_slice %309 {offsets = [0, 0, 16], sizes = [2, 8, 8], strides = [1, 1, 1]} : vector<2x8x32xf32> to vector<2x8x8xf32>
    "tpu.trace_start"() <{level = 10 : i32, message = "bqd,bkd->bqk"}> : () -> ()
    %cst_189 = arith.constant dense<0.000000e+00> : vector<2x8x8xf32>
    %370 = tpu.matmul %367, %368, %cst_189 {dimension_numbers = #tpu.dot_dimension_numbers<[2], [2], [1], [1], [0, 0, 0, 1, 1, 1], [0], [0]>} : vector<2x8x8xf32>, vector<2x8x8xf32>, vector<2x8x8xf32> -> vector<2x8x8xf32>
    "tpu.trace_stop"() : () -> ()
    %cst_190 = arith.constant 0.353553385 : f32
    %371 = vector.broadcast %cst_190 : f32 to vector<2x8x8xf32>
    %372 = arith.mulf %370, %371 : vector<2x8x8xf32>
    %cst_191 = arith.constant -1.000000e+30 : f32
    %373 = vector.shape_cast %313 : vector<1x8x8xi1> to vector<1x8x8xi1>
    %374 = vector.broadcast %373 : vector<1x8x8xi1> to vector<2x8x8xi1>
    %375 = vector.broadcast %cst_191 : f32 to vector<2x8x8xf32>
    %376 = arith.select %374, %372, %375 : vector<2x8x8xi1>, vector<2x8x8xf32>
    %cst_192 = arith.constant dense<0xFF800000> : vector<2x8xf32>
    %377 = vector.multi_reduction <maximumf>, %376, %cst_192 [2] : vector<2x8x8xf32> to vector<2x8xf32>
    %378 = vector.shape_cast %377 : vector<2x8xf32> to vector<2x8x1xf32>
    %379 = vector.broadcast %378 : vector<2x8x1xf32> to vector<2x8x8xf32>
    %380 = arith.subf %376, %379 : vector<2x8x8xf32>
    %381 = math.exp %380 : vector<2x8x8xf32>
    %cst_193 = arith.constant dense<0.000000e+00> : vector<2x8xf32>
    %382 = vector.multi_reduction <add>, %381, %cst_193 [2] : vector<2x8x8xf32> to vector<2x8xf32>
    %383 = vector.shape_cast %382 : vector<2x8xf32> to vector<2x8x1xf32>
    %384 = tpu.reciprocal %383 {approx = true} : vector<2x8x1xf32> -> vector<2x8x1xf32>
    %385 = vector.broadcast %384 : vector<2x8x1xf32> to vector<2x8x8xf32>
    %386 = arith.mulf %381, %385 : vector<2x8x8xf32>
    "tpu.trace_start"() <{level = 10 : i32, message = "bqk,bkd->bqd"}> : () -> ()
    %cst_194 = arith.constant dense<0.000000e+00> : vector<2x8x8xf32>
    %387 = tpu.matmul %386, %369, %cst_194 {dimension_numbers = #tpu.dot_dimension_numbers<[2], [1], [1], [2], [0, 0, 0, 1, 1, 2], [0], [0]>} : vector<2x8x8xf32>, vector<2x8x8xf32>, vector<2x8x8xf32> -> vector<2x8x8xf32>
    "tpu.trace_stop"() : () -> ()
    %388 = vector.shape_cast %387 : vector<2x8x8xf32> to vector<16x8xf32>
    %389 = vector.extract_strided_slice %275 {offsets = [16, 0], sizes = [8, 32], strides = [1, 1]} : vector<32x32xf32> to vector<8x32xf32>
    %cst_195 = arith.constant dense<0.000000e+00> : vector<16x32xf32>
    %390 = tpu.matmul %388, %389, %cst_195 {dimension_numbers = #tpu.dot_dimension_numbers<[1], [0], [0], [1], [0, 0, 1, 1], [], []>} : vector<16x8xf32>, vector<8x32xf32>, vector<16x32xf32> -> vector<16x32xf32>
    %391 = arith.addf %366, %390 : vector<16x32xf32>
    %392 = vector.extract_strided_slice %305 {offsets = [0, 0, 24], sizes = [2, 8, 8], strides = [1, 1, 1]} : vector<2x8x32xf32> to vector<2x8x8xf32>
    %393 = vector.extract_strided_slice %307 {offsets = [0, 0, 24], sizes = [2, 8, 8], strides = [1, 1, 1]} : vector<2x8x32xf32> to vector<2x8x8xf32>
    %394 = vector.extract_strided_slice %309 {offsets = [0, 0, 24], sizes = [2, 8, 8], strides = [1, 1, 1]} : vector<2x8x32xf32> to vector<2x8x8xf32>
    "tpu.trace_start"() <{level = 10 : i32, message = "bqd,bkd->bqk"}> : () -> ()
    %cst_196 = arith.constant dense<0.000000e+00> : vector<2x8x8xf32>
    %395 = tpu.matmul %392, %393, %cst_196 {dimension_numbers = #tpu.dot_dimension_numbers<[2], [2], [1], [1], [0, 0, 0, 1, 1, 1], [0], [0]>} : vector<2x8x8xf32>, vector<2x8x8xf32>, vector<2x8x8xf32> -> vector<2x8x8xf32>
    "tpu.trace_stop"() : () -> ()
    %cst_197 = arith.constant 0.353553385 : f32
    %396 = vector.broadcast %cst_197 : f32 to vector<2x8x8xf32>
    %397 = arith.mulf %395, %396 : vector<2x8x8xf32>
    %cst_198 = arith.constant -1.000000e+30 : f32
    %398 = vector.shape_cast %313 : vector<1x8x8xi1> to vector<1x8x8xi1>
    %399 = vector.broadcast %398 : vector<1x8x8xi1> to vector<2x8x8xi1>
    %400 = vector.broadcast %cst_198 : f32 to vector<2x8x8xf32>
    %401 = arith.select %399, %397, %400 : vector<2x8x8xi1>, vector<2x8x8xf32>
    %cst_199 = arith.constant dense<0xFF800000> : vector<2x8xf32>
    %402 = vector.multi_reduction <maximumf>, %401, %cst_199 [2] : vector<2x8x8xf32> to vector<2x8xf32>
    %403 = vector.shape_cast %402 : vector<2x8xf32> to vector<2x8x1xf32>
    %404 = vector.broadcast %403 : vector<2x8x1xf32> to vector<2x8x8xf32>
    %405 = arith.subf %401, %404 : vector<2x8x8xf32>
    %406 = math.exp %405 : vector<2x8x8xf32>
    %cst_200 = arith.constant dense<0.000000e+00> : vector<2x8xf32>
    %407 = vector.multi_reduction <add>, %406, %cst_200 [2] : vector<2x8x8xf32> to vector<2x8xf32>
    %408 = vector.shape_cast %407 : vector<2x8xf32> to vector<2x8x1xf32>
    %409 = tpu.reciprocal %408 {approx = true} : vector<2x8x1xf32> -> vector<2x8x1xf32>
    %410 = vector.broadcast %409 : vector<2x8x1xf32> to vector<2x8x8xf32>
    %411 = arith.mulf %406, %410 : vector<2x8x8xf32>
    "tpu.trace_start"() <{level = 10 : i32, message = "bqk,bkd->bqd"}> : () -> ()
    %cst_201 = arith.constant dense<0.000000e+00> : vector<2x8x8xf32>
    %412 = tpu.matmul %411, %394, %cst_201 {dimension_numbers = #tpu.dot_dimension_numbers<[2], [1], [1], [2], [0, 0, 0, 1, 1, 2], [0], [0]>} : vector<2x8x8xf32>, vector<2x8x8xf32>, vector<2x8x8xf32> -> vector<2x8x8xf32>
    "tpu.trace_stop"() : () -> ()
    %413 = vector.shape_cast %412 : vector<2x8x8xf32> to vector<16x8xf32>
    %414 = vector.extract_strided_slice %275 {offsets = [24, 0], sizes = [8, 32], strides = [1, 1]} : vector<32x32xf32> to vector<8x32xf32>
    %cst_202 = arith.constant dense<0.000000e+00> : vector<16x32xf32>
    %415 = tpu.matmul %413, %414, %cst_202 {dimension_numbers = #tpu.dot_dimension_numbers<[1], [0], [0], [1], [0, 0, 1, 1], [], []>} : vector<16x8xf32>, vector<8x32xf32>, vector<16x32xf32> -> vector<16x32xf32>
    %416 = arith.addf %391, %415 : vector<16x32xf32>
    %417 = arith.addf %271, %416 : vector<16x32xf32>
    %cst_203 = arith.constant dense<0.000000e+00> : vector<16xf32>
    %418 = vector.multi_reduction <add>, %417, %cst_203 [1] : vector<16x32xf32> to vector<16xf32>
    %419 = vector.shape_cast %418 : vector<16xf32> to vector<16x1xf32>
    %cst_204 = arith.constant 3.200000e+01 : f32
    %420 = vector.broadcast %cst_204 : f32 to vector<16x1xf32>
    %421 = arith.divf %419, %420 : vector<16x1xf32>
    %422 = vector.broadcast %421 : vector<16x1xf32> to vector<16x32xf32>
    %423 = arith.subf %417, %422 : vector<16x32xf32>
    %424 = arith.mulf %423, %423 : vector<16x32xf32>
    %cst_205 = arith.constant dense<0.000000e+00> : vector<16xf32>
    %425 = vector.multi_reduction <add>, %424, %cst_205 [1] : vector<16x32xf32> to vector<16xf32>
    %426 = vector.shape_cast %425 : vector<16xf32> to vector<16x1xf32>
    %cst_206 = arith.constant 3.200000e+01 : f32
    %427 = vector.broadcast %cst_206 : f32 to vector<16x1xf32>
    %428 = arith.divf %426, %427 : vector<16x1xf32>
    %cst_207 = arith.constant 9.99999974E-6 : f32
    %429 = vector.broadcast %cst_207 : f32 to vector<16x1xf32>
    %430 = arith.addf %428, %429 : vector<16x1xf32>
    %431 = math.rsqrt %430 : vector<16x1xf32>
    %432 = vector.broadcast %431 : vector<16x1xf32> to vector<16x32xf32>
    %433 = arith.mulf %423, %432 : vector<16x32xf32>
    %434 = vector.broadcast %277 : vector<1x32xf32> to vector<16x32xf32>
    %435 = arith.mulf %433, %434 : vector<16x32xf32>
    %436 = vector.broadcast %278 : vector<1x32xf32> to vector<16x32xf32>
    %437 = arith.addf %435, %436 : vector<16x32xf32>
    %cst_208 = arith.constant dense<0.000000e+00> : vector<16x128xf32>
    %438 = tpu.matmul %437, %279, %cst_208 {dimension_numbers = #tpu.dot_dimension_numbers<[1], [0], [0], [1], [0, 0, 1, 1], [], []>} : vector<16x32xf32>, vector<32x128xf32>, vector<16x128xf32> -> vector<16x128xf32>
    %439 = vector.broadcast %280 : vector<1x128xf32> to vector<16x128xf32>
    %440 = arith.addf %438, %439 : vector<16x128xf32>
    %cst_209 = arith.constant 0.000000e+00 : f32
    %441 = vector.broadcast %cst_209 : f32 to vector<16x128xf32>
    %442 = arith.maximumf %440, %441 : vector<16x128xf32>
    %cst_210 = arith.constant dense<0.000000e+00> : vector<16x32xf32>
    %443 = tpu.matmul %442, %281, %cst_210 {dimension_numbers = #tpu.dot_dimension_numbers<[1], [0], [0], [1], [0, 0, 1, 1], [], []>} : vector<16x128xf32>, vector<128x32xf32>, vector<16x32xf32> -> vector<16x32xf32>
    %444 = arith.addf %417, %443 : vector<16x32xf32>
    %445 = vector.broadcast %282 : vector<1x32xf32> to vector<16x32xf32>
    %446 = arith.addf %444, %445 : vector<16x32xf32>
    %c0_211 = arith.constant 0 : index
    %c0_212 = arith.constant 0 : index
    %447 = vector.load %arg26[%c0_211, %c0_212] : memref<1x32xf32, #tpu.memory_space<vmem>>, vector<1x32xf32>
    %c0_213 = arith.constant 0 : index
    %c0_214 = arith.constant 0 : index
    %448 = vector.load %arg27[%c0_213, %c0_214] : memref<1x32xf32, #tpu.memory_space<vmem>>, vector<1x32xf32>
    %cst_215 = arith.constant dense<0.000000e+00> : vector<16xf32>
    %449 = vector.multi_reduction <add>, %446, %cst_215 [1] : vector<16x32xf32> to vector<16xf32>
    %450 = vector.shape_cast %449 : vector<16xf32> to vector<16x1xf32>
    %cst_216 = arith.constant 3.200000e+01 : f32
    %451 = vector.broadcast %cst_216 : f32 to vector<16x1xf32>
    %452 = arith.divf %450, %451 : vector<16x1xf32>
    %453 = vector.broadcast %452 : vector<16x1xf32> to vector<16x32xf32>
    %454 = arith.subf %446, %453 : vector<16x32xf32>
    %455 = arith.mulf %454, %454 : vector<16x32xf32>
    %cst_217 = arith.constant dense<0.000000e+00> : vector<16xf32>
    %456 = vector.multi_reduction <add>, %455, %cst_217 [1] : vector<16x32xf32> to vector<16xf32>
    %457 = vector.shape_cast %456 : vector<16xf32> to vector<16x1xf32>
    %cst_218 = arith.constant 3.200000e+01 : f32
    %458 = vector.broadcast %cst_218 : f32 to vector<16x1xf32>
    %459 = arith.divf %457, %458 : vector<16x1xf32>
    %cst_219 = arith.constant 9.99999974E-6 : f32
    %460 = vector.broadcast %cst_219 : f32 to vector<16x1xf32>
    %461 = arith.addf %459, %460 : vector<16x1xf32>
    %462 = math.rsqrt %461 : vector<16x1xf32>
    %463 = vector.broadcast %462 : vector<16x1xf32> to vector<16x32xf32>
    %464 = arith.mulf %454, %463 : vector<16x32xf32>
    %465 = vector.broadcast %447 : vector<1x32xf32> to vector<16x32xf32>
    %466 = arith.mulf %464, %465 : vector<16x32xf32>
    %467 = vector.broadcast %448 : vector<1x32xf32> to vector<16x32xf32>
    %468 = arith.addf %466, %467 : vector<16x32xf32>
    %c0_220 = arith.constant 0 : index
    %c0_221 = arith.constant 0 : index
    %469 = vector.load %arg28[%c0_220, %c0_221] : memref<32x128xf32, #tpu.memory_space<vmem>>, vector<32x128xf32>
    %cst_222 = arith.constant dense<0.000000e+00> : vector<16x128xf32>
    %470 = tpu.matmul %468, %469, %cst_222 {dimension_numbers = #tpu.dot_dimension_numbers<[1], [0], [0], [1], [0, 0, 1, 1], [], []>} : vector<16x32xf32>, vector<32x128xf32>, vector<16x128xf32> -> vector<16x128xf32>
    %c0_223 = arith.constant 0 : index
    %c0_224 = arith.constant 0 : index
    %471 = vector.load %arg29[%c0_223, %c0_224] : memref<1x128xf32, #tpu.memory_space<vmem>>, vector<1x128xf32>
    %472 = vector.broadcast %471 : vector<1x128xf32> to vector<16x128xf32>
    %473 = arith.addf %470, %472 : vector<16x128xf32>
    %c0_225 = arith.constant 0 : index
    %c0_226 = arith.constant 0 : index
    %474 = vector.load %arg30[%c0_225, %c0_226] : memref<16x128xf32, #tpu.memory_space<vmem>>, vector<16x128xf32>
    tpu.vector_store %arg30[%c0_225, %c0_226], %473 {strides = array<i32>} : memref<16x128xf32, #tpu.memory_space<vmem>>, vector<16x128xf32>,
    return
  }
  func.func @transform_0(%arg0: i32, %arg1: memref<16xi32, #tpu.memory_space<smem>>) -> (i32, i32) {
    %c0_i32 = arith.constant 0 : i32
    %c0_i32_0 = arith.constant 0 : i32
    %c0_i32_1 = arith.constant 0 : i32
    return %c0_i32, %c0_i32_0 : i32, i32
  }
  func.func @transform_1(%arg0: i32, %arg1: memref<16xi32, #tpu.memory_space<smem>>) -> (i32, i32) {
    %c0_i32 = arith.constant 0 : i32
    %c0_i32_0 = arith.constant 0 : i32
    %c0_i32_1 = arith.constant 0 : i32
    return %c0_i32, %c0_i32_0 : i32, i32
  }
  func.func @transform_2(%arg0: i32, %arg1: memref<16xi32, #tpu.memory_space<smem>>) -> (i32, i32) {
    %c0_i32 = arith.constant 0 : i32
    %c0_i32_0 = arith.constant 0 : i32
    %c0_i32_1 = arith.constant 0 : i32
    return %c0_i32, %c0_i32_0 : i32, i32
  }
  func.func @transform_3(%arg0: i32, %arg1: memref<16xi32, #tpu.memory_space<smem>>) -> (i32, i32) {
    %c0_i32 = arith.constant 0 : i32
    %c0_i32_0 = arith.constant 0 : i32
    %c0_i32_1 = arith.constant 0 : i32
    return %c0_i32, %c0_i32_0 : i32, i32
  }
  func.func @transform_4(%arg0: i32, %arg1: memref<16xi32, #tpu.memory_space<smem>>) -> (i32, i32) {
    %c0_i32 = arith.constant 0 : i32
    %c0_i32_0 = arith.constant 0 : i32
    %c0_i32_1 = arith.constant 0 : i32
    return %c0_i32, %c0_i32_0 : i32, i32
  }
  func.func @transform_5(%arg0: i32, %arg1: memref<16xi32, #tpu.memory_space<smem>>) -> (i32, i32) {
    %c0_i32 = arith.constant 0 : i32
    %c0_i32_0 = arith.constant 0 : i32
    %c0_i32_1 = arith.constant 0 : i32
    return %c0_i32, %c0_i32_0 : i32, i32
  }
  func.func @transform_6(%arg0: i32, %arg1: memref<16xi32, #tpu.memory_space<smem>>) -> (i32, i32) {
    %c0_i32 = arith.constant 0 : i32
    %c0_i32_0 = arith.constant 0 : i32
    %c0_i32_1 = arith.constant 0 : i32
    return %c0_i32, %c0_i32_0 : i32, i32
  }
  func.func @transform_7(%arg0: i32, %arg1: memref<16xi32, #tpu.memory_space<smem>>) -> (i32, i32) {
    %c0_i32 = arith.constant 0 : i32
    %c0_i32_0 = arith.constant 0 : i32
    %c0_i32_1 = arith.constant 0 : i32
    return %c0_i32, %c0_i32_0 : i32, i32
  }
  func.func @transform_8(%arg0: i32, %arg1: memref<16xi32, #tpu.memory_space<smem>>) -> (i32, i32) {
    %c0_i32 = arith.constant 0 : i32
    %c0_i32_0 = arith.constant 0 : i32
    %c0_i32_1 = arith.constant 0 : i32
    return %c0_i32, %c0_i32_0 : i32, i32
  }
  func.func @transform_9(%arg0: i32, %arg1: memref<16xi32, #tpu.memory_space<smem>>) -> (i32, i32) {
    %c0_i32 = arith.constant 0 : i32
    %c0_i32_0 = arith.constant 0 : i32
    %c0_i32_1 = arith.constant 0 : i32
    return %c0_i32, %c0_i32_0 : i32, i32
  }
  func.func @transform_10(%arg0: i32, %arg1: memref<16xi32, #tpu.memory_space<smem>>) -> (i32, i32) {
    %c0_i32 = arith.constant 0 : i32
    %c0_i32_0 = arith.constant 0 : i32
    %c0_i32_1 = arith.constant 0 : i32
    return %c0_i32, %c0_i32_0 : i32, i32
  }
  func.func @transform_11(%arg0: i32, %arg1: memref<16xi32, #tpu.memory_space<smem>>) -> (i32, i32) {
    %c0_i32 = arith.constant 0 : i32
    %c0_i32_0 = arith.constant 0 : i32
    %c0_i32_1 = arith.constant 0 : i32
    return %c0_i32, %c0_i32_0 : i32, i32
  }
  func.func @transform_12(%arg0: i32, %arg1: memref<16xi32, #tpu.memory_space<smem>>) -> (i32, i32) {
    %c0_i32 = arith.constant 0 : i32
    %c0_i32_0 = arith.constant 0 : i32
    %c0_i32_1 = arith.constant 0 : i32
    return %c0_i32, %c0_i32_0 : i32, i32
  }
  func.func @transform_13(%arg0: i32, %arg1: memref<16xi32, #tpu.memory_space<smem>>) -> (i32, i32) {
    %c0_i32 = arith.constant 0 : i32
    %c0_i32_0 = arith.constant 0 : i32
    %c0_i32_1 = arith.constant 0 : i32
    return %c0_i32, %c0_i32_0 : i32, i32
  }
  func.func @transform_14(%arg0: i32, %arg1: memref<16xi32, #tpu.memory_space<smem>>) -> (i32, i32) {
    %c0_i32 = arith.constant 0 : i32
    %c0_i32_0 = arith.constant 0 : i32
    %c0_i32_1 = arith.constant 0 : i32
    return %c0_i32, %c0_i32_0 : i32, i32
  }
  func.func @transform_15(%arg0: i32, %arg1: memref<16xi32, #tpu.memory_space<smem>>) -> (i32, i32) {
    %c0_i32 = arith.constant 0 : i32
    %c0_i32_0 = arith.constant 0 : i32
    %c0_i32_1 = arith.constant 0 : i32
    return %c0_i32, %c0_i32_0 : i32, i32
  }
  func.func @transform_16(%arg0: i32, %arg1: memref<16xi32, #tpu.memory_space<smem>>) -> (i32, i32) {
    %c0_i32 = arith.constant 0 : i32
    %c0_i32_0 = arith.constant 0 : i32
    %c0_i32_1 = arith.constant 0 : i32
    return %c0_i32, %c0_i32_0 : i32, i32
  }
  func.func @transform_17(%arg0: i32, %arg1: memref<16xi32, #tpu.memory_space<smem>>) -> (i32, i32) {
    %c0_i32 = arith.constant 0 : i32
    %c0_i32_0 = arith.constant 0 : i32
    %c0_i32_1 = arith.constant 0 : i32
    return %c0_i32, %c0_i32_0 : i32, i32
  }
  func.func @transform_18(%arg0: i32, %arg1: memref<16xi32, #tpu.memory_space<smem>>) -> (i32, i32) {
    %c0_i32 = arith.constant 0 : i32
    %c0_i32_0 = arith.constant 0 : i32
    %c0_i32_1 = arith.constant 0 : i32
    return %c0_i32, %c0_i32_0 : i32, i32
  }
  func.func @transform_19(%arg0: i32, %arg1: memref<16xi32, #tpu.memory_space<smem>>) -> (i32, i32) {
    %c0_i32 = arith.constant 0 : i32
    %c0_i32_0 = arith.constant 0 : i32
    %c0_i32_1 = arith.constant 0 : i32
    return %c0_i32, %c0_i32_0 : i32, i32
  }
  func.func @transform_20(%arg0: i32, %arg1: memref<16xi32, #tpu.memory_space<smem>>) -> (i32, i32) {
    %c0_i32 = arith.constant 0 : i32
    %c0_i32_0 = arith.constant 0 : i32
    %c0_i32_1 = arith.constant 0 : i32
    return %c0_i32, %c0_i32_0 : i32, i32
  }
  func.func @transform_21(%arg0: i32, %arg1: memref<16xi32, #tpu.memory_space<smem>>) -> (i32, i32) {
    %c0_i32 = arith.constant 0 : i32
    %c0_i32_0 = arith.constant 0 : i32
    %c0_i32_1 = arith.constant 0 : i32
    return %c0_i32, %c0_i32_0 : i32, i32
  }
  func.func @transform_22(%arg0: i32, %arg1: memref<16xi32, #tpu.memory_space<smem>>) -> (i32, i32) {
    %c0_i32 = arith.constant 0 : i32
    %c0_i32_0 = arith.constant 0 : i32
    %c0_i32_1 = arith.constant 0 : i32
    return %c0_i32, %c0_i32_0 : i32, i32
  }
  func.func @transform_23(%arg0: i32, %arg1: memref<16xi32, #tpu.memory_space<smem>>) -> (i32, i32) {
    %c0_i32 = arith.constant 0 : i32
    %c0_i32_0 = arith.constant 0 : i32
    %c0_i32_1 = arith.constant 0 : i32
    return %c0_i32, %c0_i32_0 : i32, i32
  }
  func.func @transform_24(%arg0: i32, %arg1: memref<16xi32, #tpu.memory_space<smem>>) -> (i32, i32) {
    %c0_i32 = arith.constant 0 : i32
    %c0_i32_0 = arith.constant 0 : i32
    %c0_i32_1 = arith.constant 0 : i32
    return %c0_i32, %c0_i32_0 : i32, i32
  }
  func.func @transform_25(%arg0: i32, %arg1: memref<16xi32, #tpu.memory_space<smem>>) -> (i32, i32) {
    %c0_i32 = arith.constant 0 : i32
    %c0_i32_0 = arith.constant 0 : i32
    %c0_i32_1 = arith.constant 0 : i32
    return %c0_i32, %c0_i32_0 : i32, i32
  }
  func.func @transform_26(%arg0: i32, %arg1: memref<16xi32, #tpu.memory_space<smem>>) -> (i32, i32) {
    %c0_i32 = arith.constant 0 : i32
    %c0_i32_0 = arith.constant 0 : i32
    %c0_i32_1 = arith.constant 0 : i32
    return %c0_i32, %c0_i32_0 : i32, i32
  }
  func.func @transform_27(%arg0: i32, %arg1: memref<16xi32, #tpu.memory_space<smem>>) -> (i32, i32) {
    %c0_i32 = arith.constant 0 : i32
    %c0_i32_0 = arith.constant 0 : i32
    %c0_i32_1 = arith.constant 0 : i32
    return %c0_i32, %c0_i32_0 : i32, i32
  }
  func.func @transform_28(%arg0: i32, %arg1: memref<16xi32, #tpu.memory_space<smem>>) -> (i32, i32) {
    %c0_i32 = arith.constant 0 : i32
    %c0_i32_0 = arith.constant 0 : i32
    %c0_i32_1 = arith.constant 0 : i32
    return %c0_i32, %c0_i32_0 : i32, i32
  }
}

</mosaic_0001>

<llo_original>
// kernel: transformer_forward.1
$region0: #{transformer_forward.1}
  #allocation0 [shape = 'u32[]', space=smem, size = 0x4, offset = 0x4, fixed_abs, tag = 'smem constant byte address 0x4 - core index']
  #allocation1 [shape = 'u32[144,128]{1,0:T(1,128)}', space=vmem, size = 0x12000, scoped, tag = 'internal scratch']
  #allocation2 [shape = 'f32[16,32]{1,0:T(8,128)}', space=vmem, size = 0x2000, scoped, tag = 'scratch operand']
  #allocation3 [shape = 's32[1]{0}', space=sflag, size = 0x4, scoped, tag = 'scoped memory for transformer_forward.1']
  #allocation4 [shape = 'u8[512]{0}', space=smem, size = 0x200, scoped, tag = 'prefetched SMEM operand 0']
  %s0 = inlined_call_operand.smem [shape: u32[30], index: -1, kind: input, shape index: {}]
  %s1 = sld [smem:[%s0]]
  %s2 = scalar_lea.smem %s0, 1
  %s3 = sld [smem:[%s2]]
  %s4 = scalar_lea.smem %s0, 2
  %s5 = sld [smem:[%s4]]
  %s6 = scalar_lea.smem %s0, 3
  %s7 = sld [smem:[%s6]]
  %s8 = scalar_lea.smem %s0, 4
  %s9 = sld [smem:[%s8]]
  %s10 = scalar_lea.smem %s0, 5
  %s11 = sld [smem:[%s10]]
  %s12 = scalar_lea.smem %s0, 6
  %s13 = sld [smem:[%s12]]
  %s14 = scalar_lea.smem %s0, 7
  %s15 = sld [smem:[%s14]]
  %s16 = scalar_lea.smem %s0, 8
  %s17 = sld [smem:[%s16]]
  %s18 = scalar_lea.smem %s0, 9
  %s19 = sld [smem:[%s18]]
  %s20 = scalar_lea.smem %s0, 10
  %s21 = sld [smem:[%s20]]
  %s22 = scalar_lea.smem %s0, 11
  %s23 = sld [smem:[%s22]]
  %s24 = scalar_lea.smem %s0, 12
  %s25 = sld [smem:[%s24]]
  %s26 = scalar_lea.smem %s0, 13
  %s27 = sld [smem:[%s26]]
  %s28 = scalar_lea.smem %s0, 14
  %s29 = sld [smem:[%s28]]
  %s30 = scalar_lea.smem %s0, 15
  %s31 = sld [smem:[%s30]]
  %s32 = scalar_lea.smem %s0, 16
  %s33 = sld [smem:[%s32]]
  %s34 = scalar_lea.smem %s0, 17
  %s35 = sld [smem:[%s34]]
  %s36 = scalar_lea.smem %s0, 18
  %s37 = sld [smem:[%s36]]
  %s38 = scalar_lea.smem %s0, 19
  %s39 = sld [smem:[%s38]]
  %s40 = scalar_lea.smem %s0, 20
  %s41 = sld [smem:[%s40]]
  %s42 = scalar_lea.smem %s0, 21
  %s43 = sld [smem:[%s42]]
  %s44 = scalar_lea.smem %s0, 22
  %s45 = sld [smem:[%s44]]
  %s46 = scalar_lea.smem %s0, 23
  %s47 = sld [smem:[%s46]]
  %s48 = scalar_lea.smem %s0, 24
  %s49 = sld [smem:[%s48]]
  %s50 = scalar_lea.smem %s0, 25
  %s51 = sld [smem:[%s50]]
  %s52 = scalar_lea.smem %s0, 26
  %s53 = sld [smem:[%s52]]
  %s54 = scalar_lea.smem %s0, 27
  %s55 = sld [smem:[%s54]]
  %s56 = scalar_lea.smem %s0, 28
  %s57 = sld [smem:[%s56]]
  %s58 = scalar_lea.smem %s0, 29
  %s59 = sld [smem:[%s58]]
  %s60 = sld [smem:[#allocation0]]
  $region122: #{transformer_forward.1} parent=0
    _
  %s62 = ssub.s32 1, %s60
  %s63 = scalar_select 0, %s62, %s60
  %s64 = sshll.u32 %s1, 4
  %s65 = int_to_ptr.vmem [resolvable:$true] %s64
  %67 = dma.vmem_to_smem %s65, 16, [#allocation4], [#allocation3]
  %68 = dma.done [#allocation3], 16
  %69 = sfence
  // Predicated region
  $region2: #{transformer_forward.1} parent=0 // pred_check
    _
  $region3: #{transformer_forward.1} parent=0 // pred_check_branch
    %71 = sbr.rel (0) target = $region5
  $region4: #{transformer_forward.1} parent=0 // pred_region
    _
  $region5: #{transformer_forward.1} parent=0 // pred_fallthru
    _
  // Predicated region
  $region6: #{transformer_forward.1} parent=0 // pred_check
    _
  $region7: #{transformer_forward.1} parent=0 // pred_check_branch
    %73 = sbr.rel (0) target = $region9
  $region8: #{transformer_forward.1} parent=0 // pred_region
    _
  $region9: #{transformer_forward.1} parent=0 // pred_fallthru
    _
  // Predicated region
  $region10: #{transformer_forward.1} parent=0 // pred_check
    _
  $region11: #{transformer_forward.1} parent=0 // pred_check_branch
    %75 = sbr.rel (0) target = $region13
  $region12: #{transformer_forward.1} parent=0 // pred_region
    _
  $region13: #{transformer_forward.1} parent=0 // pred_fallthru
    _
  // Predicated region
  $region14: #{transformer_forward.1} parent=0 // pred_check
    _
  $region15: #{transformer_forward.1} parent=0 // pred_check_branch
    %77 = sbr.rel (0) target = $region17
  $region16: #{transformer_forward.1} parent=0 // pred_region
    _
  $region17: #{transformer_forward.1} parent=0 // pred_fallthru
    _
  // Predicated region
  $region18: #{transformer_forward.1} parent=0 // pred_check
    _
  $region19: #{transformer_forward.1} parent=0 // pred_check_branch
    %79 = sbr.rel (0) target = $region21
  $region20: #{transformer_forward.1} parent=0 // pred_region
    _
  $region21: #{transformer_forward.1} parent=0 // pred_fallthru
    _
  // Predicated region
  $region22: #{transformer_forward.1} parent=0 // pred_check
    _
  $region23: #{transformer_forward.1} parent=0 // pred_check_branch
    %81 = sbr.rel (0) target = $region25
  $region24: #{transformer_forward.1} parent=0 // pred_region
    _
  $region25: #{transformer_forward.1} parent=0 // pred_fallthru
    _
  // Predicated region
  $region26: #{transformer_forward.1} parent=0 // pred_check
    _
  $region27: #{transformer_forward.1} parent=0 // pred_check_branch
    %83 = sbr.rel (0) target = $region29
  $region28: #{transformer_forward.1} parent=0 // pred_region
    _
  $region29: #{transformer_forward.1} parent=0 // pred_fallthru
    _
  // Predicated region
  $region30: #{transformer_forward.1} parent=0 // pred_check
    _
  $region31: #{transformer_forward.1} parent=0 // pred_check_branch
    %85 = sbr.rel (0) target = $region33
  $region32: #{transformer_forward.1} parent=0 // pred_region
    _
  $region33: #{transformer_forward.1} parent=0 // pred_fallthru
    _
  // Predicated region
  $region34: #{transformer_forward.1} parent=0 // pred_check
    _
  $region35: #{transformer_forward.1} parent=0 // pred_check_branch
    %87 = sbr.rel (0) target = $region37
  $region36: #{transformer_forward.1} parent=0 // pred_region
    _
  $region37: #{transformer_forward.1} parent=0 // pred_fallthru
    _
  // Predicated region
  $region38: #{transformer_forward.1} parent=0 // pred_check
    _
  $region39: #{transformer_forward.1} parent=0 // pred_check_branch
    %89 = sbr.rel (0) target = $region41
  $region40: #{transformer_forward.1} parent=0 // pred_region
    _
  $region41: #{transformer_forward.1} parent=0 // pred_fallthru
    _
  // Predicated region
  $region42: #{transformer_forward.1} parent=0 // pred_check
    _
  $region43: #{transformer_forward.1} parent=0 // pred_check_branch
    %91 = sbr.rel (0) target = $region45
  $region44: #{transformer_forward.1} parent=0 // pred_region
    _
  $region45: #{transformer_forward.1} parent=0 // pred_fallthru
    _
  // Predicated region
  $region46: #{transformer_forward.1} parent=0 // pred_check
    _
  $region47: #{transformer_forward.1} parent=0 // pred_check_branch
    %93 = sbr.rel (0) target = $region49
  $region48: #{transformer_forward.1} parent=0 // pred_region
    _
  $region49: #{transformer_forward.1} parent=0 // pred_fallthru
    _
  // Predicated region
  $region50: #{transformer_forward.1} parent=0 // pred_check
    _
  $region51: #{transformer_forward.1} parent=0 // pred_check_branch
    %95 = sbr.rel (0) target = $region53
  $region52: #{transformer_forward.1} parent=0 // pred_region
    _
  $region53: #{transformer_forward.1} parent=0 // pred_fallthru
    _
  // Predicated region
  $region54: #{transformer_forward.1} parent=0 // pred_check
    _
  $region55: #{transformer_forward.1} parent=0 // pred_check_branch
    %97 = sbr.rel (0) target = $region57
  $region56: #{transformer_forward.1} parent=0 // pred_region
    _
  $region57: #{transformer_forward.1} parent=0 // pred_fallthru
    _
  // Predicated region
  $region58: #{transformer_forward.1} parent=0 // pred_check
    _
  $region59: #{transformer_forward.1} parent=0 // pred_check_branch
    %99 = sbr.rel (0) target = $region61
  $region60: #{transformer_forward.1} parent=0 // pred_region
    _
  $region61: #{transformer_forward.1} parent=0 // pred_fallthru
    _
  // Predicated region
  $region62: #{transformer_forward.1} parent=0 // pred_check
    _
  $region63: #{transformer_forward.1} parent=0 // pred_check_branch
    %101 = sbr.rel (0) target = $region65
  $region64: #{transformer_forward.1} parent=0 // pred_region
    _
  $region65: #{transformer_forward.1} parent=0 // pred_fallthru
    _
  // Predicated region
  $region66: #{transformer_forward.1} parent=0 // pred_check
    _
  $region67: #{transformer_forward.1} parent=0 // pred_check_branch
    %103 = sbr.rel (0) target = $region69
  $region68: #{transformer_forward.1} parent=0 // pred_region
    _
  $region69: #{transformer_forward.1} parent=0 // pred_fallthru
    _
  // Predicated region
  $region70: #{transformer_forward.1} parent=0 // pred_check
    _
  $region71: #{transformer_forward.1} parent=0 // pred_check_branch
    %105 = sbr.rel (0) target = $region73
  $region72: #{transformer_forward.1} parent=0 // pred_region
    _
  $region73: #{transformer_forward.1} parent=0 // pred_fallthru
    _
  // Predicated region
  $region74: #{transformer_forward.1} parent=0 // pred_check
    _
  $region75: #{transformer_forward.1} parent=0 // pred_check_branch
    %107 = sbr.rel (0) target = $region77
  $region76: #{transformer_forward.1} parent=0 // pred_region
    _
  $region77: #{transformer_forward.1} parent=0 // pred_fallthru
    _
  // Predicated region
  $region78: #{transformer_forward.1} parent=0 // pred_check
    _
  $region79: #{transformer_forward.1} parent=0 // pred_check_branch
    %109 = sbr.rel (0) target = $region81
  $region80: #{transformer_forward.1} parent=0 // pred_region
    _
  $region81: #{transformer_forward.1} parent=0 // pred_fallthru
    _
  // Predicated region
  $region82: #{transformer_forward.1} parent=0 // pred_check
    _
  $region83: #{transformer_forward.1} parent=0 // pred_check_branch
    %111 = sbr.rel (0) target = $region85
  $region84: #{transformer_forward.1} parent=0 // pred_region
    _
  $region85: #{transformer_forward.1} parent=0 // pred_fallthru
    _
  // Predicated region
  $region86: #{transformer_forward.1} parent=0 // pred_check
    _
  $region87: #{transformer_forward.1} parent=0 // pred_check_branch
    %113 = sbr.rel (0) target = $region89
  $region88: #{transformer_forward.1} parent=0 // pred_region
    _
  $region89: #{transformer_forward.1} parent=0 // pred_fallthru
    _
  // Predicated region
  $region90: #{transformer_forward.1} parent=0 // pred_check
    _
  $region91: #{transformer_forward.1} parent=0 // pred_check_branch
    %115 = sbr.rel (0) target = $region93
  $region92: #{transformer_forward.1} parent=0 // pred_region
    _
  $region93: #{transformer_forward.1} parent=0 // pred_fallthru
    _
  // Predicated region
  $region94: #{transformer_forward.1} parent=0 // pred_check
    _
  $region95: #{transformer_forward.1} parent=0 // pred_check_branch
    %117 = sbr.rel (0) target = $region97
  $region96: #{transformer_forward.1} parent=0 // pred_region
    _
  $region97: #{transformer_forward.1} parent=0 // pred_fallthru
    _
  // Predicated region
  $region98: #{transformer_forward.1} parent=0 // pred_check
    _
  $region99: #{transformer_forward.1} parent=0 // pred_check_branch
    %119 = sbr.rel (0) target = $region101
  $region100: #{transformer_forward.1} parent=0 // pred_region
    _
  $region101: #{transformer_forward.1} parent=0 // pred_fallthru
    _
  // Predicated region
  $region102: #{transformer_forward.1} parent=0 // pred_check
    _
  $region103: #{transformer_forward.1} parent=0 // pred_check_branch
    %121 = sbr.rel (0) target = $region105
  $region104: #{transformer_forward.1} parent=0 // pred_region
    _
  $region105: #{transformer_forward.1} parent=0 // pred_fallthru
    _
  // Predicated region
  $region106: #{transformer_forward.1} parent=0 // pred_check
    _
  $region107: #{transformer_forward.1} parent=0 // pred_check_branch
    %123 = sbr.rel (0) target = $region109
  $region108: #{transformer_forward.1} parent=0 // pred_region
    _
  $region109: #{transformer_forward.1} parent=0 // pred_fallthru
    _
  // Predicated region
  $region110: #{transformer_forward.1} parent=0 // pred_check
    _
  $region111: #{transformer_forward.1} parent=0 // pred_check_branch
    %125 = sbr.rel (0) target = $region113
  $region112: #{transformer_forward.1} parent=0 // pred_region
    _
  $region113: #{transformer_forward.1} parent=0 // pred_fallthru
    _
  %s126 = sld [smem:[#allocation4]]
  %s127 = scalar_lea.vmem %s3, %s126
  %v128 = vld [vmem:[%s127] sm:$0x1]
  %v129 = vld [vmem:[%s5] sm:$0x1]
  %v130 = vadd.f32 %v128, %v129
  %vm131 = vcmask 253952
  %132 = vst.msk [vmem:[#allocation2] sm:$0x1] %vm131, %v130
  %s133 = sld [smem:[#allocation4 + $0x1]]
  %s134 = scalar_lea.vmem %s3, %s133
  %v135 = vld [vmem:[%s134] sm:$0x1]
  %v136 = vld [vmem:[%s5 + $0x1] sm:$0x1]
  %v137 = vadd.f32 %v135, %v136
  %138 = vst.msk [vmem:[#allocation2 + $0x1] sm:$0x1] %vm131, %v137
  %s139 = sld [smem:[#allocation4 + $0x2]]
  %s140 = scalar_lea.vmem %s3, %s139
  %v141 = vld [vmem:[%s140] sm:$0x1]
  %v142 = vld [vmem:[%s5 + $0x2] sm:$0x1]
  %v143 = vadd.f32 %v141, %v142
  %144 = vst.msk [vmem:[#allocation2 + $0x2] sm:$0x1] %vm131, %v143
  %s145 = sld [smem:[#allocation4 + $0x3]]
  %s146 = scalar_lea.vmem %s3, %s145
  %v147 = vld [vmem:[%s146] sm:$0x1]
  %v148 = vld [vmem:[%s5 + $0x3] sm:$0x1]
  %v149 = vadd.f32 %v147, %v148
  %150 = vst.msk [vmem:[#allocation2 + $0x3] sm:$0x1] %vm131, %v149
  %s151 = sld [smem:[#allocation4 + $0x4]]
  %s152 = scalar_lea.vmem %s3, %s151
  %v153 = vld [vmem:[%s152] sm:$0x1]
  %v154 = vld [vmem:[%s5 + $0x4] sm:$0x1]
  %v155 = vadd.f32 %v153, %v154
  %156 = vst.msk [vmem:[#allocation2 + $0x4] sm:$0x1] %vm131, %v155
  %s157 = sld [smem:[#allocation4 + $0x5]]
  %s158 = scalar_lea.vmem %s3, %s157
  %v159 = vld [vmem:[%s158] sm:$0x1]
  %v160 = vld [vmem:[%s5 + $0x5] sm:$0x1]
  %v161 = vadd.f32 %v159, %v160
  %162 = vst.msk [vmem:[#allocation2 + $0x5] sm:$0x1] %vm131, %v161
  %s163 = sld [smem:[#allocation4 + $0x6]]
  %s164 = scalar_lea.vmem %s3, %s163
  %v165 = vld [vmem:[%s164] sm:$0x1]
  %v166 = vld [vmem:[%s5 + $0x6] sm:$0x1]
  %v167 = vadd.f32 %v165, %v166
  %168 = vst.msk [vmem:[#allocation2 + $0x6] sm:$0x1] %vm131, %v167
  %s169 = sld [smem:[#allocation4 + $0x7]]
  %s170 = scalar_lea.vmem %s3, %s169
  %v171 = vld [vmem:[%s170] sm:$0x1]
  %v172 = vld [vmem:[%s5 + $0x7] sm:$0x1]
  %v173 = vadd.f32 %v171, %v172
  %174 = vst.msk [vmem:[#allocation2 + $0x7] sm:$0x1] %vm131, %v173
  %s175 = sld [smem:[#allocation4 + $0x8]]
  %s176 = scalar_lea.vmem %s3, %s175
  %v177 = vld [vmem:[%s176] sm:$0x1]
  %v178 = vld [vmem:[%s5] sm:$0x1]
  %v179 = vadd.f32 %v177, %v178
  %180 = vst.msk [vmem:[#allocation2 + $0x8] sm:$0x1] %vm131, %v179
  %s181 = sld [smem:[#allocation4 + $0x9]]
  %s182 = scalar_lea.vmem %s3, %s181
  %v183 = vld [vmem:[%s182] sm:$0x1]
  %v184 = vld [vmem:[%s5 + $0x1] sm:$0x1]
  %v185 = vadd.f32 %v183, %v184
  %186 = vst.msk [vmem:[#allocation2 + $0x9] sm:$0x1] %vm131, %v185
  %s187 = sld [smem:[#allocation4 + $0xa]]
  %s188 = scalar_lea.vmem %s3, %s187
  %v189 = vld [vmem:[%s188] sm:$0x1]
  %v190 = vld [vmem:[%s5 + $0x2] sm:$0x1]
  %v191 = vadd.f32 %v189, %v190
  %192 = vst.msk [vmem:[#allocation2 + $0xa] sm:$0x1] %vm131, %v191
  %s193 = sld [smem:[#allocation4 + $0xb]]
  %s194 = scalar_lea.vmem %s3, %s193
  %v195 = vld [vmem:[%s194] sm:$0x1]
  %v196 = vld [vmem:[%s5 + $0x3] sm:$0x1]
  %v197 = vadd.f32 %v195, %v196
  %198 = vst.msk [vmem:[#allocation2 + $0xb] sm:$0x1] %vm131, %v197
  %s199 = sld [smem:[#allocation4 + $0xc]]
  %s200 = scalar_lea.vmem %s3, %s199
  %v201 = vld [vmem:[%s200] sm:$0x1]
  %v202 = vld [vmem:[%s5 + $0x4] sm:$0x1]
  %v203 = vadd.f32 %v201, %v202
  %204 = vst.msk [vmem:[#allocation2 + $0xc] sm:$0x1] %vm131, %v203
  %s205 = sld [smem:[#allocation4 + $0xd]]
  %s206 = scalar_lea.vmem %s3, %s205
  %v207 = vld [vmem:[%s206] sm:$0x1]
  %v208 = vld [vmem:[%s5 + $0x5] sm:$0x1]
  %v209 = vadd.f32 %v207, %v208
  %210 = vst.msk [vmem:[#allocation2 + $0xd] sm:$0x1] %vm131, %v209
  %s211 = sld [smem:[#allocation4 + $0xe]]
  %s212 = scalar_lea.vmem %s3, %s211
  %v213 = vld [vmem:[%s212] sm:$0x1]
  %v214 = vld [vmem:[%s5 + $0x6] sm:$0x1]
  %v215 = vadd.f32 %v213, %v214
  %216 = vst.msk [vmem:[#allocation2 + $0xe] sm:$0x1] %vm131, %v215
  %s217 = sld [smem:[#allocation4 + $0xf]]
  %s218 = scalar_lea.vmem %s3, %s217
  %v219 = vld [vmem:[%s218] sm:$0x1]
  %v220 = vld [vmem:[%s5 + $0x7] sm:$0x1]
  %v221 = vadd.f32 %v219, %v220
  %222 = vst.msk [vmem:[#allocation2 + $0xf] sm:$0x1] %vm131, %v221
  %v223 = vld [vmem:[#allocation2] sm:$0xff]
  %v224 = vld [vmem:[#allocation2 + $0x8] sm:$0xff]
  %v225 = vld [vmem:[%s7] sm:$0x1]
  %v226 = vld [vmem:[%s9] sm:$0x1]
  %v227 = vld [vmem:[%s11] sm:$0xff]
  %v228 = vld [vmem:[%s11 + $0x8] sm:$0xff]
  %v229 = vld [vmem:[%s11 + $0x10] sm:$0xff]
  %v230 = vld [vmem:[%s11 + $0x18] sm:$0xff]
  %v231 = vld [vmem:[%s13] sm:$0xff]
  %v232 = vld [vmem:[%s13 + $0x8] sm:$0xff]
  %v233 = vld [vmem:[%s13 + $0x10] sm:$0xff]
  %v234 = vld [vmem:[%s13 + $0x18] sm:$0xff]
  %v235 = vld [vmem:[%s15] sm:$0x1]
  %v236 = vld [vmem:[%s17] sm:$0x1]
  %v237 = vld [vmem:[%s19] sm:$0x1]
  %v238 = vld [vmem:[%s21] sm:$0xff]
  %v239 = vld [vmem:[%s21 + $0x8] sm:$0xff]
  %v240 = vld [vmem:[%s21 + $0x10] sm:$0xff]
  %v241 = vld [vmem:[%s21 + $0x18] sm:$0xff]
  %v242 = vld [vmem:[%s23] sm:$0x1]
  %v243 = vld [vmem:[%s25] sm:$0xff]
  %v244 = vld [vmem:[%s25 + $0x8] sm:$0xff]
  %v245 = vld [vmem:[%s25 + $0x10] sm:$0xff]
  %v246 = vld [vmem:[%s25 + $0x18] sm:$0xff]
  %v247 = vld [vmem:[%s25 + $0x20] sm:$0xff]
  %v248 = vld [vmem:[%s25 + $0x28] sm:$0xff]
  %v249 = vld [vmem:[%s25 + $0x30] sm:$0xff]
  %v250 = vld [vmem:[%s25 + $0x38] sm:$0xff]
  %v251 = vld [vmem:[%s25 + $0x40] sm:$0xff]
  %v252 = vld [vmem:[%s25 + $0x48] sm:$0xff]
  %v253 = vld [vmem:[%s25 + $0x50] sm:$0xff]
  %v254 = vld [vmem:[%s25 + $0x58] sm:$0xff]
  %v255 = vld [vmem:[%s25 + $0x60] sm:$0xff]
  %v256 = vld [vmem:[%s25 + $0x68] sm:$0xff]
  %v257 = vld [vmem:[%s25 + $0x70] sm:$0xff]
  %v258 = vld [vmem:[%s25 + $0x78] sm:$0xff]
  %v259 = vld [vmem:[%s27] sm:$0x1]
  %vm260 = vcmask 261120
  %v261 = vsel %vm260, %v223, 0.0
  %262 = vadd.xlane.f32.xlu0 %v261
  %v263 = vpop.xlane.xlu0 %262
  %v264 = vsel %vm260, %v224, 0.0
  %265 = vadd.xlane.f32.xlu0 %v264
  %v266 = vpop.xlane.xlu0 %265
  %v267 = vrcp.pop 32.0
  %v268 = vmul.f32 %v263, %v267
  %v269 = vmul.f32 %v266, %v267
  %v270 = vsub.f32 %v223, %v268
  %v271 = vsub.f32 %v224, %v269
  %v272 = vmul.f32 %v270, %v270
  %v273 = vmul.f32 %v271, %v271
  %v274 = vsel %vm260, %v272, 0.0
  %275 = vadd.xlane.f32.xlu0 %v274
  %v276 = vpop.xlane.xlu0 %275
  %v277 = vsel %vm260, %v273, 0.0
  %278 = vadd.xlane.f32.xlu0 %v277
  %v279 = vpop.xlane.xlu0 %278
  %v280 = vmul.f32 %v276, %v267
  %v281 = vmul.f32 %v279, %v267
  %v282 = vadd.f32 %v280, 1e-05
  %v283 = vadd.f32 %v281, 1e-05
  %v284 = vrsqrt.pop %v282
  %v285 = vrsqrt.pop %v283
  %v286 = vmul.f32 %v270, %v284
  %v287 = vmul.f32 %v271, %v285
  %v289 = vlaneseq
  %v290 = vshrl.u32 %v289, 7
  %v291 = vsub.s32 0, %v290
  %v292 = vrot.slane %v225, %v291
  %v294 = vmul.f32 %v286, %v292
  %v295 = vmul.f32 %v287, %v292
  %v297 = vlaneseq
  %v298 = vshrl.u32 %v297, 7
  %v299 = vsub.s32 0, %v298
  %v300 = vrot.slane %v226, %v299
  %v302 = vadd.f32 %v294, %v300
  %v303 = vadd.f32 %v295, %v300
  %v305 = vsel %vm260, %v302, 0
  %v308 = vsel %vm260, %v303, 0
  %310 = vmatprep.subr.mxu0 0.0
  %311 = vmatpush1.msra.mxu0 %v227
  %312 = vmatprep.subr.mxu0 0.0
  %313 = vmatpush1.msra.mxu0 %v228
  %314 = vmatprep.subr.mxu0 0.0
  %315 = vmatpush1.msra.mxu0 %v229
  %316 = vmatprep.subr.mxu0 0.0
  %317 = vmatpush1.msra.mxu0 %v230
  %318 = vmatprep.subr.mxu0 0.0
  %319 = vmatpush1.msra.mxu0 0.0
  %320 = vmatprep.subr.mxu0 0.0
  %321 = vmatpush1.msra.mxu0 0.0
  %322 = vmatprep.subr.mxu0 0.0
  %323 = vmatpush1.msra.mxu0 0.0
  %324 = vmatprep.subr.mxu0 0.0
  %325 = vmatpush1.msra.mxu0 0.0
  %326 = vmatprep.subr.mxu0 0.0
  %327 = vmatpush1.msra.mxu0 0.0
  %328 = vmatprep.subr.mxu0 0.0
  %329 = vmatpush1.msra.mxu0 0.0
  %330 = vmatprep.subr.mxu0 0.0
  %331 = vmatpush1.msra.mxu0 0.0
  %332 = vmatprep.subr.mxu0 0.0
  %333 = vmatpush1.msra.mxu0 0.0
  %334 = vmatprep.subr.mxu0 0.0
  %335 = vmatpush1.msra.mxu0 0.0
  %336 = vmatprep.subr.mxu0 0.0
  %337 = vmatpush1.msra.mxu0 0.0
  %338 = vmatprep.subr.mxu0 0.0
  %339 = vmatpush1.msra.mxu0 0.0
  %340 = vmatprep.subr.mxu0 0.0
  %341 = vmatpush1.msra.mxu0 0.0
  %342 = vmatprep.subr.mxu0 0.0
  %343 = vmatpush1.msra.mxu0 0.0
  %344 = vmatprep.subr.mxu0 0.0
  %345 = vmatpush1.msra.mxu0 0.0
  %346 = vmatprep.subr.mxu0 0.0
  %347 = vmatpush1.msra.mxu0 0.0
  %348 = vmatprep.subr.mxu0 0.0
  %349 = vmatpush1.msra.mxu0 0.0
  %350 = vmatprep.subr.mxu0 0.0
  %351 = vmatpush1.msra.mxu0 0.0
  %352 = vmatprep.subr.mxu0 0.0
  %353 = vmatpush1.msra.mxu0 0.0
  %354 = vmatprep.subr.mxu0 0.0
  %355 = vmatpush1.msra.mxu0 0.0
  %356 = vmatprep.subr.mxu0 0.0
  %357 = vmatpush1.msra.mxu0 0.0
  %358 = vmatprep.subr.mxu0 0.0
  %359 = vmatpush1.msra.mxu0 0.0
  %360 = vmatprep.subr.mxu0 0.0
  %361 = vmatpush1.msra.mxu0 0.0
  %362 = vmatprep.subr.mxu0 0.0
  %363 = vmatpush1.msra.mxu0 0.0
  %364 = vmatprep.subr.mxu0 0.0
  %365 = vmatpush1.msra.mxu0 0.0
  %366 = vmatprep.subr.mxu0 0.0
  %367 = vmatpush1.msra.mxu0 0.0
  %368 = vmatprep.subr.mxu0 0.0
  %369 = vmatpush1.msra.mxu0 0.0
  %370 = vmatprep.subr.mxu0 0.0
  %371 = vmatpush1.msra.mxu0 0.0
  %372 = vmatprep.subr.mxu0 0.0
  %373 = vmatpush1.msra.mxu0 0.0
  %374 = vmatprep.mubr.f32.mxu0 0.0
  %375 = vmatmul.mubr.f32.gmra.mrb[0].mxu0 %v305
  %v376 = vpop.f32.mrb[0].mxu0
  %v377 = vadd.f32 0.0, %v376
  %v378 = vpop.f32.mrb[0].mxu0
  %379 = vmatprep.mubr.f32.mxu0 0.0
  %380 = vmatmul.mubr.f32.gmra.mrb[0].mxu0 %v308
  %v381 = vpop.f32.mrb[0].mxu0
  %v382 = vadd.f32 0.0, %v381
  %v383 = vpop.f32.mrb[0].mxu0
  %384 = vdwg.mxu0
  %v385 = vlaneseq
  %v386 = vshrl.u32 %v385, 7
  %v387 = vlaneseq
  %v388 = vand.u32 %v387, 127
  %vm389 = vcmp.ge.s32.totalorder %v386, %v388
  %v391 = vlaneseq
  %v392 = vshrl.u32 %v391, 7
  %v393 = vsub.s32 0, %v392
  %v394 = vrot.slane %v235, %v393
  %v396 = vadd.f32 %v394, 0.0
  %398 = vrot.lane.b32.xlu0 %v377, 96
  %v399 = vpop.permute.xlu0 %398
  %vm400 = vcmask 64512
  %v401 = vsel %vm400, %v377, 0
  %v403 = vsel %vm400, %v399, 0
  %405 = vmatprep.subr.mxu0 0.0
  %406 = vmatpush1.xpose.msra.mxu0 %v403
  %407 = vmatprep.subr.mxu0 0.0
  %408 = vmatpush1.xpose.msra.mxu0 0.0
  %409 = vmatprep.subr.mxu0 0.0
  %410 = vmatpush1.xpose.msra.mxu0 0.0
  %411 = vmatprep.subr.mxu0 0.0
  %412 = vmatpush1.xpose.msra.mxu0 0.0
  %413 = vmatprep.subr.mxu0 0.0
  %414 = vmatpush1.xpose.msra.mxu0 0.0
  %415 = vmatprep.subr.mxu0 0.0
  %416 = vmatpush1.xpose.msra.mxu0 0.0
  %417 = vmatprep.subr.mxu0 0.0
  %418 = vmatpush1.xpose.msra.mxu0 0.0
  %419 = vmatprep.subr.mxu0 0.0
  %420 = vmatpush1.xpose.msra.mxu0 0.0
  %421 = vmatprep.subr.mxu0 0.0
  %422 = vmatpush1.xpose.msra.mxu0 0.0
  %423 = vmatprep.subr.mxu0 0.0
  %424 = vmatpush1.xpose.msra.mxu0 0.0
  %425 = vmatprep.subr.mxu0 0.0
  %426 = vmatpush1.xpose.msra.mxu0 0.0
  %427 = vmatprep.subr.mxu0 0.0
  %428 = vmatpush1.xpose.msra.mxu0 0.0
  %429 = vmatprep.subr.mxu0 0.0
  %430 = vmatpush1.xpose.msra.mxu0 0.0
  %431 = vmatprep.subr.mxu0 0.0
  %432 = vmatpush1.xpose.msra.mxu0 0.0
  %433 = vmatprep.subr.mxu0 0.0
  %434 = vmatpush1.xpose.msra.mxu0 0.0
  %435 = vmatprep.subr.mxu0 0.0
  %436 = vmatpush1.xpose.msra.mxu0 0.0
  %437 = vmatprep.subr.mxu0 0.0
  %438 = vmatpush1.xpose.msra.mxu0 0.0
  %439 = vmatprep.subr.mxu0 0.0
  %440 = vmatpush1.xpose.msra.mxu0 0.0
  %441 = vmatprep.subr.mxu0 0.0
  %442 = vmatpush1.xpose.msra.mxu0 0.0
  %443 = vmatprep.subr.mxu0 0.0
  %444 = vmatpush1.xpose.msra.mxu0 0.0
  %445 = vmatprep.subr.mxu0 0.0
  %446 = vmatpush1.xpose.msra.mxu0 0.0
  %447 = vmatprep.subr.mxu0 0.0
  %448 = vmatpush1.xpose.msra.mxu0 0.0
  %449 = vmatprep.subr.mxu0 0.0
  %450 = vmatpush1.xpose.msra.mxu0 0.0
  %451 = vmatprep.subr.mxu0 0.0
  %452 = vmatpush1.xpose.msra.mxu0 0.0
  %453 = vmatprep.subr.mxu0 0.0
  %454 = vmatpush1.xpose.msra.mxu0 0.0
  %455 = vmatprep.subr.mxu0 0.0
  %456 = vmatpush1.xpose.msra.mxu0 0.0
  %457 = vmatprep.subr.mxu0 0.0
  %458 = vmatpush1.xpose.msra.mxu0 0.0
  %459 = vmatprep.subr.mxu0 0.0
  %460 = vmatpush1.xpose.msra.mxu0 0.0
  %461 = vmatprep.subr.mxu0 0.0
  %462 = vmatpush1.xpose.msra.mxu0 0.0
  %463 = vmatprep.subr.mxu0 0.0
  %464 = vmatpush1.xpose.msra.mxu0 0.0
  %465 = vmatprep.subr.mxu0 0.0
  %466 = vmatpush1.xpose.msra.mxu0 0.0
  %467 = vmatprep.subr.mxu0 0.0
  %468 = vmatpush1.xpose.msra.mxu0 0.0
  %469 = vmatprep.mubr.f32.mxu0 0.0
  %470 = vmatmul.mubr.f32.gmra.mrb[0].mxu0 %v401
  %v471 = vpop.f32.mrb[0].mxu0
  %v472 = vadd.f32 0.0, %v471
  %v473 = vpop.f32.mrb[0].mxu0
  %474 = vdwg.mxu0
  %476 = vrot.lane.b32.xlu0 %v382, 96
  %v477 = vpop.permute.xlu0 %476
  %v478 = vsel %vm400, %v382, 0
  %v480 = vsel %vm400, %v477, 0
  %482 = vmatprep.subr.mxu0 0.0
  %483 = vmatpush1.xpose.msra.mxu0 %v480
  %484 = vmatprep.subr.mxu0 0.0
  %485 = vmatpush1.xpose.msra.mxu0 0.0
  %486 = vmatprep.subr.mxu0 0.0
  %487 = vmatpush1.xpose.msra.mxu0 0.0
  %488 = vmatprep.subr.mxu0 0.0
  %489 = vmatpush1.xpose.msra.mxu0 0.0
  %490 = vmatprep.subr.mxu0 0.0
  %491 = vmatpush1.xpose.msra.mxu0 0.0
  %492 = vmatprep.subr.mxu0 0.0
  %493 = vmatpush1.xpose.msra.mxu0 0.0
  %494 = vmatprep.subr.mxu0 0.0
  %495 = vmatpush1.xpose.msra.mxu0 0.0
  %496 = vmatprep.subr.mxu0 0.0
  %497 = vmatpush1.xpose.msra.mxu0 0.0
  %498 = vmatprep.subr.mxu0 0.0
  %499 = vmatpush1.xpose.msra.mxu0 0.0
  %500 = vmatprep.subr.mxu0 0.0
  %501 = vmatpush1.xpose.msra.mxu0 0.0
  %502 = vmatprep.subr.mxu0 0.0
  %503 = vmatpush1.xpose.msra.mxu0 0.0
  %504 = vmatprep.subr.mxu0 0.0
  %505 = vmatpush1.xpose.msra.mxu0 0.0
  %506 = vmatprep.subr.mxu0 0.0
  %507 = vmatpush1.xpose.msra.mxu0 0.0
  %508 = vmatprep.subr.mxu0 0.0
  %509 = vmatpush1.xpose.msra.mxu0 0.0
  %510 = vmatprep.subr.mxu0 0.0
  %511 = vmatpush1.xpose.msra.mxu0 0.0
  %512 = vmatprep.subr.mxu0 0.0
  %513 = vmatpush1.xpose.msra.mxu0 0.0
  %514 = vmatprep.subr.mxu0 0.0
  %515 = vmatpush1.xpose.msra.mxu0 0.0
  %516 = vmatprep.subr.mxu0 0.0
  %517 = vmatpush1.xpose.msra.mxu0 0.0
  %518 = vmatprep.subr.mxu0 0.0
  %519 = vmatpush1.xpose.msra.mxu0 0.0
  %520 = vmatprep.subr.mxu0 0.0
  %521 = vmatpush1.xpose.msra.mxu0 0.0
  %522 = vmatprep.subr.mxu0 0.0
  %523 = vmatpush1.xpose.msra.mxu0 0.0
  %524 = vmatprep.subr.mxu0 0.0
  %525 = vmatpush1.xpose.msra.mxu0 0.0
  %526 = vmatprep.subr.mxu0 0.0
  %527 = vmatpush1.xpose.msra.mxu0 0.0
  %528 = vmatprep.subr.mxu0 0.0
  %529 = vmatpush1.xpose.msra.mxu0 0.0
  %530 = vmatprep.subr.mxu0 0.0
  %531 = vmatpush1.xpose.msra.mxu0 0.0
  %532 = vmatprep.subr.mxu0 0.0
  %533 = vmatpush1.xpose.msra.mxu0 0.0
  %534 = vmatprep.subr.mxu0 0.0
  %535 = vmatpush1.xpose.msra.mxu0 0.0
  %536 = vmatprep.subr.mxu0 0.0
  %537 = vmatpush1.xpose.msra.mxu0 0.0
  %538 = vmatprep.subr.mxu0 0.0
  %539 = vmatpush1.xpose.msra.mxu0 0.0
  %540 = vmatprep.subr.mxu0 0.0
  %541 = vmatpush1.xpose.msra.mxu0 0.0
  %542 = vmatprep.subr.mxu0 0.0
  %543 = vmatpush1.xpose.msra.mxu0 0.0
  %544 = vmatprep.subr.mxu0 0.0
  %545 = vmatpush1.xpose.msra.mxu0 0.0
  %546 = vmatprep.mubr.f32.mxu0 0.0
  %547 = vmatmul.mubr.f32.gmra.mrb[0].mxu0 %v478
  %v548 = vpop.f32.mrb[0].mxu0
  %v549 = vadd.f32 0.0, %v548
  %v550 = vpop.f32.mrb[0].mxu0
  %551 = vdwg.mxu0
  %v552 = vmul.f32 %v472, 0.35355338
  %v553 = vmul.f32 %v549, 0.35355338
  %v554 = vsel %vm389, 1, 0
  %vm555 = vcmp.eq.s32.totalorder %v554, 1
  %v556 = vsel %vm555, %v552, -1e+30
  %v557 = vsel %vm555, %v553, -1e+30
  %v558 = vsel %vm400, %v556, -inf
  %559 = vmax.xlane.f32.xlu0 %v558
  %v560 = vpop.xlane.xlu0 %559
  %v561 = vsel %vm400, %v557, -inf
  %562 = vmax.xlane.f32.xlu0 %v561
  %v563 = vpop.xlane.xlu0 %562
  %v564 = vsub.f32 %v556, %v560
  %v565 = vsub.f32 %v557, %v563
  %v566 = vmul.f32 %v564, 1.442695
  %v567 = vpow.pop %v566
  %v568 = vmul.f32 %v565, 1.442695
  %v569 = vpow.pop %v568
  %v570 = vsel %vm400, %v567, 0.0
  %571 = vadd.xlane.f32.xlu0 %v570
  %v572 = vpop.xlane.xlu0 %571
  %v573 = vsel %vm400, %v569, 0.0
  %574 = vadd.xlane.f32.xlu0 %v573
  %v575 = vpop.xlane.xlu0 %574
  %v576 = vrcp.pop %v572
  %v577 = vrcp.pop %v575
  %v578 = vmul.f32 %v567, %v576
  %v579 = vmul.f32 %v569, %v577
  %580 = vrot.lane.b32.xlu0 %v377, 64
  %v581 = vpop.permute.xlu0 %580
  %v584 = vsel %vm400, %v578, 0
  %586 = vmatprep.subr.mxu0 0.0
  %587 = vmatpush1.msra.mxu0 %v581
  %588 = vmatprep.subr.mxu0 0.0
  %589 = vmatpush1.msra.mxu0 0.0
  %590 = vmatprep.subr.mxu0 0.0
  %591 = vmatpush1.msra.mxu0 0.0
  %592 = vmatprep.subr.mxu0 0.0
  %593 = vmatpush1.msra.mxu0 0.0
  %594 = vmatprep.subr.mxu0 0.0
  %595 = vmatpush1.msra.mxu0 0.0
  %596 = vmatprep.subr.mxu0 0.0
  %597 = vmatpush1.msra.mxu0 0.0
  %598 = vmatprep.subr.mxu0 0.0
  %599 = vmatpush1.msra.mxu0 0.0
  %600 = vmatprep.subr.mxu0 0.0
  %601 = vmatpush1.msra.mxu0 0.0
  %602 = vmatprep.subr.mxu0 0.0
  %603 = vmatpush1.msra.mxu0 0.0
  %604 = vmatprep.subr.mxu0 0.0
  %605 = vmatpush1.msra.mxu0 0.0
  %606 = vmatprep.subr.mxu0 0.0
  %607 = vmatpush1.msra.mxu0 0.0
  %608 = vmatprep.subr.mxu0 0.0
  %609 = vmatpush1.msra.mxu0 0.0
  %610 = vmatprep.subr.mxu0 0.0
  %611 = vmatpush1.msra.mxu0 0.0
  %612 = vmatprep.subr.mxu0 0.0
  %613 = vmatpush1.msra.mxu0 0.0
  %614 = vmatprep.subr.mxu0 0.0
  %615 = vmatpush1.msra.mxu0 0.0
  %616 = vmatprep.subr.mxu0 0.0
  %617 = vmatpush1.msra.mxu0 0.0
  %618 = vmatprep.subr.mxu0 0.0
  %619 = vmatpush1.msra.mxu0 0.0
  %620 = vmatprep.subr.mxu0 0.0
  %621 = vmatpush1.msra.mxu0 0.0
  %622 = vmatprep.subr.mxu0 0.0
  %623 = vmatpush1.msra.mxu0 0.0
  %624 = vmatprep.subr.mxu0 0.0
  %625 = vmatpush1.msra.mxu0 0.0
  %626 = vmatprep.subr.mxu0 0.0
  %627 = vmatpush1.msra.mxu0 0.0
  %628 = vmatprep.subr.mxu0 0.0
  %629 = vmatpush1.msra.mxu0 0.0
  %630 = vmatprep.subr.mxu0 0.0
  %631 = vmatpush1.msra.mxu0 0.0
  %632 = vmatprep.subr.mxu0 0.0
  %633 = vmatpush1.msra.mxu0 0.0
  %634 = vmatprep.subr.mxu0 0.0
  %635 = vmatpush1.msra.mxu0 0.0
  %636 = vmatprep.subr.mxu0 0.0
  %637 = vmatpush1.msra.mxu0 0.0
  %638 = vmatprep.subr.mxu0 0.0
  %639 = vmatpush1.msra.mxu0 0.0
  %640 = vmatprep.subr.mxu0 0.0
  %641 = vmatpush1.msra.mxu0 0.0
  %642 = vmatprep.subr.mxu0 0.0
  %643 = vmatpush1.msra.mxu0 0.0
  %644 = vmatprep.subr.mxu0 0.0
  %645 = vmatpush1.msra.mxu0 0.0
  %646 = vmatprep.subr.mxu0 0.0
  %647 = vmatpush1.msra.mxu0 0.0
  %648 = vmatprep.subr.mxu0 0.0
  %649 = vmatpush1.msra.mxu0 0.0
  %650 = vmatprep.mubr.f32.mxu0 0.0
  %651 = vmatmul.mubr.f32.gmra.mrb[0].mxu0 %v584
  %v652 = vpop.f32.mrb[0].mxu0
  %v653 = vadd.f32 0.0, %v652
  %v654 = vpop.f32.mrb[0].mxu0
  %655 = vdwg.mxu0
  %656 = vrot.lane.b32.xlu0 %v382, 64
  %v657 = vpop.permute.xlu0 %656
  %v660 = vsel %vm400, %v579, 0
  %662 = vmatprep.subr.mxu0 0.0
  %663 = vmatpush1.msra.mxu0 %v657
  %664 = vmatprep.subr.mxu0 0.0
  %665 = vmatpush1.msra.mxu0 0.0
  %666 = vmatprep.subr.mxu0 0.0
  %667 = vmatpush1.msra.mxu0 0.0
  %668 = vmatprep.subr.mxu0 0.0
  %669 = vmatpush1.msra.mxu0 0.0
  %670 = vmatprep.subr.mxu0 0.0
  %671 = vmatpush1.msra.mxu0 0.0
  %672 = vmatprep.subr.mxu0 0.0
  %673 = vmatpush1.msra.mxu0 0.0
  %674 = vmatprep.subr.mxu0 0.0
  %675 = vmatpush1.msra.mxu0 0.0
  %676 = vmatprep.subr.mxu0 0.0
  %677 = vmatpush1.msra.mxu0 0.0
  %678 = vmatprep.subr.mxu0 0.0
  %679 = vmatpush1.msra.mxu0 0.0
  %680 = vmatprep.subr.mxu0 0.0
  %681 = vmatpush1.msra.mxu0 0.0
  %682 = vmatprep.subr.mxu0 0.0
  %683 = vmatpush1.msra.mxu0 0.0
  %684 = vmatprep.subr.mxu0 0.0
  %685 = vmatpush1.msra.mxu0 0.0
  %686 = vmatprep.subr.mxu0 0.0
  %687 = vmatpush1.msra.mxu0 0.0
  %688 = vmatprep.subr.mxu0 0.0
  %689 = vmatpush1.msra.mxu0 0.0
  %690 = vmatprep.subr.mxu0 0.0
  %691 = vmatpush1.msra.mxu0 0.0
  %692 = vmatprep.subr.mxu0 0.0
  %693 = vmatpush1.msra.mxu0 0.0
  %694 = vmatprep.subr.mxu0 0.0
  %695 = vmatpush1.msra.mxu0 0.0
  %696 = vmatprep.subr.mxu0 0.0
  %697 = vmatpush1.msra.mxu0 0.0
  %698 = vmatprep.subr.mxu0 0.0
  %699 = vmatpush1.msra.mxu0 0.0
  %700 = vmatprep.subr.mxu0 0.0
  %701 = vmatpush1.msra.mxu0 0.0
  %702 = vmatprep.subr.mxu0 0.0
  %703 = vmatpush1.msra.mxu0 0.0
  %704 = vmatprep.subr.mxu0 0.0
  %705 = vmatpush1.msra.mxu0 0.0
  %706 = vmatprep.subr.mxu0 0.0
  %707 = vmatpush1.msra.mxu0 0.0
  %708 = vmatprep.subr.mxu0 0.0
  %709 = vmatpush1.msra.mxu0 0.0
  %710 = vmatprep.subr.mxu0 0.0
  %711 = vmatpush1.msra.mxu0 0.0
  %712 = vmatprep.subr.mxu0 0.0
  %713 = vmatpush1.msra.mxu0 0.0
  %714 = vmatprep.subr.mxu0 0.0
  %715 = vmatpush1.msra.mxu0 0.0
  %716 = vmatprep.subr.mxu0 0.0
  %717 = vmatpush1.msra.mxu0 0.0
  %718 = vmatprep.subr.mxu0 0.0
  %719 = vmatpush1.msra.mxu0 0.0
  %720 = vmatprep.subr.mxu0 0.0
  %721 = vmatpush1.msra.mxu0 0.0
  %722 = vmatprep.subr.mxu0 0.0
  %723 = vmatpush1.msra.mxu0 0.0
  %724 = vmatprep.subr.mxu0 0.0
  %725 = vmatpush1.msra.mxu0 0.0
  %726 = vmatprep.mubr.f32.mxu0 0.0
  %727 = vmatmul.mubr.f32.gmra.mrb[0].mxu0 %v660
  %v728 = vpop.f32.mrb[0].mxu0
  %v729 = vadd.f32 0.0, %v728
  %v730 = vpop.f32.mrb[0].mxu0
  %731 = vdwg.mxu0
  %v733 = vsel %vm400, %v653, 0
  %v736 = vsel %vm400, %v729, 0
  %738 = vmatprep.subr.mxu0 0.0
  %739 = vmatpush1.msra.mxu0 %v231
  %740 = vmatprep.subr.mxu0 0.0
  %741 = vmatpush1.msra.mxu0 0.0
  %742 = vmatprep.subr.mxu0 0.0
  %743 = vmatpush1.msra.mxu0 0.0
  %744 = vmatprep.subr.mxu0 0.0
  %745 = vmatpush1.msra.mxu0 0.0
  %746 = vmatprep.subr.mxu0 0.0
  %747 = vmatpush1.msra.mxu0 0.0
  %748 = vmatprep.subr.mxu0 0.0
  %749 = vmatpush1.msra.mxu0 0.0
  %750 = vmatprep.subr.mxu0 0.0
  %751 = vmatpush1.msra.mxu0 0.0
  %752 = vmatprep.subr.mxu0 0.0
  %753 = vmatpush1.msra.mxu0 0.0
  %754 = vmatprep.subr.mxu0 0.0
  %755 = vmatpush1.msra.mxu0 0.0
  %756 = vmatprep.subr.mxu0 0.0
  %757 = vmatpush1.msra.mxu0 0.0
  %758 = vmatprep.subr.mxu0 0.0
  %759 = vmatpush1.msra.mxu0 0.0
  %760 = vmatprep.subr.mxu0 0.0
  %761 = vmatpush1.msra.mxu0 0.0
  %762 = vmatprep.subr.mxu0 0.0
  %763 = vmatpush1.msra.mxu0 0.0
  %764 = vmatprep.subr.mxu0 0.0
  %765 = vmatpush1.msra.mxu0 0.0
  %766 = vmatprep.subr.mxu0 0.0
  %767 = vmatpush1.msra.mxu0 0.0
  %768 = vmatprep.subr.mxu0 0.0
  %769 = vmatpush1.msra.mxu0 0.0
  %770 = vmatprep.subr.mxu0 0.0
  %771 = vmatpush1.msra.mxu0 0.0
  %772 = vmatprep.subr.mxu0 0.0
  %773 = vmatpush1.msra.mxu0 0.0
  %774 = vmatprep.subr.mxu0 0.0
  %775 = vmatpush1.msra.mxu0 0.0
  %776 = vmatprep.subr.mxu0 0.0
  %777 = vmatpush1.msra.mxu0 0.0
  %778 = vmatprep.subr.mxu0 0.0
  %779 = vmatpush1.msra.mxu0 0.0
  %780 = vmatprep.subr.mxu0 0.0
  %781 = vmatpush1.msra.mxu0 0.0
  %782 = vmatprep.subr.mxu0 0.0
  %783 = vmatpush1.msra.mxu0 0.0
  %784 = vmatprep.subr.mxu0 0.0
  %785 = vmatpush1.msra.mxu0 0.0
  %786 = vmatprep.subr.mxu0 0.0
  %787 = vmatpush1.msra.mxu0 0.0
  %788 = vmatprep.subr.mxu0 0.0
  %789 = vmatpush1.msra.mxu0 0.0
  %790 = vmatprep.subr.mxu0 0.0
  %791 = vmatpush1.msra.mxu0 0.0
  %792 = vmatprep.subr.mxu0 0.0
  %793 = vmatpush1.msra.mxu0 0.0
  %794 = vmatprep.subr.mxu0 0.0
  %795 = vmatpush1.msra.mxu0 0.0
  %796 = vmatprep.subr.mxu0 0.0
  %797 = vmatpush1.msra.mxu0 0.0
  %798 = vmatprep.subr.mxu0 0.0
  %799 = vmatpush1.msra.mxu0 0.0
  %800 = vmatprep.subr.mxu0 0.0
  %801 = vmatpush1.msra.mxu0 0.0
  %802 = vmatprep.mubr.f32.mxu0 0.0
  %803 = vmatmul.mubr.f32.gmra.mrb[0].mxu0 %v733
  %v804 = vpop.f32.mrb[0].mxu0
  %v805 = vadd.f32 0.0, %v804
  %v806 = vpop.f32.mrb[0].mxu0
  %807 = vmatprep.mubr.f32.mxu0 0.0
  %808 = vmatmul.mubr.f32.gmra.mrb[0].mxu0 %v736
  %v809 = vpop.f32.mrb[0].mxu0
  %v810 = vadd.f32 0.0, %v809
  %v811 = vpop.f32.mrb[0].mxu0
  %812 = vdwg.mxu0
  %v813 = vadd.f32 %v396, %v805
  %v814 = vadd.f32 %v396, %v810
  %815 = vrot.lane.b32.xlu0 %v377, 120
  %v816 = vpop.permute.xlu0 %815
  %817 = vrot.lane.b32.xlu0 %v377, 88
  %v818 = vpop.permute.xlu0 %817
  %v819 = vsel %vm400, %v816, 0
  %v821 = vsel %vm400, %v818, 0
  %823 = vmatprep.subr.mxu0 0.0
  %824 = vmatpush1.xpose.msra.mxu0 %v821
  %825 = vmatprep.subr.mxu0 0.0
  %826 = vmatpush1.xpose.msra.mxu0 0.0
  %827 = vmatprep.subr.mxu0 0.0
  %828 = vmatpush1.xpose.msra.mxu0 0.0
  %829 = vmatprep.subr.mxu0 0.0
  %830 = vmatpush1.xpose.msra.mxu0 0.0
  %831 = vmatprep.subr.mxu0 0.0
  %832 = vmatpush1.xpose.msra.mxu0 0.0
  %833 = vmatprep.subr.mxu0 0.0
  %834 = vmatpush1.xpose.msra.mxu0 0.0
  %835 = vmatprep.subr.mxu0 0.0
  %836 = vmatpush1.xpose.msra.mxu0 0.0
  %837 = vmatprep.subr.mxu0 0.0
  %838 = vmatpush1.xpose.msra.mxu0 0.0
  %839 = vmatprep.subr.mxu0 0.0
  %840 = vmatpush1.xpose.msra.mxu0 0.0
  %841 = vmatprep.subr.mxu0 0.0
  %842 = vmatpush1.xpose.msra.mxu0 0.0
  %843 = vmatprep.subr.mxu0 0.0
  %844 = vmatpush1.xpose.msra.mxu0 0.0
  %845 = vmatprep.subr.mxu0 0.0
  %846 = vmatpush1.xpose.msra.mxu0 0.0
  %847 = vmatprep.subr.mxu0 0.0
  %848 = vmatpush1.xpose.msra.mxu0 0.0
  %849 = vmatprep.subr.mxu0 0.0
  %850 = vmatpush1.xpose.msra.mxu0 0.0
  %851 = vmatprep.subr.mxu0 0.0
  %852 = vmatpush1.xpose.msra.mxu0 0.0
  %853 = vmatprep.subr.mxu0 0.0
  %854 = vmatpush1.xpose.msra.mxu0 0.0
  %855 = vmatprep.subr.mxu0 0.0
  %856 = vmatpush1.xpose.msra.mxu0 0.0
  %857 = vmatprep.subr.mxu0 0.0
  %858 = vmatpush1.xpose.msra.mxu0 0.0
  %859 = vmatprep.subr.mxu0 0.0
  %860 = vmatpush1.xpose.msra.mxu0 0.0
  %861 = vmatprep.subr.mxu0 0.0
  %862 = vmatpush1.xpose.msra.mxu0 0.0
  %863 = vmatprep.subr.mxu0 0.0
  %864 = vmatpush1.xpose.msra.mxu0 0.0
  %865 = vmatprep.subr.mxu0 0.0
  %866 = vmatpush1.xpose.msra.mxu0 0.0
  %867 = vmatprep.subr.mxu0 0.0
  %868 = vmatpush1.xpose.msra.mxu0 0.0
  %869 = vmatprep.subr.mxu0 0.0
  %870 = vmatpush1.xpose.msra.mxu0 0.0
  %871 = vmatprep.subr.mxu0 0.0
  %872 = vmatpush1.xpose.msra.mxu0 0.0
  %873 = vmatprep.subr.mxu0 0.0
  %874 = vmatpush1.xpose.msra.mxu0 0.0
  %875 = vmatprep.subr.mxu0 0.0
  %876 = vmatpush1.xpose.msra.mxu0 0.0
  %877 = vmatprep.subr.mxu0 0.0
  %878 = vmatpush1.xpose.msra.mxu0 0.0
  %879 = vmatprep.subr.mxu0 0.0
  %880 = vmatpush1.xpose.msra.mxu0 0.0
  %881 = vmatprep.subr.mxu0 0.0
  %882 = vmatpush1.xpose.msra.mxu0 0.0
  %883 = vmatprep.subr.mxu0 0.0
  %884 = vmatpush1.xpose.msra.mxu0 0.0
  %885 = vmatprep.subr.mxu0 0.0
  %886 = vmatpush1.xpose.msra.mxu0 0.0
  %887 = vmatprep.mubr.f32.mxu0 0.0
  %888 = vmatmul.mubr.f32.gmra.mrb[0].mxu0 %v819
  %v889 = vpop.f32.mrb[0].mxu0
  %v890 = vadd.f32 0.0, %v889
  %v891 = vpop.f32.mrb[0].mxu0
  %892 = vdwg.mxu0
  %893 = vrot.lane.b32.xlu0 %v382, 120
  %v894 = vpop.permute.xlu0 %893
  %895 = vrot.lane.b32.xlu0 %v382, 88
  %v896 = vpop.permute.xlu0 %895
  %v897 = vsel %vm400, %v894, 0
  %v899 = vsel %vm400, %v896, 0
  %901 = vmatprep.subr.mxu0 0.0
  %902 = vmatpush1.xpose.msra.mxu0 %v899
  %903 = vmatprep.subr.mxu0 0.0
  %904 = vmatpush1.xpose.msra.mxu0 0.0
  %905 = vmatprep.subr.mxu0 0.0
  %906 = vmatpush1.xpose.msra.mxu0 0.0
  %907 = vmatprep.subr.mxu0 0.0
  %908 = vmatpush1.xpose.msra.mxu0 0.0
  %909 = vmatprep.subr.mxu0 0.0
  %910 = vmatpush1.xpose.msra.mxu0 0.0
  %911 = vmatprep.subr.mxu0 0.0
  %912 = vmatpush1.xpose.msra.mxu0 0.0
  %913 = vmatprep.subr.mxu0 0.0
  %914 = vmatpush1.xpose.msra.mxu0 0.0
  %915 = vmatprep.subr.mxu0 0.0
  %916 = vmatpush1.xpose.msra.mxu0 0.0
  %917 = vmatprep.subr.mxu0 0.0
  %918 = vmatpush1.xpose.msra.mxu0 0.0
  %919 = vmatprep.subr.mxu0 0.0
  %920 = vmatpush1.xpose.msra.mxu0 0.0
  %921 = vmatprep.subr.mxu0 0.0
  %922 = vmatpush1.xpose.msra.mxu0 0.0
  %923 = vmatprep.subr.mxu0 0.0
  %924 = vmatpush1.xpose.msra.mxu0 0.0
  %925 = vmatprep.subr.mxu0 0.0
  %926 = vmatpush1.xpose.msra.mxu0 0.0
  %927 = vmatprep.subr.mxu0 0.0
  %928 = vmatpush1.xpose.msra.mxu0 0.0
  %929 = vmatprep.subr.mxu0 0.0
  %930 = vmatpush1.xpose.msra.mxu0 0.0
  %931 = vmatprep.subr.mxu0 0.0
  %932 = vmatpush1.xpose.msra.mxu0 0.0
  %933 = vmatprep.subr.mxu0 0.0
  %934 = vmatpush1.xpose.msra.mxu0 0.0
  %935 = vmatprep.subr.mxu0 0.0
  %936 = vmatpush1.xpose.msra.mxu0 0.0
  %937 = vmatprep.subr.mxu0 0.0
  %938 = vmatpush1.xpose.msra.mxu0 0.0
  %939 = vmatprep.subr.mxu0 0.0
  %940 = vmatpush1.xpose.msra.mxu0 0.0
  %941 = vmatprep.subr.mxu0 0.0
  %942 = vmatpush1.xpose.msra.mxu0 0.0
  %943 = vmatprep.subr.mxu0 0.0
  %944 = vmatpush1.xpose.msra.mxu0 0.0
  %945 = vmatprep.subr.mxu0 0.0
  %946 = vmatpush1.xpose.msra.mxu0 0.0
  %947 = vmatprep.subr.mxu0 0.0
  %948 = vmatpush1.xpose.msra.mxu0 0.0
  %949 = vmatprep.subr.mxu0 0.0
  %950 = vmatpush1.xpose.msra.mxu0 0.0
  %951 = vmatprep.subr.mxu0 0.0
  %952 = vmatpush1.xpose.msra.mxu0 0.0
  %953 = vmatprep.subr.mxu0 0.0
  %954 = vmatpush1.xpose.msra.mxu0 0.0
  %955 = vmatprep.subr.mxu0 0.0
  %956 = vmatpush1.xpose.msra.mxu0 0.0
  %957 = vmatprep.subr.mxu0 0.0
  %958 = vmatpush1.xpose.msra.mxu0 0.0
  %959 = vmatprep.subr.mxu0 0.0
  %960 = vmatpush1.xpose.msra.mxu0 0.0
  %961 = vmatprep.subr.mxu0 0.0
  %962 = vmatpush1.xpose.msra.mxu0 0.0
  %963 = vmatprep.subr.mxu0 0.0
  %964 = vmatpush1.xpose.msra.mxu0 0.0
  %965 = vmatprep.mubr.f32.mxu0 0.0
  %966 = vmatmul.mubr.f32.gmra.mrb[0].mxu0 %v897
  %v967 = vpop.f32.mrb[0].mxu0
  %v968 = vadd.f32 0.0, %v967
  %v969 = vpop.f32.mrb[0].mxu0
  %970 = vdwg.mxu0
  %v971 = vmul.f32 %v890, 0.35355338
  %v972 = vmul.f32 %v968, 0.35355338
  %v973 = vsel %vm555, %v971, -1e+30
  %v974 = vsel %vm555, %v972, -1e+30
  %v975 = vsel %vm400, %v973, -inf
  %976 = vmax.xlane.f32.xlu0 %v975
  %v977 = vpop.xlane.xlu0 %976
  %v978 = vsel %vm400, %v974, -inf
  %979 = vmax.xlane.f32.xlu0 %v978
  %v980 = vpop.xlane.xlu0 %979
  %v981 = vsub.f32 %v973, %v977
  %v982 = vsub.f32 %v974, %v980
  %v983 = vmul.f32 %v981, 1.442695
  %v984 = vpow.pop %v983
  %v985 = vmul.f32 %v982, 1.442695
  %v986 = vpow.pop %v985
  %v987 = vsel %vm400, %v984, 0.0
  %988 = vadd.xlane.f32.xlu0 %v987
  %v989 = vpop.xlane.xlu0 %988
  %v990 = vsel %vm400, %v986, 0.0
  %991 = vadd.xlane.f32.xlu0 %v990
  %v992 = vpop.xlane.xlu0 %991
  %v993 = vrcp.pop %v989
  %v994 = vrcp.pop %v992
  %v995 = vmul.f32 %v984, %v993
  %v996 = vmul.f32 %v986, %v994
  %997 = vrot.lane.b32.xlu0 %v377, 56
  %v998 = vpop.permute.xlu0 %997
  %v1001 = vsel %vm400, %v995, 0
  %1003 = vmatprep.subr.mxu0 0.0
  %1004 = vmatpush1.msra.mxu0 %v998
  %1005 = vmatprep.subr.mxu0 0.0
  %1006 = vmatpush1.msra.mxu0 0.0
  %1007 = vmatprep.subr.mxu0 0.0
  %1008 = vmatpush1.msra.mxu0 0.0
  %1009 = vmatprep.subr.mxu0 0.0
  %1010 = vmatpush1.msra.mxu0 0.0
  %1011 = vmatprep.subr.mxu0 0.0
  %1012 = vmatpush1.msra.mxu0 0.0
  %1013 = vmatprep.subr.mxu0 0.0
  %1014 = vmatpush1.msra.mxu0 0.0
  %1015 = vmatprep.subr.mxu0 0.0
  %1016 = vmatpush1.msra.mxu0 0.0
  %1017 = vmatprep.subr.mxu0 0.0
  %1018 = vmatpush1.msra.mxu0 0.0
  %1019 = vmatprep.subr.mxu0 0.0
  %1020 = vmatpush1.msra.mxu0 0.0
  %1021 = vmatprep.subr.mxu0 0.0
  %1022 = vmatpush1.msra.mxu0 0.0
  %1023 = vmatprep.subr.mxu0 0.0
  %1024 = vmatpush1.msra.mxu0 0.0
  %1025 = vmatprep.subr.mxu0 0.0
  %1026 = vmatpush1.msra.mxu0 0.0
  %1027 = vmatprep.subr.mxu0 0.0
  %1028 = vmatpush1.msra.mxu0 0.0
  %1029 = vmatprep.subr.mxu0 0.0
  %1030 = vmatpush1.msra.mxu0 0.0
  %1031 = vmatprep.subr.mxu0 0.0
  %1032 = vmatpush1.msra.mxu0 0.0
  %1033 = vmatprep.subr.mxu0 0.0
  %1034 = vmatpush1.msra.mxu0 0.0
  %1035 = vmatprep.subr.mxu0 0.0
  %1036 = vmatpush1.msra.mxu0 0.0
  %1037 = vmatprep.subr.mxu0 0.0
  %1038 = vmatpush1.msra.mxu0 0.0
  %1039 = vmatprep.subr.mxu0 0.0
  %1040 = vmatpush1.msra.mxu0 0.0
  %1041 = vmatprep.subr.mxu0 0.0
  %1042 = vmatpush1.msra.mxu0 0.0
  %1043 = vmatprep.subr.mxu0 0.0
  %1044 = vmatpush1.msra.mxu0 0.0
  %1045 = vmatprep.subr.mxu0 0.0
  %1046 = vmatpush1.msra.mxu0 0.0
  %1047 = vmatprep.subr.mxu0 0.0
  %1048 = vmatpush1.msra.mxu0 0.0
  %1049 = vmatprep.subr.mxu0 0.0
  %1050 = vmatpush1.msra.mxu0 0.0
  %1051 = vmatprep.subr.mxu0 0.0
  %1052 = vmatpush1.msra.mxu0 0.0
  %1053 = vmatprep.subr.mxu0 0.0
  %1054 = vmatpush1.msra.mxu0 0.0
  %1055 = vmatprep.subr.mxu0 0.0
  %1056 = vmatpush1.msra.mxu0 0.0
  %1057 = vmatprep.subr.mxu0 0.0
  %1058 = vmatpush1.msra.mxu0 0.0
  %1059 = vmatprep.subr.mxu0 0.0
  %1060 = vmatpush1.msra.mxu0 0.0
  %1061 = vmatprep.subr.mxu0 0.0
  %1062 = vmatpush1.msra.mxu0 0.0
  %1063 = vmatprep.subr.mxu0 0.0
  %1064 = vmatpush1.msra.mxu0 0.0
  %1065 = vmatprep.subr.mxu0 0.0
  %1066 = vmatpush1.msra.mxu0 0.0
  %1067 = vmatprep.mubr.f32.mxu0 0.0
  %1068 = vmatmul.mubr.f32.gmra.mrb[0].mxu0 %v1001
  %v1069 = vpop.f32.mrb[0].mxu0
  %v1070 = vadd.f32 0.0, %v1069
  %v1071 = vpop.f32.mrb[0].mxu0
  %1072 = vdwg.mxu0
  %1073 = vrot.lane.b32.xlu0 %v382, 56
  %v1074 = vpop.permute.xlu0 %1073
  %v1077 = vsel %vm400, %v996, 0
  %1079 = vmatprep.subr.mxu0 0.0
  %1080 = vmatpush1.msra.mxu0 %v1074
  %1081 = vmatprep.subr.mxu0 0.0
  %1082 = vmatpush1.msra.mxu0 0.0
  %1083 = vmatprep.subr.mxu0 0.0
  %1084 = vmatpush1.msra.mxu0 0.0
  %1085 = vmatprep.subr.mxu0 0.0
  %1086 = vmatpush1.msra.mxu0 0.0
  %1087 = vmatprep.subr.mxu0 0.0
  %1088 = vmatpush1.msra.mxu0 0.0
  %1089 = vmatprep.subr.mxu0 0.0
  %1090 = vmatpush1.msra.mxu0 0.0
  %1091 = vmatprep.subr.mxu0 0.0
  %1092 = vmatpush1.msra.mxu0 0.0
  %1093 = vmatprep.subr.mxu0 0.0
  %1094 = vmatpush1.msra.mxu0 0.0
  %1095 = vmatprep.subr.mxu0 0.0
  %1096 = vmatpush1.msra.mxu0 0.0
  %1097 = vmatprep.subr.mxu0 0.0
  %1098 = vmatpush1.msra.mxu0 0.0
  %1099 = vmatprep.subr.mxu0 0.0
  %1100 = vmatpush1.msra.mxu0 0.0
  %1101 = vmatprep.subr.mxu0 0.0
  %1102 = vmatpush1.msra.mxu0 0.0
  %1103 = vmatprep.subr.mxu0 0.0
  %1104 = vmatpush1.msra.mxu0 0.0
  %1105 = vmatprep.subr.mxu0 0.0
  %1106 = vmatpush1.msra.mxu0 0.0
  %1107 = vmatprep.subr.mxu0 0.0
  %1108 = vmatpush1.msra.mxu0 0.0
  %1109 = vmatprep.subr.mxu0 0.0
  %1110 = vmatpush1.msra.mxu0 0.0
  %1111 = vmatprep.subr.mxu0 0.0
  %1112 = vmatpush1.msra.mxu0 0.0
  %1113 = vmatprep.subr.mxu0 0.0
  %1114 = vmatpush1.msra.mxu0 0.0
  %1115 = vmatprep.subr.mxu0 0.0
  %1116 = vmatpush1.msra.mxu0 0.0
  %1117 = vmatprep.subr.mxu0 0.0
  %1118 = vmatpush1.msra.mxu0 0.0
  %1119 = vmatprep.subr.mxu0 0.0
  %1120 = vmatpush1.msra.mxu0 0.0
  %1121 = vmatprep.subr.mxu0 0.0
  %1122 = vmatpush1.msra.mxu0 0.0
  %1123 = vmatprep.subr.mxu0 0.0
  %1124 = vmatpush1.msra.mxu0 0.0
  %1125 = vmatprep.subr.mxu0 0.0
  %1126 = vmatpush1.msra.mxu0 0.0
  %1127 = vmatprep.subr.mxu0 0.0
  %1128 = vmatpush1.msra.mxu0 0.0
  %1129 = vmatprep.subr.mxu0 0.0
  %1130 = vmatpush1.msra.mxu0 0.0
  %1131 = vmatprep.subr.mxu0 0.0
  %1132 = vmatpush1.msra.mxu0 0.0
  %1133 = vmatprep.subr.mxu0 0.0
  %1134 = vmatpush1.msra.mxu0 0.0
  %1135 = vmatprep.subr.mxu0 0.0
  %1136 = vmatpush1.msra.mxu0 0.0
  %1137 = vmatprep.subr.mxu0 0.0
  %1138 = vmatpush1.msra.mxu0 0.0
  %1139 = vmatprep.subr.mxu0 0.0
  %1140 = vmatpush1.msra.mxu0 0.0
  %1141 = vmatprep.subr.mxu0 0.0
  %1142 = vmatpush1.msra.mxu0 0.0
  %1143 = vmatprep.mubr.f32.mxu0 0.0
  %1144 = vmatmul.mubr.f32.gmra.mrb[0].mxu0 %v1077
  %v1145 = vpop.f32.mrb[0].mxu0
  %v1146 = vadd.f32 0.0, %v1145
  %v1147 = vpop.f32.mrb[0].mxu0
  %1148 = vdwg.mxu0
  %v1150 = vsel %vm400, %v1070, 0
  %v1153 = vsel %vm400, %v1146, 0
  %1155 = vmatprep.subr.mxu0 0.0
  %1156 = vmatpush1.msra.mxu0 %v232
  %1157 = vmatprep.subr.mxu0 0.0
  %1158 = vmatpush1.msra.mxu0 0.0
  %1159 = vmatprep.subr.mxu0 0.0
  %1160 = vmatpush1.msra.mxu0 0.0
  %1161 = vmatprep.subr.mxu0 0.0
  %1162 = vmatpush1.msra.mxu0 0.0
  %1163 = vmatprep.subr.mxu0 0.0
  %1164 = vmatpush1.msra.mxu0 0.0
  %1165 = vmatprep.subr.mxu0 0.0
  %1166 = vmatpush1.msra.mxu0 0.0
  %1167 = vmatprep.subr.mxu0 0.0
  %1168 = vmatpush1.msra.mxu0 0.0
  %1169 = vmatprep.subr.mxu0 0.0
  %1170 = vmatpush1.msra.mxu0 0.0
  %1171 = vmatprep.subr.mxu0 0.0
  %1172 = vmatpush1.msra.mxu0 0.0
  %1173 = vmatprep.subr.mxu0 0.0
  %1174 = vmatpush1.msra.mxu0 0.0
  %1175 = vmatprep.subr.mxu0 0.0
  %1176 = vmatpush1.msra.mxu0 0.0
  %1177 = vmatprep.subr.mxu0 0.0
  %1178 = vmatpush1.msra.mxu0 0.0
  %1179 = vmatprep.subr.mxu0 0.0
  %1180 = vmatpush1.msra.mxu0 0.0
  %1181 = vmatprep.subr.mxu0 0.0
  %1182 = vmatpush1.msra.mxu0 0.0
  %1183 = vmatprep.subr.mxu0 0.0
  %1184 = vmatpush1.msra.mxu0 0.0
  %1185 = vmatprep.subr.mxu0 0.0
  %1186 = vmatpush1.msra.mxu0 0.0
  %1187 = vmatprep.subr.mxu0 0.0
  %1188 = vmatpush1.msra.mxu0 0.0
  %1189 = vmatprep.subr.mxu0 0.0
  %1190 = vmatpush1.msra.mxu0 0.0
  %1191 = vmatprep.subr.mxu0 0.0
  %1192 = vmatpush1.msra.mxu0 0.0
  %1193 = vmatprep.subr.mxu0 0.0
  %1194 = vmatpush1.msra.mxu0 0.0
  %1195 = vmatprep.subr.mxu0 0.0
  %1196 = vmatpush1.msra.mxu0 0.0
  %1197 = vmatprep.subr.mxu0 0.0
  %1198 = vmatpush1.msra.mxu0 0.0
  %1199 = vmatprep.subr.mxu0 0.0
  %1200 = vmatpush1.msra.mxu0 0.0
  %1201 = vmatprep.subr.mxu0 0.0
  %1202 = vmatpush1.msra.mxu0 0.0
  %1203 = vmatprep.subr.mxu0 0.0
  %1204 = vmatpush1.msra.mxu0 0.0
  %1205 = vmatprep.subr.mxu0 0.0
  %1206 = vmatpush1.msra.mxu0 0.0
  %1207 = vmatprep.subr.mxu0 0.0
  %1208 = vmatpush1.msra.mxu0 0.0
  %1209 = vmatprep.subr.mxu0 0.0
  %1210 = vmatpush1.msra.mxu0 0.0
  %1211 = vmatprep.subr.mxu0 0.0
  %1212 = vmatpush1.msra.mxu0 0.0
  %1213 = vmatprep.subr.mxu0 0.0
  %1214 = vmatpush1.msra.mxu0 0.0
  %1215 = vmatprep.subr.mxu0 0.0
  %1216 = vmatpush1.msra.mxu0 0.0
  %1217 = vmatprep.subr.mxu0 0.0
  %1218 = vmatpush1.msra.mxu0 0.0
  %1219 = vmatprep.mubr.f32.mxu0 0.0
  %1220 = vmatmul.mubr.f32.gmra.mrb[0].mxu0 %v1150
  %v1221 = vpop.f32.mrb[0].mxu0
  %v1222 = vadd.f32 0.0, %v1221
  %v1223 = vpop.f32.mrb[0].mxu0
  %1224 = vmatprep.mubr.f32.mxu0 0.0
  %1225 = vmatmul.mubr.f32.gmra.mrb[0].mxu0 %v1153
  %v1226 = vpop.f32.mrb[0].mxu0
  %v1227 = vadd.f32 0.0, %v1226
  %v1228 = vpop.f32.mrb[0].mxu0
  %1229 = vdwg.mxu0
  %v1230 = vadd.f32 %v813, %v1222
  %v1231 = vadd.f32 %v814, %v1227
  %1232 = vrot.lane.b32.xlu0 %v377, 112
  %v1233 = vpop.permute.xlu0 %1232
  %1234 = vrot.lane.b32.xlu0 %v377, 80
  %v1235 = vpop.permute.xlu0 %1234
  %v1236 = vsel %vm400, %v1233, 0
  %v1238 = vsel %vm400, %v1235, 0
  %1240 = vmatprep.subr.mxu0 0.0
  %1241 = vmatpush1.xpose.msra.mxu0 %v1238
  %1242 = vmatprep.subr.mxu0 0.0
  %1243 = vmatpush1.xpose.msra.mxu0 0.0
  %1244 = vmatprep.subr.mxu0 0.0
  %1245 = vmatpush1.xpose.msra.mxu0 0.0
  %1246 = vmatprep.subr.mxu0 0.0
  %1247 = vmatpush1.xpose.msra.mxu0 0.0
  %1248 = vmatprep.subr.mxu0 0.0
  %1249 = vmatpush1.xpose.msra.mxu0 0.0
  %1250 = vmatprep.subr.mxu0 0.0
  %1251 = vmatpush1.xpose.msra.mxu0 0.0
  %1252 = vmatprep.subr.mxu0 0.0
  %1253 = vmatpush1.xpose.msra.mxu0 0.0
  %1254 = vmatprep.subr.mxu0 0.0
  %1255 = vmatpush1.xpose.msra.mxu0 0.0
  %1256 = vmatprep.subr.mxu0 0.0
  %1257 = vmatpush1.xpose.msra.mxu0 0.0
  %1258 = vmatprep.subr.mxu0 0.0
  %1259 = vmatpush1.xpose.msra.mxu0 0.0
  %1260 = vmatprep.subr.mxu0 0.0
  %1261 = vmatpush1.xpose.msra.mxu0 0.0
  %1262 = vmatprep.subr.mxu0 0.0
  %1263 = vmatpush1.xpose.msra.mxu0 0.0
  %1264 = vmatprep.subr.mxu0 0.0
  %1265 = vmatpush1.xpose.msra.mxu0 0.0
  %1266 = vmatprep.subr.mxu0 0.0
  %1267 = vmatpush1.xpose.msra.mxu0 0.0
  %1268 = vmatprep.subr.mxu0 0.0
  %1269 = vmatpush1.xpose.msra.mxu0 0.0
  %1270 = vmatprep.subr.mxu0 0.0
  %1271 = vmatpush1.xpose.msra.mxu0 0.0
  %1272 = vmatprep.subr.mxu0 0.0
  %1273 = vmatpush1.xpose.msra.mxu0 0.0
  %1274 = vmatprep.subr.mxu0 0.0
  %1275 = vmatpush1.xpose.msra.mxu0 0.0
  %1276 = vmatprep.subr.mxu0 0.0
  %1277 = vmatpush1.xpose.msra.mxu0 0.0
  %1278 = vmatprep.subr.mxu0 0.0
  %1279 = vmatpush1.xpose.msra.mxu0 0.0
  %1280 = vmatprep.subr.mxu0 0.0
  %1281 = vmatpush1.xpose.msra.mxu0 0.0
  %1282 = vmatprep.subr.mxu0 0.0
  %1283 = vmatpush1.xpose.msra.mxu0 0.0
  %1284 = vmatprep.subr.mxu0 0.0
  %1285 = vmatpush1.xpose.msra.mxu0 0.0
  %1286 = vmatprep.subr.mxu0 0.0
  %1287 = vmatpush1.xpose.msra.mxu0 0.0
  %1288 = vmatprep.subr.mxu0 0.0
  %1289 = vmatpush1.xpose.msra.mxu0 0.0
  %1290 = vmatprep.subr.mxu0 0.0
  %1291 = vmatpush1.xpose.msra.mxu0 0.0
  %1292 = vmatprep.subr.mxu0 0.0
  %1293 = vmatpush1.xpose.msra.mxu0 0.0
  %1294 = vmatprep.subr.mxu0 0.0
  %1295 = vmatpush1.xpose.msra.mxu0 0.0
  %1296 = vmatprep.subr.mxu0 0.0
  %1297 = vmatpush1.xpose.msra.mxu0 0.0
  %1298 = vmatprep.subr.mxu0 0.0
  %1299 = vmatpush1.xpose.msra.mxu0 0.0
  %1300 = vmatprep.subr.mxu0 0.0
  %1301 = vmatpush1.xpose.msra.mxu0 0.0
  %1302 = vmatprep.subr.mxu0 0.0
  %1303 = vmatpush1.xpose.msra.mxu0 0.0
  %1304 = vmatprep.mubr.f32.mxu0 0.0
  %1305 = vmatmul.mubr.f32.gmra.mrb[0].mxu0 %v1236
  %v1306 = vpop.f32.mrb[0].mxu0
  %v1307 = vadd.f32 0.0, %v1306
  %v1308 = vpop.f32.mrb[0].mxu0
  %1309 = vdwg.mxu0
  %1310 = vrot.lane.b32.xlu0 %v382, 112
  %v1311 = vpop.permute.xlu0 %1310
  %1312 = vrot.lane.b32.xlu0 %v382, 80
  %v1313 = vpop.permute.xlu0 %1312
  %v1314 = vsel %vm400, %v1311, 0
  %v1316 = vsel %vm400, %v1313, 0
  %1318 = vmatprep.subr.mxu0 0.0
  %1319 = vmatpush1.xpose.msra.mxu0 %v1316
  %1320 = vmatprep.subr.mxu0 0.0
  %1321 = vmatpush1.xpose.msra.mxu0 0.0
  %1322 = vmatprep.subr.mxu0 0.0
  %1323 = vmatpush1.xpose.msra.mxu0 0.0
  %1324 = vmatprep.subr.mxu0 0.0
  %1325 = vmatpush1.xpose.msra.mxu0 0.0
  %1326 = vmatprep.subr.mxu0 0.0
  %1327 = vmatpush1.xpose.msra.mxu0 0.0
  %1328 = vmatprep.subr.mxu0 0.0
  %1329 = vmatpush1.xpose.msra.mxu0 0.0
  %1330 = vmatprep.subr.mxu0 0.0
  %1331 = vmatpush1.xpose.msra.mxu0 0.0
  %1332 = vmatprep.subr.mxu0 0.0
  %1333 = vmatpush1.xpose.msra.mxu0 0.0
  %1334 = vmatprep.subr.mxu0 0.0
  %1335 = vmatpush1.xpose.msra.mxu0 0.0
  %1336 = vmatprep.subr.mxu0 0.0
  %1337 = vmatpush1.xpose.msra.mxu0 0.0
  %1338 = vmatprep.subr.mxu0 0.0
  %1339 = vmatpush1.xpose.msra.mxu0 0.0
  %1340 = vmatprep.subr.mxu0 0.0
  %1341 = vmatpush1.xpose.msra.mxu0 0.0
  %1342 = vmatprep.subr.mxu0 0.0
  %1343 = vmatpush1.xpose.msra.mxu0 0.0
  %1344 = vmatprep.subr.mxu0 0.0
  %1345 = vmatpush1.xpose.msra.mxu0 0.0
  %1346 = vmatprep.subr.mxu0 0.0
  %1347 = vmatpush1.xpose.msra.mxu0 0.0
  %1348 = vmatprep.subr.mxu0 0.0
  %1349 = vmatpush1.xpose.msra.mxu0 0.0
  %1350 = vmatprep.subr.mxu0 0.0
  %1351 = vmatpush1.xpose.msra.mxu0 0.0
  %1352 = vmatprep.subr.mxu0 0.0
  %1353 = vmatpush1.xpose.msra.mxu0 0.0
  %1354 = vmatprep.subr.mxu0 0.0
  %1355 = vmatpush1.xpose.msra.mxu0 0.0
  %1356 = vmatprep.subr.mxu0 0.0
  %1357 = vmatpush1.xpose.msra.mxu0 0.0
  %1358 = vmatprep.subr.mxu0 0.0
  %1359 = vmatpush1.xpose.msra.mxu0 0.0
  %1360 = vmatprep.subr.mxu0 0.0
  %1361 = vmatpush1.xpose.msra.mxu0 0.0
  %1362 = vmatprep.subr.mxu0 0.0
  %1363 = vmatpush1.xpose.msra.mxu0 0.0
  %1364 = vmatprep.subr.mxu0 0.0
  %1365 = vmatpush1.xpose.msra.mxu0 0.0
  %1366 = vmatprep.subr.mxu0 0.0
  %1367 = vmatpush1.xpose.msra.mxu0 0.0
  %1368 = vmatprep.subr.mxu0 0.0
  %1369 = vmatpush1.xpose.msra.mxu0 0.0
  %1370 = vmatprep.subr.mxu0 0.0
  %1371 = vmatpush1.xpose.msra.mxu0 0.0
  %1372 = vmatprep.subr.mxu0 0.0
  %1373 = vmatpush1.xpose.msra.mxu0 0.0
  %1374 = vmatprep.subr.mxu0 0.0
  %1375 = vmatpush1.xpose.msra.mxu0 0.0
  %1376 = vmatprep.subr.mxu0 0.0
  %1377 = vmatpush1.xpose.msra.mxu0 0.0
  %1378 = vmatprep.subr.mxu0 0.0
  %1379 = vmatpush1.xpose.msra.mxu0 0.0
  %1380 = vmatprep.subr.mxu0 0.0
  %1381 = vmatpush1.xpose.msra.mxu0 0.0
  %1382 = vmatprep.mubr.f32.mxu0 0.0
  %1383 = vmatmul.mubr.f32.gmra.mrb[0].mxu0 %v1314
  %v1384 = vpop.f32.mrb[0].mxu0
  %v1385 = vadd.f32 0.0, %v1384
  %v1386 = vpop.f32.mrb[0].mxu0
  %1387 = vdwg.mxu0
  %v1388 = vmul.f32 %v1307, 0.35355338
  %v1389 = vmul.f32 %v1385, 0.35355338
  %v1390 = vsel %vm555, %v1388, -1e+30
  %v1391 = vsel %vm555, %v1389, -1e+30
  %v1392 = vsel %vm400, %v1390, -inf
  %1393 = vmax.xlane.f32.xlu0 %v1392
  %v1394 = vpop.xlane.xlu0 %1393
  %v1395 = vsel %vm400, %v1391, -inf
  %1396 = vmax.xlane.f32.xlu0 %v1395
  %v1397 = vpop.xlane.xlu0 %1396
  %v1398 = vsub.f32 %v1390, %v1394
  %v1399 = vsub.f32 %v1391, %v1397
  %v1400 = vmul.f32 %v1398, 1.442695
  %v1401 = vpow.pop %v1400
  %v1402 = vmul.f32 %v1399, 1.442695
  %v1403 = vpow.pop %v1402
  %v1404 = vsel %vm400, %v1401, 0.0
  %1405 = vadd.xlane.f32.xlu0 %v1404
  %v1406 = vpop.xlane.xlu0 %1405
  %v1407 = vsel %vm400, %v1403, 0.0
  %1408 = vadd.xlane.f32.xlu0 %v1407
  %v1409 = vpop.xlane.xlu0 %1408
  %v1410 = vrcp.pop %v1406
  %v1411 = vrcp.pop %v1409
  %v1412 = vmul.f32 %v1401, %v1410
  %v1413 = vmul.f32 %v1403, %v1411
  %1414 = vrot.lane.b32.xlu0 %v377, 48
  %v1415 = vpop.permute.xlu0 %1414
  %v1418 = vsel %vm400, %v1412, 0
  %1420 = vmatprep.subr.mxu0 0.0
  %1421 = vmatpush1.msra.mxu0 %v1415
  %1422 = vmatprep.subr.mxu0 0.0
  %1423 = vmatpush1.msra.mxu0 0.0
  %1424 = vmatprep.subr.mxu0 0.0
  %1425 = vmatpush1.msra.mxu0 0.0
  %1426 = vmatprep.subr.mxu0 0.0
  %1427 = vmatpush1.msra.mxu0 0.0
  %1428 = vmatprep.subr.mxu0 0.0
  %1429 = vmatpush1.msra.mxu0 0.0
  %1430 = vmatprep.subr.mxu0 0.0
  %1431 = vmatpush1.msra.mxu0 0.0
  %1432 = vmatprep.subr.mxu0 0.0
  %1433 = vmatpush1.msra.mxu0 0.0
  %1434 = vmatprep.subr.mxu0 0.0
  %1435 = vmatpush1.msra.mxu0 0.0
  %1436 = vmatprep.subr.mxu0 0.0
  %1437 = vmatpush1.msra.mxu0 0.0
  %1438 = vmatprep.subr.mxu0 0.0
  %1439 = vmatpush1.msra.mxu0 0.0
  %1440 = vmatprep.subr.mxu0 0.0
  %1441 = vmatpush1.msra.mxu0 0.0
  %1442 = vmatprep.subr.mxu0 0.0
  %1443 = vmatpush1.msra.mxu0 0.0
  %1444 = vmatprep.subr.mxu0 0.0
  %1445 = vmatpush1.msra.mxu0 0.0
  %1446 = vmatprep.subr.mxu0 0.0
  %1447 = vmatpush1.msra.mxu0 0.0
  %1448 = vmatprep.subr.mxu0 0.0
  %1449 = vmatpush1.msra.mxu0 0.0
  %1450 = vmatprep.subr.mxu0 0.0
  %1451 = vmatpush1.msra.mxu0 0.0
  %1452 = vmatprep.subr.mxu0 0.0
  %1453 = vmatpush1.msra.mxu0 0.0
  %1454 = vmatprep.subr.mxu0 0.0
  %1455 = vmatpush1.msra.mxu0 0.0
  %1456 = vmatprep.subr.mxu0 0.0
  %1457 = vmatpush1.msra.mxu0 0.0
  %1458 = vmatprep.subr.mxu0 0.0
  %1459 = vmatpush1.msra.mxu0 0.0
  %1460 = vmatprep.subr.mxu0 0.0
  %1461 = vmatpush1.msra.mxu0 0.0
  %1462 = vmatprep.subr.mxu0 0.0
  %1463 = vmatpush1.msra.mxu0 0.0
  %1464 = vmatprep.subr.mxu0 0.0
  %1465 = vmatpush1.msra.mxu0 0.0
  %1466 = vmatprep.subr.mxu0 0.0
  %1467 = vmatpush1.msra.mxu0 0.0
  %1468 = vmatprep.subr.mxu0 0.0
  %1469 = vmatpush1.msra.mxu0 0.0
  %1470 = vmatprep.subr.mxu0 0.0
  %1471 = vmatpush1.msra.mxu0 0.0
  %1472 = vmatprep.subr.mxu0 0.0
  %1473 = vmatpush1.msra.mxu0 0.0
  %1474 = vmatprep.subr.mxu0 0.0
  %1475 = vmatpush1.msra.mxu0 0.0
  %1476 = vmatprep.subr.mxu0 0.0
  %1477 = vmatpush1.msra.mxu0 0.0
  %1478 = vmatprep.subr.mxu0 0.0
  %1479 = vmatpush1.msra.mxu0 0.0
  %1480 = vmatprep.subr.mxu0 0.0
  %1481 = vmatpush1.msra.mxu0 0.0
  %1482 = vmatprep.subr.mxu0 0.0
  %1483 = vmatpush1.msra.mxu0 0.0
  %1484 = vmatprep.mubr.f32.mxu0 0.0
  %1485 = vmatmul.mubr.f32.gmra.mrb[0].mxu0 %v1418
  %v1486 = vpop.f32.mrb[0].mxu0
  %v1487 = vadd.f32 0.0, %v1486
  %v1488 = vpop.f32.mrb[0].mxu0
  %1489 = vdwg.mxu0
  %1490 = vrot.lane.b32.xlu0 %v382, 48
  %v1491 = vpop.permute.xlu0 %1490
  %v1494 = vsel %vm400, %v1413, 0
  %1496 = vmatprep.subr.mxu0 0.0
  %1497 = vmatpush1.msra.mxu0 %v1491
  %1498 = vmatprep.subr.mxu0 0.0
  %1499 = vmatpush1.msra.mxu0 0.0
  %1500 = vmatprep.subr.mxu0 0.0
  %1501 = vmatpush1.msra.mxu0 0.0
  %1502 = vmatprep.subr.mxu0 0.0
  %1503 = vmatpush1.msra.mxu0 0.0
  %1504 = vmatprep.subr.mxu0 0.0
  %1505 = vmatpush1.msra.mxu0 0.0
  %1506 = vmatprep.subr.mxu0 0.0
  %1507 = vmatpush1.msra.mxu0 0.0
  %1508 = vmatprep.subr.mxu0 0.0
  %1509 = vmatpush1.msra.mxu0 0.0
  %1510 = vmatprep.subr.mxu0 0.0
  %1511 = vmatpush1.msra.mxu0 0.0
  %1512 = vmatprep.subr.mxu0 0.0
  %1513 = vmatpush1.msra.mxu0 0.0
  %1514 = vmatprep.subr.mxu0 0.0
  %1515 = vmatpush1.msra.mxu0 0.0
  %1516 = vmatprep.subr.mxu0 0.0
  %1517 = vmatpush1.msra.mxu0 0.0
  %1518 = vmatprep.subr.mxu0 0.0
  %1519 = vmatpush1.msra.mxu0 0.0
  %1520 = vmatprep.subr.mxu0 0.0
  %1521 = vmatpush1.msra.mxu0 0.0
  %1522 = vmatprep.subr.mxu0 0.0
  %1523 = vmatpush1.msra.mxu0 0.0
  %1524 = vmatprep.subr.mxu0 0.0
  %1525 = vmatpush1.msra.mxu0 0.0
  %1526 = vmatprep.subr.mxu0 0.0
  %1527 = vmatpush1.msra.mxu0 0.0
  %1528 = vmatprep.subr.mxu0 0.0
  %1529 = vmatpush1.msra.mxu0 0.0
  %1530 = vmatprep.subr.mxu0 0.0
  %1531 = vmatpush1.msra.mxu0 0.0
  %1532 = vmatprep.subr.mxu0 0.0
  %1533 = vmatpush1.msra.mxu0 0.0
  %1534 = vmatprep.subr.mxu0 0.0
  %1535 = vmatpush1.msra.mxu0 0.0
  %1536 = vmatprep.subr.mxu0 0.0
  %1537 = vmatpush1.msra.mxu0 0.0
  %1538 = vmatprep.subr.mxu0 0.0
  %1539 = vmatpush1.msra.mxu0 0.0
  %1540 = vmatprep.subr.mxu0 0.0
  %1541 = vmatpush1.msra.mxu0 0.0
  %1542 = vmatprep.subr.mxu0 0.0
  %1543 = vmatpush1.msra.mxu0 0.0
  %1544 = vmatprep.subr.mxu0 0.0
  %1545 = vmatpush1.msra.mxu0 0.0
  %1546 = vmatprep.subr.mxu0 0.0
  %1547 = vmatpush1.msra.mxu0 0.0
  %1548 = vmatprep.subr.mxu0 0.0
  %1549 = vmatpush1.msra.mxu0 0.0
  %1550 = vmatprep.subr.mxu0 0.0
  %1551 = vmatpush1.msra.mxu0 0.0
  %1552 = vmatprep.subr.mxu0 0.0
  %1553 = vmatpush1.msra.mxu0 0.0
  %1554 = vmatprep.subr.mxu0 0.0
  %1555 = vmatpush1.msra.mxu0 0.0
  %1556 = vmatprep.subr.mxu0 0.0
  %1557 = vmatpush1.msra.mxu0 0.0
  %1558 = vmatprep.subr.mxu0 0.0
  %1559 = vmatpush1.msra.mxu0 0.0
  %1560 = vmatprep.mubr.f32.mxu0 0.0
  %1561 = vmatmul.mubr.f32.gmra.mrb[0].mxu0 %v1494
  %v1562 = vpop.f32.mrb[0].mxu0
  %v1563 = vadd.f32 0.0, %v1562
  %v1564 = vpop.f32.mrb[0].mxu0
  %1565 = vdwg.mxu0
  %v1567 = vsel %vm400, %v1487, 0
  %v1570 = vsel %vm400, %v1563, 0
  %1572 = vmatprep.subr.mxu0 0.0
  %1573 = vmatpush1.msra.mxu0 %v233
  %1574 = vmatprep.subr.mxu0 0.0
  %1575 = vmatpush1.msra.mxu0 0.0
  %1576 = vmatprep.subr.mxu0 0.0
  %1577 = vmatpush1.msra.mxu0 0.0
  %1578 = vmatprep.subr.mxu0 0.0
  %1579 = vmatpush1.msra.mxu0 0.0
  %1580 = vmatprep.subr.mxu0 0.0
  %1581 = vmatpush1.msra.mxu0 0.0
  %1582 = vmatprep.subr.mxu0 0.0
  %1583 = vmatpush1.msra.mxu0 0.0
  %1584 = vmatprep.subr.mxu0 0.0
  %1585 = vmatpush1.msra.mxu0 0.0
  %1586 = vmatprep.subr.mxu0 0.0
  %1587 = vmatpush1.msra.mxu0 0.0
  %1588 = vmatprep.subr.mxu0 0.0
  %1589 = vmatpush1.msra.mxu0 0.0
  %1590 = vmatprep.subr.mxu0 0.0
  %1591 = vmatpush1.msra.mxu0 0.0
  %1592 = vmatprep.subr.mxu0 0.0
  %1593 = vmatpush1.msra.mxu0 0.0
  %1594 = vmatprep.subr.mxu0 0.0
  %1595 = vmatpush1.msra.mxu0 0.0
  %1596 = vmatprep.subr.mxu0 0.0
  %1597 = vmatpush1.msra.mxu0 0.0
  %1598 = vmatprep.subr.mxu0 0.0
  %1599 = vmatpush1.msra.mxu0 0.0
  %1600 = vmatprep.subr.mxu0 0.0
  %1601 = vmatpush1.msra.mxu0 0.0
  %1602 = vmatprep.subr.mxu0 0.0
  %1603 = vmatpush1.msra.mxu0 0.0
  %1604 = vmatprep.subr.mxu0 0.0
  %1605 = vmatpush1.msra.mxu0 0.0
  %1606 = vmatprep.subr.mxu0 0.0
  %1607 = vmatpush1.msra.mxu0 0.0
  %1608 = vmatprep.subr.mxu0 0.0
  %1609 = vmatpush1.msra.mxu0 0.0
  %1610 = vmatprep.subr.mxu0 0.0
  %1611 = vmatpush1.msra.mxu0 0.0
  %1612 = vmatprep.subr.mxu0 0.0
  %1613 = vmatpush1.msra.mxu0 0.0
  %1614 = vmatprep.subr.mxu0 0.0
  %1615 = vmatpush1.msra.mxu0 0.0
  %1616 = vmatprep.subr.mxu0 0.0
  %1617 = vmatpush1.msra.mxu0 0.0
  %1618 = vmatprep.subr.mxu0 0.0
  %1619 = vmatpush1.msra.mxu0 0.0
  %1620 = vmatprep.subr.mxu0 0.0
  %1621 = vmatpush1.msra.mxu0 0.0
  %1622 = vmatprep.subr.mxu0 0.0
  %1623 = vmatpush1.msra.mxu0 0.0
  %1624 = vmatprep.subr.mxu0 0.0
  %1625 = vmatpush1.msra.mxu0 0.0
  %1626 = vmatprep.subr.mxu0 0.0
  %1627 = vmatpush1.msra.mxu0 0.0
  %1628 = vmatprep.subr.mxu0 0.0
  %1629 = vmatpush1.msra.mxu0 0.0
  %1630 = vmatprep.subr.mxu0 0.0
  %1631 = vmatpush1.msra.mxu0 0.0
  %1632 = vmatprep.subr.mxu0 0.0
  %1633 = vmatpush1.msra.mxu0 0.0
  %1634 = vmatprep.subr.mxu0 0.0
  %1635 = vmatpush1.msra.mxu0 0.0
  %1636 = vmatprep.mubr.f32.mxu0 0.0
  %1637 = vmatmul.mubr.f32.gmra.mrb[0].mxu0 %v1567
  %v1638 = vpop.f32.mrb[0].mxu0
  %v1639 = vadd.f32 0.0, %v1638
  %v1640 = vpop.f32.mrb[0].mxu0
  %1641 = vmatprep.mubr.f32.mxu0 0.0
  %1642 = vmatmul.mubr.f32.gmra.mrb[0].mxu0 %v1570
  %v1643 = vpop.f32.mrb[0].mxu0
  %v1644 = vadd.f32 0.0, %v1643
  %v1645 = vpop.f32.mrb[0].mxu0
  %1646 = vdwg.mxu0
  %v1647 = vadd.f32 %v1230, %v1639
  %v1648 = vadd.f32 %v1231, %v1644
  %1649 = vrot.lane.b32.xlu0 %v377, 104
  %v1650 = vpop.permute.xlu0 %1649
  %1651 = vrot.lane.b32.xlu0 %v377, 72
  %v1652 = vpop.permute.xlu0 %1651
  %v1653 = vsel %vm400, %v1650, 0
  %v1655 = vsel %vm400, %v1652, 0
  %1657 = vmatprep.subr.mxu0 0.0
  %1658 = vmatpush1.xpose.msra.mxu0 %v1655
  %1659 = vmatprep.subr.mxu0 0.0
  %1660 = vmatpush1.xpose.msra.mxu0 0.0
  %1661 = vmatprep.subr.mxu0 0.0
  %1662 = vmatpush1.xpose.msra.mxu0 0.0
  %1663 = vmatprep.subr.mxu0 0.0
  %1664 = vmatpush1.xpose.msra.mxu0 0.0
  %1665 = vmatprep.subr.mxu0 0.0
  %1666 = vmatpush1.xpose.msra.mxu0 0.0
  %1667 = vmatprep.subr.mxu0 0.0
  %1668 = vmatpush1.xpose.msra.mxu0 0.0
  %1669 = vmatprep.subr.mxu0 0.0
  %1670 = vmatpush1.xpose.msra.mxu0 0.0
  %1671 = vmatprep.subr.mxu0 0.0
  %1672 = vmatpush1.xpose.msra.mxu0 0.0
  %1673 = vmatprep.subr.mxu0 0.0
  %1674 = vmatpush1.xpose.msra.mxu0 0.0
  %1675 = vmatprep.subr.mxu0 0.0
  %1676 = vmatpush1.xpose.msra.mxu0 0.0
  %1677 = vmatprep.subr.mxu0 0.0
  %1678 = vmatpush1.xpose.msra.mxu0 0.0
  %1679 = vmatprep.subr.mxu0 0.0
  %1680 = vmatpush1.xpose.msra.mxu0 0.0
  %1681 = vmatprep.subr.mxu0 0.0
  %1682 = vmatpush1.xpose.msra.mxu0 0.0
  %1683 = vmatprep.subr.mxu0 0.0
  %1684 = vmatpush1.xpose.msra.mxu0 0.0
  %1685 = vmatprep.subr.mxu0 0.0
  %1686 = vmatpush1.xpose.msra.mxu0 0.0
  %1687 = vmatprep.subr.mxu0 0.0
  %1688 = vmatpush1.xpose.msra.mxu0 0.0
  %1689 = vmatprep.subr.mxu0 0.0
  %1690 = vmatpush1.xpose.msra.mxu0 0.0
  %1691 = vmatprep.subr.mxu0 0.0
  %1692 = vmatpush1.xpose.msra.mxu0 0.0
  %1693 = vmatprep.subr.mxu0 0.0
  %1694 = vmatpush1.xpose.msra.mxu0 0.0
  %1695 = vmatprep.subr.mxu0 0.0
  %1696 = vmatpush1.xpose.msra.mxu0 0.0
  %1697 = vmatprep.subr.mxu0 0.0
  %1698 = vmatpush1.xpose.msra.mxu0 0.0
  %1699 = vmatprep.subr.mxu0 0.0
  %1700 = vmatpush1.xpose.msra.mxu0 0.0
  %1701 = vmatprep.subr.mxu0 0.0
  %1702 = vmatpush1.xpose.msra.mxu0 0.0
  %1703 = vmatprep.subr.mxu0 0.0
  %1704 = vmatpush1.xpose.msra.mxu0 0.0
  %1705 = vmatprep.subr.mxu0 0.0
  %1706 = vmatpush1.xpose.msra.mxu0 0.0
  %1707 = vmatprep.subr.mxu0 0.0
  %1708 = vmatpush1.xpose.msra.mxu0 0.0
  %1709 = vmatprep.subr.mxu0 0.0
  %1710 = vmatpush1.xpose.msra.mxu0 0.0
  %1711 = vmatprep.subr.mxu0 0.0
  %1712 = vmatpush1.xpose.msra.mxu0 0.0
  %1713 = vmatprep.subr.mxu0 0.0
  %1714 = vmatpush1.xpose.msra.mxu0 0.0
  %1715 = vmatprep.subr.mxu0 0.0
  %1716 = vmatpush1.xpose.msra.mxu0 0.0
  %1717 = vmatprep.subr.mxu0 0.0
  %1718 = vmatpush1.xpose.msra.mxu0 0.0
  %1719 = vmatprep.subr.mxu0 0.0
  %1720 = vmatpush1.xpose.msra.mxu0 0.0
  %1721 = vmatprep.mubr.f32.mxu0 0.0
  %1722 = vmatmul.mubr.f32.gmra.mrb[0].mxu0 %v1653
  %v1723 = vpop.f32.mrb[0].mxu0
  %v1724 = vadd.f32 0.0, %v1723
  %v1725 = vpop.f32.mrb[0].mxu0
  %1726 = vdwg.mxu0
  %1727 = vrot.lane.b32.xlu0 %v382, 104
  %v1728 = vpop.permute.xlu0 %1727
  %1729 = vrot.lane.b32.xlu0 %v382, 72
  %v1730 = vpop.permute.xlu0 %1729
  %v1731 = vsel %vm400, %v1728, 0
  %v1733 = vsel %vm400, %v1730, 0
  %1735 = vmatprep.subr.mxu0 0.0
  %1736 = vmatpush1.xpose.msra.mxu0 %v1733
  %1737 = vmatprep.subr.mxu0 0.0
  %1738 = vmatpush1.xpose.msra.mxu0 0.0
  %1739 = vmatprep.subr.mxu0 0.0
  %1740 = vmatpush1.xpose.msra.mxu0 0.0
  %1741 = vmatprep.subr.mxu0 0.0
  %1742 = vmatpush1.xpose.msra.mxu0 0.0
  %1743 = vmatprep.subr.mxu0 0.0
  %1744 = vmatpush1.xpose.msra.mxu0 0.0
  %1745 = vmatprep.subr.mxu0 0.0
  %1746 = vmatpush1.xpose.msra.mxu0 0.0
  %1747 = vmatprep.subr.mxu0 0.0
  %1748 = vmatpush1.xpose.msra.mxu0 0.0
  %1749 = vmatprep.subr.mxu0 0.0
  %1750 = vmatpush1.xpose.msra.mxu0 0.0
  %1751 = vmatprep.subr.mxu0 0.0
  %1752 = vmatpush1.xpose.msra.mxu0 0.0
  %1753 = vmatprep.subr.mxu0 0.0
  %1754 = vmatpush1.xpose.msra.mxu0 0.0
  %1755 = vmatprep.subr.mxu0 0.0
  %1756 = vmatpush1.xpose.msra.mxu0 0.0
  %1757 = vmatprep.subr.mxu0 0.0
  %1758 = vmatpush1.xpose.msra.mxu0 0.0
  %1759 = vmatprep.subr.mxu0 0.0
  %1760 = vmatpush1.xpose.msra.mxu0 0.0
  %1761 = vmatprep.subr.mxu0 0.0
  %1762 = vmatpush1.xpose.msra.mxu0 0.0
  %1763 = vmatprep.subr.mxu0 0.0
  %1764 = vmatpush1.xpose.msra.mxu0 0.0
  %1765 = vmatprep.subr.mxu0 0.0
  %1766 = vmatpush1.xpose.msra.mxu0 0.0
  %1767 = vmatprep.subr.mxu0 0.0
  %1768 = vmatpush1.xpose.msra.mxu0 0.0
  %1769 = vmatprep.subr.mxu0 0.0
  %1770 = vmatpush1.xpose.msra.mxu0 0.0
  %1771 = vmatprep.subr.mxu0 0.0
  %1772 = vmatpush1.xpose.msra.mxu0 0.0
  %1773 = vmatprep.subr.mxu0 0.0
  %1774 = vmatpush1.xpose.msra.mxu0 0.0
  %1775 = vmatprep.subr.mxu0 0.0
  %1776 = vmatpush1.xpose.msra.mxu0 0.0
  %1777 = vmatprep.subr.mxu0 0.0
  %1778 = vmatpush1.xpose.msra.mxu0 0.0
  %1779 = vmatprep.subr.mxu0 0.0
  %1780 = vmatpush1.xpose.msra.mxu0 0.0
  %1781 = vmatprep.subr.mxu0 0.0
  %1782 = vmatpush1.xpose.msra.mxu0 0.0
  %1783 = vmatprep.subr.mxu0 0.0
  %1784 = vmatpush1.xpose.msra.mxu0 0.0
  %1785 = vmatprep.subr.mxu0 0.0
  %1786 = vmatpush1.xpose.msra.mxu0 0.0
  %1787 = vmatprep.subr.mxu0 0.0
  %1788 = vmatpush1.xpose.msra.mxu0 0.0
  %1789 = vmatprep.subr.mxu0 0.0
  %1790 = vmatpush1.xpose.msra.mxu0 0.0
  %1791 = vmatprep.subr.mxu0 0.0
  %1792 = vmatpush1.xpose.msra.mxu0 0.0
  %1793 = vmatprep.subr.mxu0 0.0
  %1794 = vmatpush1.xpose.msra.mxu0 0.0
  %1795 = vmatprep.subr.mxu0 0.0
  %1796 = vmatpush1.xpose.msra.mxu0 0.0
  %1797 = vmatprep.subr.mxu0 0.0
  %1798 = vmatpush1.xpose.msra.mxu0 0.0
  %1799 = vmatprep.mubr.f32.mxu0 0.0
  %1800 = vmatmul.mubr.f32.gmra.mrb[0].mxu0 %v1731
  %v1801 = vpop.f32.mrb[0].mxu0
  %v1802 = vadd.f32 0.0, %v1801
  %v1803 = vpop.f32.mrb[0].mxu0
  %1804 = vdwg.mxu0
  %v1805 = vmul.f32 %v1724, 0.35355338
  %v1806 = vmul.f32 %v1802, 0.35355338
  %v1807 = vsel %vm555, %v1805, -1e+30
  %v1808 = vsel %vm555, %v1806, -1e+30
  %v1809 = vsel %vm400, %v1807, -inf
  %1810 = vmax.xlane.f32.xlu0 %v1809
  %v1811 = vpop.xlane.xlu0 %1810
  %v1812 = vsel %vm400, %v1808, -inf
  %1813 = vmax.xlane.f32.xlu0 %v1812
  %v1814 = vpop.xlane.xlu0 %1813
  %v1815 = vsub.f32 %v1807, %v1811
  %v1816 = vsub.f32 %v1808, %v1814
  %v1817 = vmul.f32 %v1815, 1.442695
  %v1818 = vpow.pop %v1817
  %v1819 = vmul.f32 %v1816, 1.442695
  %v1820 = vpow.pop %v1819
  %v1821 = vsel %vm400, %v1818, 0.0
  %1822 = vadd.xlane.f32.xlu0 %v1821
  %v1823 = vpop.xlane.xlu0 %1822
  %v1824 = vsel %vm400, %v1820, 0.0
  %1825 = vadd.xlane.f32.xlu0 %v1824
  %v1826 = vpop.xlane.xlu0 %1825
  %v1827 = vrcp.pop %v1823
  %v1828 = vrcp.pop %v1826
  %v1829 = vmul.f32 %v1818, %v1827
  %v1830 = vmul.f32 %v1820, %v1828
  %1831 = vrot.lane.b32.xlu0 %v377, 40
  %v1832 = vpop.permute.xlu0 %1831
  %v1835 = vsel %vm400, %v1829, 0
  %1837 = vmatprep.subr.mxu0 0.0
  %1838 = vmatpush1.msra.mxu0 %v1832
  %1839 = vmatprep.subr.mxu0 0.0
  %1840 = vmatpush1.msra.mxu0 0.0
  %1841 = vmatprep.subr.mxu0 0.0
  %1842 = vmatpush1.msra.mxu0 0.0
  %1843 = vmatprep.subr.mxu0 0.0
  %1844 = vmatpush1.msra.mxu0 0.0
  %1845 = vmatprep.subr.mxu0 0.0
  %1846 = vmatpush1.msra.mxu0 0.0
  %1847 = vmatprep.subr.mxu0 0.0
  %1848 = vmatpush1.msra.mxu0 0.0
  %1849 = vmatprep.subr.mxu0 0.0
  %1850 = vmatpush1.msra.mxu0 0.0
  %1851 = vmatprep.subr.mxu0 0.0
  %1852 = vmatpush1.msra.mxu0 0.0
  %1853 = vmatprep.subr.mxu0 0.0
  %1854 = vmatpush1.msra.mxu0 0.0
  %1855 = vmatprep.subr.mxu0 0.0
  %1856 = vmatpush1.msra.mxu0 0.0
  %1857 = vmatprep.subr.mxu0 0.0
  %1858 = vmatpush1.msra.mxu0 0.0
  %1859 = vmatprep.subr.mxu0 0.0
  %1860 = vmatpush1.msra.mxu0 0.0
  %1861 = vmatprep.subr.mxu0 0.0
  %1862 = vmatpush1.msra.mxu0 0.0
  %1863 = vmatprep.subr.mxu0 0.0
  %1864 = vmatpush1.msra.mxu0 0.0
  %1865 = vmatprep.subr.mxu0 0.0
  %1866 = vmatpush1.msra.mxu0 0.0
  %1867 = vmatprep.subr.mxu0 0.0
  %1868 = vmatpush1.msra.mxu0 0.0
  %1869 = vmatprep.subr.mxu0 0.0
  %1870 = vmatpush1.msra.mxu0 0.0
  %1871 = vmatprep.subr.mxu0 0.0
  %1872 = vmatpush1.msra.mxu0 0.0
  %1873 = vmatprep.subr.mxu0 0.0
  %1874 = vmatpush1.msra.mxu0 0.0
  %1875 = vmatprep.subr.mxu0 0.0
  %1876 = vmatpush1.msra.mxu0 0.0
  %1877 = vmatprep.subr.mxu0 0.0
  %1878 = vmatpush1.msra.mxu0 0.0
  %1879 = vmatprep.subr.mxu0 0.0
  %1880 = vmatpush1.msra.mxu0 0.0
  %1881 = vmatprep.subr.mxu0 0.0
  %1882 = vmatpush1.msra.mxu0 0.0
  %1883 = vmatprep.subr.mxu0 0.0
  %1884 = vmatpush1.msra.mxu0 0.0
  %1885 = vmatprep.subr.mxu0 0.0
  %1886 = vmatpush1.msra.mxu0 0.0
  %1887 = vmatprep.subr.mxu0 0.0
  %1888 = vmatpush1.msra.mxu0 0.0
  %1889 = vmatprep.subr.mxu0 0.0
  %1890 = vmatpush1.msra.mxu0 0.0
  %1891 = vmatprep.subr.mxu0 0.0
  %1892 = vmatpush1.msra.mxu0 0.0
  %1893 = vmatprep.subr.mxu0 0.0
  %1894 = vmatpush1.msra.mxu0 0.0
  %1895 = vmatprep.subr.mxu0 0.0
  %1896 = vmatpush1.msra.mxu0 0.0
  %1897 = vmatprep.subr.mxu0 0.0
  %1898 = vmatpush1.msra.mxu0 0.0
  %1899 = vmatprep.subr.mxu0 0.0
  %1900 = vmatpush1.msra.mxu0 0.0
  %1901 = vmatprep.mubr.f32.mxu0 0.0
  %1902 = vmatmul.mubr.f32.gmra.mrb[0].mxu0 %v1835
  %v1903 = vpop.f32.mrb[0].mxu0
  %v1904 = vadd.f32 0.0, %v1903
  %v1905 = vpop.f32.mrb[0].mxu0
  %1906 = vdwg.mxu0
  %1907 = vrot.lane.b32.xlu0 %v382, 40
  %v1908 = vpop.permute.xlu0 %1907
  %v1911 = vsel %vm400, %v1830, 0
  %1913 = vmatprep.subr.mxu0 0.0
  %1914 = vmatpush1.msra.mxu0 %v1908
  %1915 = vmatprep.subr.mxu0 0.0
  %1916 = vmatpush1.msra.mxu0 0.0
  %1917 = vmatprep.subr.mxu0 0.0
  %1918 = vmatpush1.msra.mxu0 0.0
  %1919 = vmatprep.subr.mxu0 0.0
  %1920 = vmatpush1.msra.mxu0 0.0
  %1921 = vmatprep.subr.mxu0 0.0
  %1922 = vmatpush1.msra.mxu0 0.0
  %1923 = vmatprep.subr.mxu0 0.0
  %1924 = vmatpush1.msra.mxu0 0.0
  %1925 = vmatprep.subr.mxu0 0.0
  %1926 = vmatpush1.msra.mxu0 0.0
  %1927 = vmatprep.subr.mxu0 0.0
  %1928 = vmatpush1.msra.mxu0 0.0
  %1929 = vmatprep.subr.mxu0 0.0
  %1930 = vmatpush1.msra.mxu0 0.0
  %1931 = vmatprep.subr.mxu0 0.0
  %1932 = vmatpush1.msra.mxu0 0.0
  %1933 = vmatprep.subr.mxu0 0.0
  %1934 = vmatpush1.msra.mxu0 0.0
  %1935 = vmatprep.subr.mxu0 0.0
  %1936 = vmatpush1.msra.mxu0 0.0
  %1937 = vmatprep.subr.mxu0 0.0
  %1938 = vmatpush1.msra.mxu0 0.0
  %1939 = vmatprep.subr.mxu0 0.0
  %1940 = vmatpush1.msra.mxu0 0.0
  %1941 = vmatprep.subr.mxu0 0.0
  %1942 = vmatpush1.msra.mxu0 0.0
  %1943 = vmatprep.subr.mxu0 0.0
  %1944 = vmatpush1.msra.mxu0 0.0
  %1945 = vmatprep.subr.mxu0 0.0
  %1946 = vmatpush1.msra.mxu0 0.0
  %1947 = vmatprep.subr.mxu0 0.0
  %1948 = vmatpush1.msra.mxu0 0.0
  %1949 = vmatprep.subr.mxu0 0.0
  %1950 = vmatpush1.msra.mxu0 0.0
  %1951 = vmatprep.subr.mxu0 0.0
  %1952 = vmatpush1.msra.mxu0 0.0
  %1953 = vmatprep.subr.mxu0 0.0
  %1954 = vmatpush1.msra.mxu0 0.0
  %1955 = vmatprep.subr.mxu0 0.0
  %1956 = vmatpush1.msra.mxu0 0.0
  %1957 = vmatprep.subr.mxu0 0.0
  %1958 = vmatpush1.msra.mxu0 0.0
  %1959 = vmatprep.subr.mxu0 0.0
  %1960 = vmatpush1.msra.mxu0 0.0
  %1961 = vmatprep.subr.mxu0 0.0
  %1962 = vmatpush1.msra.mxu0 0.0
  %1963 = vmatprep.subr.mxu0 0.0
  %1964 = vmatpush1.msra.mxu0 0.0
  %1965 = vmatprep.subr.mxu0 0.0
  %1966 = vmatpush1.msra.mxu0 0.0
  %1967 = vmatprep.subr.mxu0 0.0
  %1968 = vmatpush1.msra.mxu0 0.0
  %1969 = vmatprep.subr.mxu0 0.0
  %1970 = vmatpush1.msra.mxu0 0.0
  %1971 = vmatprep.subr.mxu0 0.0
  %1972 = vmatpush1.msra.mxu0 0.0
  %1973 = vmatprep.subr.mxu0 0.0
  %1974 = vmatpush1.msra.mxu0 0.0
  %1975 = vmatprep.subr.mxu0 0.0
  %1976 = vmatpush1.msra.mxu0 0.0
  %1977 = vmatprep.mubr.f32.mxu0 0.0
  %1978 = vmatmul.mubr.f32.gmra.mrb[0].mxu0 %v1911
  %v1979 = vpop.f32.mrb[0].mxu0
  %v1980 = vadd.f32 0.0, %v1979
  %v1981 = vpop.f32.mrb[0].mxu0
  %1982 = vdwg.mxu0
  %v1984 = vsel %vm400, %v1904, 0
  %v1987 = vsel %vm400, %v1980, 0
  %1989 = vmatprep.subr.mxu0 0.0
  %1990 = vmatpush1.msra.mxu0 %v234
  %1991 = vmatprep.subr.mxu0 0.0
  %1992 = vmatpush1.msra.mxu0 0.0
  %1993 = vmatprep.subr.mxu0 0.0
  %1994 = vmatpush1.msra.mxu0 0.0
  %1995 = vmatprep.subr.mxu0 0.0
  %1996 = vmatpush1.msra.mxu0 0.0
  %1997 = vmatprep.subr.mxu0 0.0
  %1998 = vmatpush1.msra.mxu0 0.0
  %1999 = vmatprep.subr.mxu0 0.0
  %2000 = vmatpush1.msra.mxu0 0.0
  %2001 = vmatprep.subr.mxu0 0.0
  %2002 = vmatpush1.msra.mxu0 0.0
  %2003 = vmatprep.subr.mxu0 0.0
  %2004 = vmatpush1.msra.mxu0 0.0
  %2005 = vmatprep.subr.mxu0 0.0
  %2006 = vmatpush1.msra.mxu0 0.0
  %2007 = vmatprep.subr.mxu0 0.0
  %2008 = vmatpush1.msra.mxu0 0.0
  %2009 = vmatprep.subr.mxu0 0.0
  %2010 = vmatpush1.msra.mxu0 0.0
  %2011 = vmatprep.subr.mxu0 0.0
  %2012 = vmatpush1.msra.mxu0 0.0
  %2013 = vmatprep.subr.mxu0 0.0
  %2014 = vmatpush1.msra.mxu0 0.0
  %2015 = vmatprep.subr.mxu0 0.0
  %2016 = vmatpush1.msra.mxu0 0.0
  %2017 = vmatprep.subr.mxu0 0.0
  %2018 = vmatpush1.msra.mxu0 0.0
  %2019 = vmatprep.subr.mxu0 0.0
  %2020 = vmatpush1.msra.mxu0 0.0
  %2021 = vmatprep.subr.mxu0 0.0
  %2022 = vmatpush1.msra.mxu0 0.0
  %2023 = vmatprep.subr.mxu0 0.0
  %2024 = vmatpush1.msra.mxu0 0.0
  %2025 = vmatprep.subr.mxu0 0.0
  %2026 = vmatpush1.msra.mxu0 0.0
  %2027 = vmatprep.subr.mxu0 0.0
  %2028 = vmatpush1.msra.mxu0 0.0
  %2029 = vmatprep.subr.mxu0 0.0
  %2030 = vmatpush1.msra.mxu0 0.0
  %2031 = vmatprep.subr.mxu0 0.0
  %2032 = vmatpush1.msra.mxu0 0.0
  %2033 = vmatprep.subr.mxu0 0.0
  %2034 = vmatpush1.msra.mxu0 0.0
  %2035 = vmatprep.subr.mxu0 0.0
  %2036 = vmatpush1.msra.mxu0 0.0
  %2037 = vmatprep.subr.mxu0 0.0
  %2038 = vmatpush1.msra.mxu0 0.0
  %2039 = vmatprep.subr.mxu0 0.0
  %2040 = vmatpush1.msra.mxu0 0.0
  %2041 = vmatprep.subr.mxu0 0.0
  %2042 = vmatpush1.msra.mxu0 0.0
  %2043 = vmatprep.subr.mxu0 0.0
  %2044 = vmatpush1.msra.mxu0 0.0
  %2045 = vmatprep.subr.mxu0 0.0
  %2046 = vmatpush1.msra.mxu0 0.0
  %2047 = vmatprep.subr.mxu0 0.0
  %2048 = vmatpush1.msra.mxu0 0.0
  %2049 = vmatprep.subr.mxu0 0.0
  %2050 = vmatpush1.msra.mxu0 0.0
  %2051 = vmatprep.subr.mxu0 0.0
  %2052 = vmatpush1.msra.mxu0 0.0
  %2053 = vmatprep.mubr.f32.mxu0 0.0
  %2054 = vmatmul.mubr.f32.gmra.mrb[0].mxu0 %v1984
  %v2055 = vpop.f32.mrb[0].mxu0
  %v2056 = vadd.f32 0.0, %v2055
  %v2057 = vpop.f32.mrb[0].mxu0
  %2058 = vmatprep.mubr.f32.mxu0 0.0
  %2059 = vmatmul.mubr.f32.gmra.mrb[0].mxu0 %v1987
  %v2060 = vpop.f32.mrb[0].mxu0
  %v2061 = vadd.f32 0.0, %v2060
  %v2062 = vpop.f32.mrb[0].mxu0
  %2063 = vdwg.mxu0
  %v2064 = vadd.f32 %v1647, %v2056
  %v2065 = vadd.f32 %v1648, %v2061
  %v2066 = vadd.f32 %v223, %v2064
  %v2067 = vadd.f32 %v224, %v2065
  %v2068 = vsel %vm260, %v2066, 0.0
  %2069 = vadd.xlane.f32.xlu0 %v2068
  %v2070 = vpop.xlane.xlu0 %2069
  %v2071 = vsel %vm260, %v2067, 0.0
  %2072 = vadd.xlane.f32.xlu0 %v2071
  %v2073 = vpop.xlane.xlu0 %2072
  %v2074 = vmul.f32 %v2070, %v267
  %v2075 = vmul.f32 %v2073, %v267
  %v2076 = vsub.f32 %v2066, %v2074
  %v2077 = vsub.f32 %v2067, %v2075
  %v2078 = vmul.f32 %v2076, %v2076
  %v2079 = vmul.f32 %v2077, %v2077
  %v2080 = vsel %vm260, %v2078, 0.0
  %2081 = vadd.xlane.f32.xlu0 %v2080
  %v2082 = vpop.xlane.xlu0 %2081
  %v2083 = vsel %vm260, %v2079, 0.0
  %2084 = vadd.xlane.f32.xlu0 %v2083
  %v2085 = vpop.xlane.xlu0 %2084
  %v2086 = vmul.f32 %v2082, %v267
  %v2087 = vmul.f32 %v2085, %v267
  %v2088 = vadd.f32 %v2086, 1e-05
  %v2089 = vadd.f32 %v2087, 1e-05
  %v2090 = vrsqrt.pop %v2088
  %v2091 = vrsqrt.pop %v2089
  %v2092 = vmul.f32 %v2076, %v2090
  %v2093 = vmul.f32 %v2077, %v2091
  %v2095 = vlaneseq
  %v2096 = vshrl.u32 %v2095, 7
  %v2097 = vsub.s32 0, %v2096
  %v2098 = vrot.slane %v236, %v2097
  %v2100 = vmul.f32 %v2092, %v2098
  %v2101 = vmul.f32 %v2093, %v2098
  %v2103 = vlaneseq
  %v2104 = vshrl.u32 %v2103, 7
  %v2105 = vsub.s32 0, %v2104
  %v2106 = vrot.slane %v237, %v2105
  %v2108 = vadd.f32 %v2100, %v2106
  %v2109 = vadd.f32 %v2101, %v2106
  %v2111 = vlaneseq
  %v2112 = vshrl.u32 %v2111, 7
  %v2113 = vsub.s32 0, %v2112
  %v2114 = vrot.slane %v242, %v2113
  %v2117 = vsel %vm260, %v2108, 0
  %v2120 = vsel %vm260, %v2109, 0
  %2122 = vmatprep.subr.mxu0 0.0
  %2123 = vmatpush1.msra.mxu0 %v238
  %2124 = vmatprep.subr.mxu0 0.0
  %2125 = vmatpush1.msra.mxu0 %v239
  %2126 = vmatprep.subr.mxu0 0.0
  %2127 = vmatpush1.msra.mxu0 %v240
  %2128 = vmatprep.subr.mxu0 0.0
  %2129 = vmatpush1.msra.mxu0 %v241
  %2130 = vmatprep.subr.mxu0 0.0
  %2131 = vmatpush1.msra.mxu0 0.0
  %2132 = vmatprep.subr.mxu0 0.0
  %2133 = vmatpush1.msra.mxu0 0.0
  %2134 = vmatprep.subr.mxu0 0.0
  %2135 = vmatpush1.msra.mxu0 0.0
  %2136 = vmatprep.subr.mxu0 0.0
  %2137 = vmatpush1.msra.mxu0 0.0
  %2138 = vmatprep.subr.mxu0 0.0
  %2139 = vmatpush1.msra.mxu0 0.0
  %2140 = vmatprep.subr.mxu0 0.0
  %2141 = vmatpush1.msra.mxu0 0.0
  %2142 = vmatprep.subr.mxu0 0.0
  %2143 = vmatpush1.msra.mxu0 0.0
  %2144 = vmatprep.subr.mxu0 0.0
  %2145 = vmatpush1.msra.mxu0 0.0
  %2146 = vmatprep.subr.mxu0 0.0
  %2147 = vmatpush1.msra.mxu0 0.0
  %2148 = vmatprep.subr.mxu0 0.0
  %2149 = vmatpush1.msra.mxu0 0.0
  %2150 = vmatprep.subr.mxu0 0.0
  %2151 = vmatpush1.msra.mxu0 0.0
  %2152 = vmatprep.subr.mxu0 0.0
  %2153 = vmatpush1.msra.mxu0 0.0
  %2154 = vmatprep.subr.mxu0 0.0
  %2155 = vmatpush1.msra.mxu0 0.0
  %2156 = vmatprep.subr.mxu0 0.0
  %2157 = vmatpush1.msra.mxu0 0.0
  %2158 = vmatprep.subr.mxu0 0.0
  %2159 = vmatpush1.msra.mxu0 0.0
  %2160 = vmatprep.subr.mxu0 0.0
  %2161 = vmatpush1.msra.mxu0 0.0
  %2162 = vmatprep.subr.mxu0 0.0
  %2163 = vmatpush1.msra.mxu0 0.0
  %2164 = vmatprep.subr.mxu0 0.0
  %2165 = vmatpush1.msra.mxu0 0.0
  %2166 = vmatprep.subr.mxu0 0.0
  %2167 = vmatpush1.msra.mxu0 0.0
  %2168 = vmatprep.subr.mxu0 0.0
  %2169 = vmatpush1.msra.mxu0 0.0
  %2170 = vmatprep.subr.mxu0 0.0
  %2171 = vmatpush1.msra.mxu0 0.0
  %2172 = vmatprep.subr.mxu0 0.0
  %2173 = vmatpush1.msra.mxu0 0.0
  %2174 = vmatprep.subr.mxu0 0.0
  %2175 = vmatpush1.msra.mxu0 0.0
  %2176 = vmatprep.subr.mxu0 0.0
  %2177 = vmatpush1.msra.mxu0 0.0
  %2178 = vmatprep.subr.mxu0 0.0
  %2179 = vmatpush1.msra.mxu0 0.0
  %2180 = vmatprep.subr.mxu0 0.0
  %2181 = vmatpush1.msra.mxu0 0.0
  %2182 = vmatprep.subr.mxu0 0.0
  %2183 = vmatpush1.msra.mxu0 0.0
  %2184 = vmatprep.subr.mxu0 0.0
  %2185 = vmatpush1.msra.mxu0 0.0
  %2186 = vmatprep.mubr.f32.mxu0 0.0
  %2187 = vmatmul.mubr.f32.gmra.mrb[0].mxu0 %v2117
  %v2188 = vpop.f32.mrb[0].mxu0
  %v2189 = vadd.f32 %v2114, %v2188
  %v2190 = vpop.f32.mrb[0].mxu0
  %2191 = vmatprep.mubr.f32.mxu0 0.0
  %2192 = vmatmul.mubr.f32.gmra.mrb[0].mxu0 %v2120
  %v2193 = vpop.f32.mrb[0].mxu0
  %v2194 = vadd.f32 %v2114, %v2193
  %v2195 = vpop.f32.mrb[0].mxu0
  %2196 = vdwg.mxu0
  %v2197 = vmax.f32 %v2189, 0.0
  %v2198 = vmax.f32 %v2194, 0.0
  %2199 = vmatprep.subr.mxu0 0.0
  %2200 = vmatpush1.msra.mxu0 %v243
  %2201 = vmatprep.subr.mxu0 0.0
  %2202 = vmatpush1.msra.mxu0 %v244
  %2203 = vmatprep.subr.mxu0 0.0
  %2204 = vmatpush1.msra.mxu0 %v245
  %2205 = vmatprep.subr.mxu0 0.0
  %2206 = vmatpush1.msra.mxu0 %v246
  %2207 = vmatprep.subr.mxu0 0.0
  %2208 = vmatpush1.msra.mxu0 %v247
  %2209 = vmatprep.subr.mxu0 0.0
  %2210 = vmatpush1.msra.mxu0 %v248
  %2211 = vmatprep.subr.mxu0 0.0
  %2212 = vmatpush1.msra.mxu0 %v249
  %2213 = vmatprep.subr.mxu0 0.0
  %2214 = vmatpush1.msra.mxu0 %v250
  %2215 = vmatprep.subr.mxu0 0.0
  %2216 = vmatpush1.msra.mxu0 %v251
  %2217 = vmatprep.subr.mxu0 0.0
  %2218 = vmatpush1.msra.mxu0 %v252
  %2219 = vmatprep.subr.mxu0 0.0
  %2220 = vmatpush1.msra.mxu0 %v253
  %2221 = vmatprep.subr.mxu0 0.0
  %2222 = vmatpush1.msra.mxu0 %v254
  %2223 = vmatprep.subr.mxu0 0.0
  %2224 = vmatpush1.msra.mxu0 %v255
  %2225 = vmatprep.subr.mxu0 0.0
  %2226 = vmatpush1.msra.mxu0 %v256
  %2227 = vmatprep.subr.mxu0 0.0
  %2228 = vmatpush1.msra.mxu0 %v257
  %2229 = vmatprep.subr.mxu0 0.0
  %2230 = vmatpush1.msra.mxu0 %v258
  %2231 = vmatprep.subr.mxu0 0.0
  %2232 = vmatpush1.msra.mxu0 0.0
  %2233 = vmatprep.subr.mxu0 0.0
  %2234 = vmatpush1.msra.mxu0 0.0
  %2235 = vmatprep.subr.mxu0 0.0
  %2236 = vmatpush1.msra.mxu0 0.0
  %2237 = vmatprep.subr.mxu0 0.0
  %2238 = vmatpush1.msra.mxu0 0.0
  %2239 = vmatprep.subr.mxu0 0.0
  %2240 = vmatpush1.msra.mxu0 0.0
  %2241 = vmatprep.subr.mxu0 0.0
  %2242 = vmatpush1.msra.mxu0 0.0
  %2243 = vmatprep.subr.mxu0 0.0
  %2244 = vmatpush1.msra.mxu0 0.0
  %2245 = vmatprep.subr.mxu0 0.0
  %2246 = vmatpush1.msra.mxu0 0.0
  %2247 = vmatprep.subr.mxu0 0.0
  %2248 = vmatpush1.msra.mxu0 0.0
  %2249 = vmatprep.subr.mxu0 0.0
  %2250 = vmatpush1.msra.mxu0 0.0
  %2251 = vmatprep.subr.mxu0 0.0
  %2252 = vmatpush1.msra.mxu0 0.0
  %2253 = vmatprep.subr.mxu0 0.0
  %2254 = vmatpush1.msra.mxu0 0.0
  %2255 = vmatprep.subr.mxu0 0.0
  %2256 = vmatpush1.msra.mxu0 0.0
  %2257 = vmatprep.subr.mxu0 0.0
  %2258 = vmatpush1.msra.mxu0 0.0
  %2259 = vmatprep.subr.mxu0 0.0
  %2260 = vmatpush1.msra.mxu0 0.0
  %2261 = vmatprep.subr.mxu0 0.0
  %2262 = vmatpush1.msra.mxu0 0.0
  %2263 = vmatprep.mubr.f32.mxu0 0.0
  %2264 = vmatmul.mubr.f32.gmra.mrb[0].mxu0 %v2197
  %v2265 = vpop.f32.mrb[0].mxu0
  %v2266 = vadd.f32 0.0, %v2265
  %v2267 = vpop.f32.mrb[0].mxu0
  %2268 = vmatprep.mubr.f32.mxu0 0.0
  %2269 = vmatmul.mubr.f32.gmra.mrb[0].mxu0 %v2198
  %v2270 = vpop.f32.mrb[0].mxu0
  %v2271 = vadd.f32 0.0, %v2270
  %v2272 = vpop.f32.mrb[0].mxu0
  %2273 = vdwg.mxu0
  %v2274 = vadd.f32 %v2066, %v2266
  %v2275 = vadd.f32 %v2067, %v2271
  %v2277 = vlaneseq
  %v2278 = vshrl.u32 %v2277, 7
  %v2279 = vsub.s32 0, %v2278
  %v2280 = vrot.slane %v259, %v2279
  %v2282 = vadd.f32 %v2274, %v2280
  %v2283 = vadd.f32 %v2275, %v2280
  %v2284 = vld [vmem:[%s29] sm:$0x1]
  %v2285 = vld [vmem:[%s31] sm:$0x1]
  %v2286 = vld [vmem:[%s33] sm:$0xff]
  %v2287 = vld [vmem:[%s33 + $0x8] sm:$0xff]
  %v2288 = vld [vmem:[%s33 + $0x10] sm:$0xff]
  %v2289 = vld [vmem:[%s33 + $0x18] sm:$0xff]
  %v2290 = vld [vmem:[%s35] sm:$0xff]
  %v2291 = vld [vmem:[%s35 + $0x8] sm:$0xff]
  %v2292 = vld [vmem:[%s35 + $0x10] sm:$0xff]
  %v2293 = vld [vmem:[%s35 + $0x18] sm:$0xff]
  %v2294 = vld [vmem:[%s37] sm:$0x1]
  %v2295 = vld [vmem:[%s39] sm:$0x1]
  %v2296 = vld [vmem:[%s41] sm:$0x1]
  %v2297 = vld [vmem:[%s43] sm:$0xff]
  %v2298 = vld [vmem:[%s43 + $0x8] sm:$0xff]
  %v2299 = vld [vmem:[%s43 + $0x10] sm:$0xff]
  %v2300 = vld [vmem:[%s43 + $0x18] sm:$0xff]
  %v2301 = vld [vmem:[%s45] sm:$0x1]
  %v2302 = vld [vmem:[%s47] sm:$0xff]
  %v2303 = vld [vmem:[%s47 + $0x8] sm:$0xff]
  %v2304 = vld [vmem:[%s47 + $0x10] sm:$0xff]
  %v2305 = vld [vmem:[%s47 + $0x18] sm:$0xff]
  %v2306 = vld [vmem:[%s47 + $0x20] sm:$0xff]
  %v2307 = vld [vmem:[%s47 + $0x28] sm:$0xff]
  %v2308 = vld [vmem:[%s47 + $0x30] sm:$0xff]
  %v2309 = vld [vmem:[%s47 + $0x38] sm:$0xff]
  %v2310 = vld [vmem:[%s47 + $0x40] sm:$0xff]
  %v2311 = vld [vmem:[%s47 + $0x48] sm:$0xff]
  %v2312 = vld [vmem:[%s47 + $0x50] sm:$0xff]
  %v2313 = vld [vmem:[%s47 + $0x58] sm:$0xff]
  %v2314 = vld [vmem:[%s47 + $0x60] sm:$0xff]
  %v2315 = vld [vmem:[%s47 + $0x68] sm:$0xff]
  %v2316 = vld [vmem:[%s47 + $0x70] sm:$0xff]
  %v2317 = vld [vmem:[%s47 + $0x78] sm:$0xff]
  %v2318 = vld [vmem:[%s49] sm:$0x1]
  %v2319 = vsel %vm260, %v2282, 0.0
  %2320 = vadd.xlane.f32.xlu0 %v2319
  %v2321 = vpop.xlane.xlu0 %2320
  %v2322 = vsel %vm260, %v2283, 0.0
  %2323 = vadd.xlane.f32.xlu0 %v2322
  %v2324 = vpop.xlane.xlu0 %2323
  %v2325 = vmul.f32 %v2321, %v267
  %v2326 = vmul.f32 %v2324, %v267
  %v2327 = vsub.f32 %v2282, %v2325
  %v2328 = vsub.f32 %v2283, %v2326
  %v2329 = vmul.f32 %v2327, %v2327
  %v2330 = vmul.f32 %v2328, %v2328
  %v2331 = vsel %vm260, %v2329, 0.0
  %2332 = vadd.xlane.f32.xlu0 %v2331
  %v2333 = vpop.xlane.xlu0 %2332
  %v2334 = vsel %vm260, %v2330, 0.0
  %2335 = vadd.xlane.f32.xlu0 %v2334
  %v2336 = vpop.xlane.xlu0 %2335
  %v2337 = vmul.f32 %v2333, %v267
  %v2338 = vmul.f32 %v2336, %v267
  %v2339 = vadd.f32 %v2337, 1e-05
  %v2340 = vadd.f32 %v2338, 1e-05
  %v2341 = vrsqrt.pop %v2339
  %v2342 = vrsqrt.pop %v2340
  %v2343 = vmul.f32 %v2327, %v2341
  %v2344 = vmul.f32 %v2328, %v2342
  %v2346 = vlaneseq
  %v2347 = vshrl.u32 %v2346, 7
  %v2348 = vsub.s32 0, %v2347
  %v2349 = vrot.slane %v2284, %v2348
  %v2351 = vmul.f32 %v2343, %v2349
  %v2352 = vmul.f32 %v2344, %v2349
  %v2354 = vlaneseq
  %v2355 = vshrl.u32 %v2354, 7
  %v2356 = vsub.s32 0, %v2355
  %v2357 = vrot.slane %v2285, %v2356
  %v2359 = vadd.f32 %v2351, %v2357
  %v2360 = vadd.f32 %v2352, %v2357
  %v2362 = vsel %vm260, %v2359, 0
  %v2365 = vsel %vm260, %v2360, 0
  %2367 = vmatprep.subr.mxu0 0.0
  %2368 = vmatpush1.msra.mxu0 %v2286
  %2369 = vmatprep.subr.mxu0 0.0
  %2370 = vmatpush1.msra.mxu0 %v2287
  %2371 = vmatprep.subr.mxu0 0.0
  %2372 = vmatpush1.msra.mxu0 %v2288
  %2373 = vmatprep.subr.mxu0 0.0
  %2374 = vmatpush1.msra.mxu0 %v2289
  %2375 = vmatprep.subr.mxu0 0.0
  %2376 = vmatpush1.msra.mxu0 0.0
  %2377 = vmatprep.subr.mxu0 0.0
  %2378 = vmatpush1.msra.mxu0 0.0
  %2379 = vmatprep.subr.mxu0 0.0
  %2380 = vmatpush1.msra.mxu0 0.0
  %2381 = vmatprep.subr.mxu0 0.0
  %2382 = vmatpush1.msra.mxu0 0.0
  %2383 = vmatprep.subr.mxu0 0.0
  %2384 = vmatpush1.msra.mxu0 0.0
  %2385 = vmatprep.subr.mxu0 0.0
  %2386 = vmatpush1.msra.mxu0 0.0
  %2387 = vmatprep.subr.mxu0 0.0
  %2388 = vmatpush1.msra.mxu0 0.0
  %2389 = vmatprep.subr.mxu0 0.0
  %2390 = vmatpush1.msra.mxu0 0.0
  %2391 = vmatprep.subr.mxu0 0.0
  %2392 = vmatpush1.msra.mxu0 0.0
  %2393 = vmatprep.subr.mxu0 0.0
  %2394 = vmatpush1.msra.mxu0 0.0
  %2395 = vmatprep.subr.mxu0 0.0
  %2396 = vmatpush1.msra.mxu0 0.0
  %2397 = vmatprep.subr.mxu0 0.0
  %2398 = vmatpush1.msra.mxu0 0.0
  %2399 = vmatprep.subr.mxu0 0.0
  %2400 = vmatpush1.msra.mxu0 0.0
  %2401 = vmatprep.subr.mxu0 0.0
  %2402 = vmatpush1.msra.mxu0 0.0
  %2403 = vmatprep.subr.mxu0 0.0
  %2404 = vmatpush1.msra.mxu0 0.0
  %2405 = vmatprep.subr.mxu0 0.0
  %2406 = vmatpush1.msra.mxu0 0.0
  %2407 = vmatprep.subr.mxu0 0.0
  %2408 = vmatpush1.msra.mxu0 0.0
  %2409 = vmatprep.subr.mxu0 0.0
  %2410 = vmatpush1.msra.mxu0 0.0
  %2411 = vmatprep.subr.mxu0 0.0
  %2412 = vmatpush1.msra.mxu0 0.0
  %2413 = vmatprep.subr.mxu0 0.0
  %2414 = vmatpush1.msra.mxu0 0.0
  %2415 = vmatprep.subr.mxu0 0.0
  %2416 = vmatpush1.msra.mxu0 0.0
  %2417 = vmatprep.subr.mxu0 0.0
  %2418 = vmatpush1.msra.mxu0 0.0
  %2419 = vmatprep.subr.mxu0 0.0
  %2420 = vmatpush1.msra.mxu0 0.0
  %2421 = vmatprep.subr.mxu0 0.0
  %2422 = vmatpush1.msra.mxu0 0.0
  %2423 = vmatprep.subr.mxu0 0.0
  %2424 = vmatpush1.msra.mxu0 0.0
  %2425 = vmatprep.subr.mxu0 0.0
  %2426 = vmatpush1.msra.mxu0 0.0
  %2427 = vmatprep.subr.mxu0 0.0
  %2428 = vmatpush1.msra.mxu0 0.0
  %2429 = vmatprep.subr.mxu0 0.0
  %2430 = vmatpush1.msra.mxu0 0.0
  %2431 = vmatprep.mubr.f32.mxu0 0.0
  %2432 = vmatmul.mubr.f32.gmra.mrb[0].mxu0 %v2362
  %v2433 = vpop.f32.mrb[0].mxu0
  %v2434 = vadd.f32 0.0, %v2433
  %v2435 = vpop.f32.mrb[0].mxu0
  %2436 = vmatprep.mubr.f32.mxu0 0.0
  %2437 = vmatmul.mubr.f32.gmra.mrb[0].mxu0 %v2365
  %v2438 = vpop.f32.mrb[0].mxu0
  %v2439 = vadd.f32 0.0, %v2438
  %v2440 = vpop.f32.mrb[0].mxu0
  %2441 = vdwg.mxu0
  %v2443 = vlaneseq
  %v2444 = vshrl.u32 %v2443, 7
  %v2445 = vsub.s32 0, %v2444
  %v2446 = vrot.slane %v2294, %v2445
  %v2448 = vadd.f32 %v2446, 0.0
  %2450 = vrot.lane.b32.xlu0 %v2434, 96
  %v2451 = vpop.permute.xlu0 %2450
  %v2452 = vsel %vm400, %v2434, 0
  %v2454 = vsel %vm400, %v2451, 0
  %2456 = vmatprep.subr.mxu0 0.0
  %2457 = vmatpush1.xpose.msra.mxu0 %v2454
  %2458 = vmatprep.subr.mxu0 0.0
  %2459 = vmatpush1.xpose.msra.mxu0 0.0
  %2460 = vmatprep.subr.mxu0 0.0
  %2461 = vmatpush1.xpose.msra.mxu0 0.0
  %2462 = vmatprep.subr.mxu0 0.0
  %2463 = vmatpush1.xpose.msra.mxu0 0.0
  %2464 = vmatprep.subr.mxu0 0.0
  %2465 = vmatpush1.xpose.msra.mxu0 0.0
  %2466 = vmatprep.subr.mxu0 0.0
  %2467 = vmatpush1.xpose.msra.mxu0 0.0
  %2468 = vmatprep.subr.mxu0 0.0
  %2469 = vmatpush1.xpose.msra.mxu0 0.0
  %2470 = vmatprep.subr.mxu0 0.0
  %2471 = vmatpush1.xpose.msra.mxu0 0.0
  %2472 = vmatprep.subr.mxu0 0.0
  %2473 = vmatpush1.xpose.msra.mxu0 0.0
  %2474 = vmatprep.subr.mxu0 0.0
  %2475 = vmatpush1.xpose.msra.mxu0 0.0
  %2476 = vmatprep.subr.mxu0 0.0
  %2477 = vmatpush1.xpose.msra.mxu0 0.0
  %2478 = vmatprep.subr.mxu0 0.0
  %2479 = vmatpush1.xpose.msra.mxu0 0.0
  %2480 = vmatprep.subr.mxu0 0.0
  %2481 = vmatpush1.xpose.msra.mxu0 0.0
  %2482 = vmatprep.subr.mxu0 0.0
  %2483 = vmatpush1.xpose.msra.mxu0 0.0
  %2484 = vmatprep.subr.mxu0 0.0
  %2485 = vmatpush1.xpose.msra.mxu0 0.0
  %2486 = vmatprep.subr.mxu0 0.0
  %2487 = vmatpush1.xpose.msra.mxu0 0.0
  %2488 = vmatprep.subr.mxu0 0.0
  %2489 = vmatpush1.xpose.msra.mxu0 0.0
  %2490 = vmatprep.subr.mxu0 0.0
  %2491 = vmatpush1.xpose.msra.mxu0 0.0
  %2492 = vmatprep.subr.mxu0 0.0
  %2493 = vmatpush1.xpose.msra.mxu0 0.0
  %2494 = vmatprep.subr.mxu0 0.0
  %2495 = vmatpush1.xpose.msra.mxu0 0.0
  %2496 = vmatprep.subr.mxu0 0.0
  %2497 = vmatpush1.xpose.msra.mxu0 0.0
  %2498 = vmatprep.subr.mxu0 0.0
  %2499 = vmatpush1.xpose.msra.mxu0 0.0
  %2500 = vmatprep.subr.mxu0 0.0
  %2501 = vmatpush1.xpose.msra.mxu0 0.0
  %2502 = vmatprep.subr.mxu0 0.0
  %2503 = vmatpush1.xpose.msra.mxu0 0.0
  %2504 = vmatprep.subr.mxu0 0.0
  %2505 = vmatpush1.xpose.msra.mxu0 0.0
  %2506 = vmatprep.subr.mxu0 0.0
  %2507 = vmatpush1.xpose.msra.mxu0 0.0
  %2508 = vmatprep.subr.mxu0 0.0
  %2509 = vmatpush1.xpose.msra.mxu0 0.0
  %2510 = vmatprep.subr.mxu0 0.0
  %2511 = vmatpush1.xpose.msra.mxu0 0.0
  %2512 = vmatprep.subr.mxu0 0.0
  %2513 = vmatpush1.xpose.msra.mxu0 0.0
  %2514 = vmatprep.subr.mxu0 0.0
  %2515 = vmatpush1.xpose.msra.mxu0 0.0
  %2516 = vmatprep.subr.mxu0 0.0
  %2517 = vmatpush1.xpose.msra.mxu0 0.0
  %2518 = vmatprep.subr.mxu0 0.0
  %2519 = vmatpush1.xpose.msra.mxu0 0.0
  %2520 = vmatprep.mubr.f32.mxu0 0.0
  %2521 = vmatmul.mubr.f32.gmra.mrb[0].mxu0 %v2452
  %v2522 = vpop.f32.mrb[0].mxu0
  %v2523 = vadd.f32 0.0, %v2522
  %v2524 = vpop.f32.mrb[0].mxu0
  %2525 = vdwg.mxu0
  %2527 = vrot.lane.b32.xlu0 %v2439, 96
  %v2528 = vpop.permute.xlu0 %2527
  %v2529 = vsel %vm400, %v2439, 0
  %v2531 = vsel %vm400, %v2528, 0
  %2533 = vmatprep.subr.mxu0 0.0
  %2534 = vmatpush1.xpose.msra.mxu0 %v2531
  %2535 = vmatprep.subr.mxu0 0.0
  %2536 = vmatpush1.xpose.msra.mxu0 0.0
  %2537 = vmatprep.subr.mxu0 0.0
  %2538 = vmatpush1.xpose.msra.mxu0 0.0
  %2539 = vmatprep.subr.mxu0 0.0
  %2540 = vmatpush1.xpose.msra.mxu0 0.0
  %2541 = vmatprep.subr.mxu0 0.0
  %2542 = vmatpush1.xpose.msra.mxu0 0.0
  %2543 = vmatprep.subr.mxu0 0.0
  %2544 = vmatpush1.xpose.msra.mxu0 0.0
  %2545 = vmatprep.subr.mxu0 0.0
  %2546 = vmatpush1.xpose.msra.mxu0 0.0
  %2547 = vmatprep.subr.mxu0 0.0
  %2548 = vmatpush1.xpose.msra.mxu0 0.0
  %2549 = vmatprep.subr.mxu0 0.0
  %2550 = vmatpush1.xpose.msra.mxu0 0.0
  %2551 = vmatprep.subr.mxu0 0.0
  %2552 = vmatpush1.xpose.msra.mxu0 0.0
  %2553 = vmatprep.subr.mxu0 0.0
  %2554 = vmatpush1.xpose.msra.mxu0 0.0
  %2555 = vmatprep.subr.mxu0 0.0
  %2556 = vmatpush1.xpose.msra.mxu0 0.0
  %2557 = vmatprep.subr.mxu0 0.0
  %2558 = vmatpush1.xpose.msra.mxu0 0.0
  %2559 = vmatprep.subr.mxu0 0.0
  %2560 = vmatpush1.xpose.msra.mxu0 0.0
  %2561 = vmatprep.subr.mxu0 0.0
  %2562 = vmatpush1.xpose.msra.mxu0 0.0
  %2563 = vmatprep.subr.mxu0 0.0
  %2564 = vmatpush1.xpose.msra.mxu0 0.0
  %2565 = vmatprep.subr.mxu0 0.0
  %2566 = vmatpush1.xpose.msra.mxu0 0.0
  %2567 = vmatprep.subr.mxu0 0.0
  %2568 = vmatpush1.xpose.msra.mxu0 0.0
  %2569 = vmatprep.subr.mxu0 0.0
  %2570 = vmatpush1.xpose.msra.mxu0 0.0
  %2571 = vmatprep.subr.mxu0 0.0
  %2572 = vmatpush1.xpose.msra.mxu0 0.0
  %2573 = vmatprep.subr.mxu0 0.0
  %2574 = vmatpush1.xpose.msra.mxu0 0.0
  %2575 = vmatprep.subr.mxu0 0.0
  %2576 = vmatpush1.xpose.msra.mxu0 0.0
  %2577 = vmatprep.subr.mxu0 0.0
  %2578 = vmatpush1.xpose.msra.mxu0 0.0
  %2579 = vmatprep.subr.mxu0 0.0
  %2580 = vmatpush1.xpose.msra.mxu0 0.0
  %2581 = vmatprep.subr.mxu0 0.0
  %2582 = vmatpush1.xpose.msra.mxu0 0.0
  %2583 = vmatprep.subr.mxu0 0.0
  %2584 = vmatpush1.xpose.msra.mxu0 0.0
  %2585 = vmatprep.subr.mxu0 0.0
  %2586 = vmatpush1.xpose.msra.mxu0 0.0
  %2587 = vmatprep.subr.mxu0 0.0
  %2588 = vmatpush1.xpose.msra.mxu0 0.0
  %2589 = vmatprep.subr.mxu0 0.0
  %2590 = vmatpush1.xpose.msra.mxu0 0.0
  %2591 = vmatprep.subr.mxu0 0.0
  %2592 = vmatpush1.xpose.msra.mxu0 0.0
  %2593 = vmatprep.subr.mxu0 0.0
  %2594 = vmatpush1.xpose.msra.mxu0 0.0
  %2595 = vmatprep.subr.mxu0 0.0
  %2596 = vmatpush1.xpose.msra.mxu0 0.0
  %2597 = vmatprep.mubr.f32.mxu0 0.0
  %2598 = vmatmul.mubr.f32.gmra.mrb[0].mxu0 %v2529
  %v2599 = vpop.f32.mrb[0].mxu0
  %v2600 = vadd.f32 0.0, %v2599
  %v2601 = vpop.f32.mrb[0].mxu0
  %2602 = vdwg.mxu0
  %v2603 = vmul.f32 %v2523, 0.35355338
  %v2604 = vmul.f32 %v2600, 0.35355338
  %v2605 = vsel %vm555, %v2603, -1e+30
  %v2606 = vsel %vm555, %v2604, -1e+30
  %v2607 = vsel %vm400, %v2605, -inf
  %2608 = vmax.xlane.f32.xlu0 %v2607
  %v2609 = vpop.xlane.xlu0 %2608
  %v2610 = vsel %vm400, %v2606, -inf
  %2611 = vmax.xlane.f32.xlu0 %v2610
  %v2612 = vpop.xlane.xlu0 %2611
  %v2613 = vsub.f32 %v2605, %v2609
  %v2614 = vsub.f32 %v2606, %v2612
  %v2615 = vmul.f32 %v2613, 1.442695
  %v2616 = vpow.pop %v2615
  %v2617 = vmul.f32 %v2614, 1.442695
  %v2618 = vpow.pop %v2617
  %v2619 = vsel %vm400, %v2616, 0.0
  %2620 = vadd.xlane.f32.xlu0 %v2619
  %v2621 = vpop.xlane.xlu0 %2620
  %v2622 = vsel %vm400, %v2618, 0.0
  %2623 = vadd.xlane.f32.xlu0 %v2622
  %v2624 = vpop.xlane.xlu0 %2623
  %v2625 = vrcp.pop %v2621
  %v2626 = vrcp.pop %v2624
  %v2627 = vmul.f32 %v2616, %v2625
  %v2628 = vmul.f32 %v2618, %v2626
  %2629 = vrot.lane.b32.xlu0 %v2434, 64
  %v2630 = vpop.permute.xlu0 %2629
  %v2633 = vsel %vm400, %v2627, 0
  %2635 = vmatprep.subr.mxu0 0.0
  %2636 = vmatpush1.msra.mxu0 %v2630
  %2637 = vmatprep.subr.mxu0 0.0
  %2638 = vmatpush1.msra.mxu0 0.0
  %2639 = vmatprep.subr.mxu0 0.0
  %2640 = vmatpush1.msra.mxu0 0.0
  %2641 = vmatprep.subr.mxu0 0.0
  %2642 = vmatpush1.msra.mxu0 0.0
  %2643 = vmatprep.subr.mxu0 0.0
  %2644 = vmatpush1.msra.mxu0 0.0
  %2645 = vmatprep.subr.mxu0 0.0
  %2646 = vmatpush1.msra.mxu0 0.0
  %2647 = vmatprep.subr.mxu0 0.0
  %2648 = vmatpush1.msra.mxu0 0.0
  %2649 = vmatprep.subr.mxu0 0.0
  %2650 = vmatpush1.msra.mxu0 0.0
  %2651 = vmatprep.subr.mxu0 0.0
  %2652 = vmatpush1.msra.mxu0 0.0
  %2653 = vmatprep.subr.mxu0 0.0
  %2654 = vmatpush1.msra.mxu0 0.0
  %2655 = vmatprep.subr.mxu0 0.0
  %2656 = vmatpush1.msra.mxu0 0.0
  %2657 = vmatprep.subr.mxu0 0.0
  %2658 = vmatpush1.msra.mxu0 0.0
  %2659 = vmatprep.subr.mxu0 0.0
  %2660 = vmatpush1.msra.mxu0 0.0
  %2661 = vmatprep.subr.mxu0 0.0
  %2662 = vmatpush1.msra.mxu0 0.0
  %2663 = vmatprep.subr.mxu0 0.0
  %2664 = vmatpush1.msra.mxu0 0.0
  %2665 = vmatprep.subr.mxu0 0.0
  %2666 = vmatpush1.msra.mxu0 0.0
  %2667 = vmatprep.subr.mxu0 0.0
  %2668 = vmatpush1.msra.mxu0 0.0
  %2669 = vmatprep.subr.mxu0 0.0
  %2670 = vmatpush1.msra.mxu0 0.0
  %2671 = vmatprep.subr.mxu0 0.0
  %2672 = vmatpush1.msra.mxu0 0.0
  %2673 = vmatprep.subr.mxu0 0.0
  %2674 = vmatpush1.msra.mxu0 0.0
  %2675 = vmatprep.subr.mxu0 0.0
  %2676 = vmatpush1.msra.mxu0 0.0
  %2677 = vmatprep.subr.mxu0 0.0
  %2678 = vmatpush1.msra.mxu0 0.0
  %2679 = vmatprep.subr.mxu0 0.0
  %2680 = vmatpush1.msra.mxu0 0.0
  %2681 = vmatprep.subr.mxu0 0.0
  %2682 = vmatpush1.msra.mxu0 0.0
  %2683 = vmatprep.subr.mxu0 0.0
  %2684 = vmatpush1.msra.mxu0 0.0
  %2685 = vmatprep.subr.mxu0 0.0
  %2686 = vmatpush1.msra.mxu0 0.0
  %2687 = vmatprep.subr.mxu0 0.0
  %2688 = vmatpush1.msra.mxu0 0.0
  %2689 = vmatprep.subr.mxu0 0.0
  %2690 = vmatpush1.msra.mxu0 0.0
  %2691 = vmatprep.subr.mxu0 0.0
  %2692 = vmatpush1.msra.mxu0 0.0
  %2693 = vmatprep.subr.mxu0 0.0
  %2694 = vmatpush1.msra.mxu0 0.0
  %2695 = vmatprep.subr.mxu0 0.0
  %2696 = vmatpush1.msra.mxu0 0.0
  %2697 = vmatprep.subr.mxu0 0.0
  %2698 = vmatpush1.msra.mxu0 0.0
  %2699 = vmatprep.mubr.f32.mxu0 0.0
  %2700 = vmatmul.mubr.f32.gmra.mrb[0].mxu0 %v2633
  %v2701 = vpop.f32.mrb[0].mxu0
  %v2702 = vadd.f32 0.0, %v2701
  %v2703 = vpop.f32.mrb[0].mxu0
  %2704 = vdwg.mxu0
  %2705 = vrot.lane.b32.xlu0 %v2439, 64
  %v2706 = vpop.permute.xlu0 %2705
  %v2709 = vsel %vm400, %v2628, 0
  %2711 = vmatprep.subr.mxu0 0.0
  %2712 = vmatpush1.msra.mxu0 %v2706
  %2713 = vmatprep.subr.mxu0 0.0
  %2714 = vmatpush1.msra.mxu0 0.0
  %2715 = vmatprep.subr.mxu0 0.0
  %2716 = vmatpush1.msra.mxu0 0.0
  %2717 = vmatprep.subr.mxu0 0.0
  %2718 = vmatpush1.msra.mxu0 0.0
  %2719 = vmatprep.subr.mxu0 0.0
  %2720 = vmatpush1.msra.mxu0 0.0
  %2721 = vmatprep.subr.mxu0 0.0
  %2722 = vmatpush1.msra.mxu0 0.0
  %2723 = vmatprep.subr.mxu0 0.0
  %2724 = vmatpush1.msra.mxu0 0.0
  %2725 = vmatprep.subr.mxu0 0.0
  %2726 = vmatpush1.msra.mxu0 0.0
  %2727 = vmatprep.subr.mxu0 0.0
  %2728 = vmatpush1.msra.mxu0 0.0
  %2729 = vmatprep.subr.mxu0 0.0
  %2730 = vmatpush1.msra.mxu0 0.0
  %2731 = vmatprep.subr.mxu0 0.0
  %2732 = vmatpush1.msra.mxu0 0.0
  %2733 = vmatprep.subr.mxu0 0.0
  %2734 = vmatpush1.msra.mxu0 0.0
  %2735 = vmatprep.subr.mxu0 0.0
  %2736 = vmatpush1.msra.mxu0 0.0
  %2737 = vmatprep.subr.mxu0 0.0
  %2738 = vmatpush1.msra.mxu0 0.0
  %2739 = vmatprep.subr.mxu0 0.0
  %2740 = vmatpush1.msra.mxu0 0.0
  %2741 = vmatprep.subr.mxu0 0.0
  %2742 = vmatpush1.msra.mxu0 0.0
  %2743 = vmatprep.subr.mxu0 0.0
  %2744 = vmatpush1.msra.mxu0 0.0
  %2745 = vmatprep.subr.mxu0 0.0
  %2746 = vmatpush1.msra.mxu0 0.0
  %2747 = vmatprep.subr.mxu0 0.0
  %2748 = vmatpush1.msra.mxu0 0.0
  %2749 = vmatprep.subr.mxu0 0.0
  %2750 = vmatpush1.msra.mxu0 0.0
  %2751 = vmatprep.subr.mxu0 0.0
  %2752 = vmatpush1.msra.mxu0 0.0
  %2753 = vmatprep.subr.mxu0 0.0
  %2754 = vmatpush1.msra.mxu0 0.0
  %2755 = vmatprep.subr.mxu0 0.0
  %2756 = vmatpush1.msra.mxu0 0.0
  %2757 = vmatprep.subr.mxu0 0.0
  %2758 = vmatpush1.msra.mxu0 0.0
  %2759 = vmatprep.subr.mxu0 0.0
  %2760 = vmatpush1.msra.mxu0 0.0
  %2761 = vmatprep.subr.mxu0 0.0
  %2762 = vmatpush1.msra.mxu0 0.0
  %2763 = vmatprep.subr.mxu0 0.0
  %2764 = vmatpush1.msra.mxu0 0.0
  %2765 = vmatprep.subr.mxu0 0.0
  %2766 = vmatpush1.msra.mxu0 0.0
  %2767 = vmatprep.subr.mxu0 0.0
  %2768 = vmatpush1.msra.mxu0 0.0
  %2769 = vmatprep.subr.mxu0 0.0
  %2770 = vmatpush1.msra.mxu0 0.0
  %2771 = vmatprep.subr.mxu0 0.0
  %2772 = vmatpush1.msra.mxu0 0.0
  %2773 = vmatprep.subr.mxu0 0.0
  %2774 = vmatpush1.msra.mxu0 0.0
  %2775 = vmatprep.mubr.f32.mxu0 0.0
  %2776 = vmatmul.mubr.f32.gmra.mrb[0].mxu0 %v2709
  %v2777 = vpop.f32.mrb[0].mxu0
  %v2778 = vadd.f32 0.0, %v2777
  %v2779 = vpop.f32.mrb[0].mxu0
  %2780 = vdwg.mxu0
  %v2782 = vsel %vm400, %v2702, 0
  %v2785 = vsel %vm400, %v2778, 0
  %2787 = vmatprep.subr.mxu0 0.0
  %2788 = vmatpush1.msra.mxu0 %v2290
  %2789 = vmatprep.subr.mxu0 0.0
  %2790 = vmatpush1.msra.mxu0 0.0
  %2791 = vmatprep.subr.mxu0 0.0
  %2792 = vmatpush1.msra.mxu0 0.0
  %2793 = vmatprep.subr.mxu0 0.0
  %2794 = vmatpush1.msra.mxu0 0.0
  %2795 = vmatprep.subr.mxu0 0.0
  %2796 = vmatpush1.msra.mxu0 0.0
  %2797 = vmatprep.subr.mxu0 0.0
  %2798 = vmatpush1.msra.mxu0 0.0
  %2799 = vmatprep.subr.mxu0 0.0
  %2800 = vmatpush1.msra.mxu0 0.0
  %2801 = vmatprep.subr.mxu0 0.0
  %2802 = vmatpush1.msra.mxu0 0.0
  %2803 = vmatprep.subr.mxu0 0.0
  %2804 = vmatpush1.msra.mxu0 0.0
  %2805 = vmatprep.subr.mxu0 0.0
  %2806 = vmatpush1.msra.mxu0 0.0
  %2807 = vmatprep.subr.mxu0 0.0
  %2808 = vmatpush1.msra.mxu0 0.0
  %2809 = vmatprep.subr.mxu0 0.0
  %2810 = vmatpush1.msra.mxu0 0.0
  %2811 = vmatprep.subr.mxu0 0.0
  %2812 = vmatpush1.msra.mxu0 0.0
  %2813 = vmatprep.subr.mxu0 0.0
  %2814 = vmatpush1.msra.mxu0 0.0
  %2815 = vmatprep.subr.mxu0 0.0
  %2816 = vmatpush1.msra.mxu0 0.0
  %2817 = vmatprep.subr.mxu0 0.0
  %2818 = vmatpush1.msra.mxu0 0.0
  %2819 = vmatprep.subr.mxu0 0.0
  %2820 = vmatpush1.msra.mxu0 0.0
  %2821 = vmatprep.subr.mxu0 0.0
  %2822 = vmatpush1.msra.mxu0 0.0
  %2823 = vmatprep.subr.mxu0 0.0
  %2824 = vmatpush1.msra.mxu0 0.0
  %2825 = vmatprep.subr.mxu0 0.0
  %2826 = vmatpush1.msra.mxu0 0.0
  %2827 = vmatprep.subr.mxu0 0.0
  %2828 = vmatpush1.msra.mxu0 0.0
  %2829 = vmatprep.subr.mxu0 0.0
  %2830 = vmatpush1.msra.mxu0 0.0
  %2831 = vmatprep.subr.mxu0 0.0
  %2832 = vmatpush1.msra.mxu0 0.0
  %2833 = vmatprep.subr.mxu0 0.0
  %2834 = vmatpush1.msra.mxu0 0.0
  %2835 = vmatprep.subr.mxu0 0.0
  %2836 = vmatpush1.msra.mxu0 0.0
  %2837 = vmatprep.subr.mxu0 0.0
  %2838 = vmatpush1.msra.mxu0 0.0
  %2839 = vmatprep.subr.mxu0 0.0
  %2840 = vmatpush1.msra.mxu0 0.0
  %2841 = vmatprep.subr.mxu0 0.0
  %2842 = vmatpush1.msra.mxu0 0.0
  %2843 = vmatprep.subr.mxu0 0.0
  %2844 = vmatpush1.msra.mxu0 0.0
  %2845 = vmatprep.subr.mxu0 0.0
  %2846 = vmatpush1.msra.mxu0 0.0
  %2847 = vmatprep.subr.mxu0 0.0
  %2848 = vmatpush1.msra.mxu0 0.0
  %2849 = vmatprep.subr.mxu0 0.0
  %2850 = vmatpush1.msra.mxu0 0.0
  %2851 = vmatprep.mubr.f32.mxu0 0.0
  %2852 = vmatmul.mubr.f32.gmra.mrb[0].mxu0 %v2782
  %v2853 = vpop.f32.mrb[0].mxu0
  %v2854 = vadd.f32 0.0, %v2853
  %v2855 = vpop.f32.mrb[0].mxu0
  %2856 = vmatprep.mubr.f32.mxu0 0.0
  %2857 = vmatmul.mubr.f32.gmra.mrb[0].mxu0 %v2785
  %v2858 = vpop.f32.mrb[0].mxu0
  %v2859 = vadd.f32 0.0, %v2858
  %v2860 = vpop.f32.mrb[0].mxu0
  %2861 = vdwg.mxu0
  %v2862 = vadd.f32 %v2448, %v2854
  %v2863 = vadd.f32 %v2448, %v2859
  %2864 = vrot.lane.b32.xlu0 %v2434, 120
  %v2865 = vpop.permute.xlu0 %2864
  %2866 = vrot.lane.b32.xlu0 %v2434, 88
  %v2867 = vpop.permute.xlu0 %2866
  %v2868 = vsel %vm400, %v2865, 0
  %v2870 = vsel %vm400, %v2867, 0
  %2872 = vmatprep.subr.mxu0 0.0
  %2873 = vmatpush1.xpose.msra.mxu0 %v2870
  %2874 = vmatprep.subr.mxu0 0.0
  %2875 = vmatpush1.xpose.msra.mxu0 0.0
  %2876 = vmatprep.subr.mxu0 0.0
  %2877 = vmatpush1.xpose.msra.mxu0 0.0
  %2878 = vmatprep.subr.mxu0 0.0
  %2879 = vmatpush1.xpose.msra.mxu0 0.0
  %2880 = vmatprep.subr.mxu0 0.0
  %2881 = vmatpush1.xpose.msra.mxu0 0.0
  %2882 = vmatprep.subr.mxu0 0.0
  %2883 = vmatpush1.xpose.msra.mxu0 0.0
  %2884 = vmatprep.subr.mxu0 0.0
  %2885 = vmatpush1.xpose.msra.mxu0 0.0
  %2886 = vmatprep.subr.mxu0 0.0
  %2887 = vmatpush1.xpose.msra.mxu0 0.0
  %2888 = vmatprep.subr.mxu0 0.0
  %2889 = vmatpush1.xpose.msra.mxu0 0.0
  %2890 = vmatprep.subr.mxu0 0.0
  %2891 = vmatpush1.xpose.msra.mxu0 0.0
  %2892 = vmatprep.subr.mxu0 0.0
  %2893 = vmatpush1.xpose.msra.mxu0 0.0
  %2894 = vmatprep.subr.mxu0 0.0
  %2895 = vmatpush1.xpose.msra.mxu0 0.0
  %2896 = vmatprep.subr.mxu0 0.0
  %2897 = vmatpush1.xpose.msra.mxu0 0.0
  %2898 = vmatprep.subr.mxu0 0.0
  %2899 = vmatpush1.xpose.msra.mxu0 0.0
  %2900 = vmatprep.subr.mxu0 0.0
  %2901 = vmatpush1.xpose.msra.mxu0 0.0
  %2902 = vmatprep.subr.mxu0 0.0
  %2903 = vmatpush1.xpose.msra.mxu0 0.0
  %2904 = vmatprep.subr.mxu0 0.0
  %2905 = vmatpush1.xpose.msra.mxu0 0.0
  %2906 = vmatprep.subr.mxu0 0.0
  %2907 = vmatpush1.xpose.msra.mxu0 0.0
  %2908 = vmatprep.subr.mxu0 0.0
  %2909 = vmatpush1.xpose.msra.mxu0 0.0
  %2910 = vmatprep.subr.mxu0 0.0
  %2911 = vmatpush1.xpose.msra.mxu0 0.0
  %2912 = vmatprep.subr.mxu0 0.0
  %2913 = vmatpush1.xpose.msra.mxu0 0.0
  %2914 = vmatprep.subr.mxu0 0.0
  %2915 = vmatpush1.xpose.msra.mxu0 0.0
  %2916 = vmatprep.subr.mxu0 0.0
  %2917 = vmatpush1.xpose.msra.mxu0 0.0
  %2918 = vmatprep.subr.mxu0 0.0
  %2919 = vmatpush1.xpose.msra.mxu0 0.0
  %2920 = vmatprep.subr.mxu0 0.0
  %2921 = vmatpush1.xpose.msra.mxu0 0.0
  %2922 = vmatprep.subr.mxu0 0.0
  %2923 = vmatpush1.xpose.msra.mxu0 0.0
  %2924 = vmatprep.subr.mxu0 0.0
  %2925 = vmatpush1.xpose.msra.mxu0 0.0
  %2926 = vmatprep.subr.mxu0 0.0
  %2927 = vmatpush1.xpose.msra.mxu0 0.0
  %2928 = vmatprep.subr.mxu0 0.0
  %2929 = vmatpush1.xpose.msra.mxu0 0.0
  %2930 = vmatprep.subr.mxu0 0.0
  %2931 = vmatpush1.xpose.msra.mxu0 0.0
  %2932 = vmatprep.subr.mxu0 0.0
  %2933 = vmatpush1.xpose.msra.mxu0 0.0
  %2934 = vmatprep.subr.mxu0 0.0
  %2935 = vmatpush1.xpose.msra.mxu0 0.0
  %2936 = vmatprep.mubr.f32.mxu0 0.0
  %2937 = vmatmul.mubr.f32.gmra.mrb[0].mxu0 %v2868
  %v2938 = vpop.f32.mrb[0].mxu0
  %v2939 = vadd.f32 0.0, %v2938
  %v2940 = vpop.f32.mrb[0].mxu0
  %2941 = vdwg.mxu0
  %2942 = vrot.lane.b32.xlu0 %v2439, 120
  %v2943 = vpop.permute.xlu0 %2942
  %2944 = vrot.lane.b32.xlu0 %v2439, 88
  %v2945 = vpop.permute.xlu0 %2944
  %v2946 = vsel %vm400, %v2943, 0
  %v2948 = vsel %vm400, %v2945, 0
  %2950 = vmatprep.subr.mxu0 0.0
  %2951 = vmatpush1.xpose.msra.mxu0 %v2948
  %2952 = vmatprep.subr.mxu0 0.0
  %2953 = vmatpush1.xpose.msra.mxu0 0.0
  %2954 = vmatprep.subr.mxu0 0.0
  %2955 = vmatpush1.xpose.msra.mxu0 0.0
  %2956 = vmatprep.subr.mxu0 0.0
  %2957 = vmatpush1.xpose.msra.mxu0 0.0
  %2958 = vmatprep.subr.mxu0 0.0
  %2959 = vmatpush1.xpose.msra.mxu0 0.0
  %2960 = vmatprep.subr.mxu0 0.0
  %2961 = vmatpush1.xpose.msra.mxu0 0.0
  %2962 = vmatprep.subr.mxu0 0.0
  %2963 = vmatpush1.xpose.msra.mxu0 0.0
  %2964 = vmatprep.subr.mxu0 0.0
  %2965 = vmatpush1.xpose.msra.mxu0 0.0
  %2966 = vmatprep.subr.mxu0 0.0
  %2967 = vmatpush1.xpose.msra.mxu0 0.0
  %2968 = vmatprep.subr.mxu0 0.0
  %2969 = vmatpush1.xpose.msra.mxu0 0.0
  %2970 = vmatprep.subr.mxu0 0.0
  %2971 = vmatpush1.xpose.msra.mxu0 0.0
  %2972 = vmatprep.subr.mxu0 0.0
  %2973 = vmatpush1.xpose.msra.mxu0 0.0
  %2974 = vmatprep.subr.mxu0 0.0
  %2975 = vmatpush1.xpose.msra.mxu0 0.0
  %2976 = vmatprep.subr.mxu0 0.0
  %2977 = vmatpush1.xpose.msra.mxu0 0.0
  %2978 = vmatprep.subr.mxu0 0.0
  %2979 = vmatpush1.xpose.msra.mxu0 0.0
  %2980 = vmatprep.subr.mxu0 0.0
  %2981 = vmatpush1.xpose.msra.mxu0 0.0
  %2982 = vmatprep.subr.mxu0 0.0
  %2983 = vmatpush1.xpose.msra.mxu0 0.0
  %2984 = vmatprep.subr.mxu0 0.0
  %2985 = vmatpush1.xpose.msra.mxu0 0.0
  %2986 = vmatprep.subr.mxu0 0.0
  %2987 = vmatpush1.xpose.msra.mxu0 0.0
  %2988 = vmatprep.subr.mxu0 0.0
  %2989 = vmatpush1.xpose.msra.mxu0 0.0
  %2990 = vmatprep.subr.mxu0 0.0
  %2991 = vmatpush1.xpose.msra.mxu0 0.0
  %2992 = vmatprep.subr.mxu0 0.0
  %2993 = vmatpush1.xpose.msra.mxu0 0.0
  %2994 = vmatprep.subr.mxu0 0.0
  %2995 = vmatpush1.xpose.msra.mxu0 0.0
  %2996 = vmatprep.subr.mxu0 0.0
  %2997 = vmatpush1.xpose.msra.mxu0 0.0
  %2998 = vmatprep.subr.mxu0 0.0
  %2999 = vmatpush1.xpose.msra.mxu0 0.0
  %3000 = vmatprep.subr.mxu0 0.0
  %3001 = vmatpush1.xpose.msra.mxu0 0.0
  %3002 = vmatprep.subr.mxu0 0.0
  %3003 = vmatpush1.xpose.msra.mxu0 0.0
  %3004 = vmatprep.subr.mxu0 0.0
  %3005 = vmatpush1.xpose.msra.mxu0 0.0
  %3006 = vmatprep.subr.mxu0 0.0
  %3007 = vmatpush1.xpose.msra.mxu0 0.0
  %3008 = vmatprep.subr.mxu0 0.0
  %3009 = vmatpush1.xpose.msra.mxu0 0.0
  %3010 = vmatprep.subr.mxu0 0.0
  %3011 = vmatpush1.xpose.msra.mxu0 0.0
  %3012 = vmatprep.subr.mxu0 0.0
  %3013 = vmatpush1.xpose.msra.mxu0 0.0
  %3014 = vmatprep.mubr.f32.mxu0 0.0
  %3015 = vmatmul.mubr.f32.gmra.mrb[0].mxu0 %v2946
  %v3016 = vpop.f32.mrb[0].mxu0
  %v3017 = vadd.f32 0.0, %v3016
  %v3018 = vpop.f32.mrb[0].mxu0
  %3019 = vdwg.mxu0
  %v3020 = vmul.f32 %v2939, 0.35355338
  %v3021 = vmul.f32 %v3017, 0.35355338
  %v3022 = vsel %vm555, %v3020, -1e+30
  %v3023 = vsel %vm555, %v3021, -1e+30
  %v3024 = vsel %vm400, %v3022, -inf
  %3025 = vmax.xlane.f32.xlu0 %v3024
  %v3026 = vpop.xlane.xlu0 %3025
  %v3027 = vsel %vm400, %v3023, -inf
  %3028 = vmax.xlane.f32.xlu0 %v3027
  %v3029 = vpop.xlane.xlu0 %3028
  %v3030 = vsub.f32 %v3022, %v3026
  %v3031 = vsub.f32 %v3023, %v3029
  %v3032 = vmul.f32 %v3030, 1.442695
  %v3033 = vpow.pop %v3032
  %v3034 = vmul.f32 %v3031, 1.442695
  %v3035 = vpow.pop %v3034
  %v3036 = vsel %vm400, %v3033, 0.0
  %3037 = vadd.xlane.f32.xlu0 %v3036
  %v3038 = vpop.xlane.xlu0 %3037
  %v3039 = vsel %vm400, %v3035, 0.0
  %3040 = vadd.xlane.f32.xlu0 %v3039
  %v3041 = vpop.xlane.xlu0 %3040
  %v3042 = vrcp.pop %v3038
  %v3043 = vrcp.pop %v3041
  %v3044 = vmul.f32 %v3033, %v3042
  %v3045 = vmul.f32 %v3035, %v3043
  %3046 = vrot.lane.b32.xlu0 %v2434, 56
  %v3047 = vpop.permute.xlu0 %3046
  %v3050 = vsel %vm400, %v3044, 0
  %3052 = vmatprep.subr.mxu0 0.0
  %3053 = vmatpush1.msra.mxu0 %v3047
  %3054 = vmatprep.subr.mxu0 0.0
  %3055 = vmatpush1.msra.mxu0 0.0
  %3056 = vmatprep.subr.mxu0 0.0
  %3057 = vmatpush1.msra.mxu0 0.0
  %3058 = vmatprep.subr.mxu0 0.0
  %3059 = vmatpush1.msra.mxu0 0.0
  %3060 = vmatprep.subr.mxu0 0.0
  %3061 = vmatpush1.msra.mxu0 0.0
  %3062 = vmatprep.subr.mxu0 0.0
  %3063 = vmatpush1.msra.mxu0 0.0
  %3064 = vmatprep.subr.mxu0 0.0
  %3065 = vmatpush1.msra.mxu0 0.0
  %3066 = vmatprep.subr.mxu0 0.0
  %3067 = vmatpush1.msra.mxu0 0.0
  %3068 = vmatprep.subr.mxu0 0.0
  %3069 = vmatpush1.msra.mxu0 0.0
  %3070 = vmatprep.subr.mxu0 0.0
  %3071 = vmatpush1.msra.mxu0 0.0
  %3072 = vmatprep.subr.mxu0 0.0
  %3073 = vmatpush1.msra.mxu0 0.0
  %3074 = vmatprep.subr.mxu0 0.0
  %3075 = vmatpush1.msra.mxu0 0.0
  %3076 = vmatprep.subr.mxu0 0.0
  %3077 = vmatpush1.msra.mxu0 0.0
  %3078 = vmatprep.subr.mxu0 0.0
  %3079 = vmatpush1.msra.mxu0 0.0
  %3080 = vmatprep.subr.mxu0 0.0
  %3081 = vmatpush1.msra.mxu0 0.0
  %3082 = vmatprep.subr.mxu0 0.0
  %3083 = vmatpush1.msra.mxu0 0.0
  %3084 = vmatprep.subr.mxu0 0.0
  %3085 = vmatpush1.msra.mxu0 0.0
  %3086 = vmatprep.subr.mxu0 0.0
  %3087 = vmatpush1.msra.mxu0 0.0
  %3088 = vmatprep.subr.mxu0 0.0
  %3089 = vmatpush1.msra.mxu0 0.0
  %3090 = vmatprep.subr.mxu0 0.0
  %3091 = vmatpush1.msra.mxu0 0.0
  %3092 = vmatprep.subr.mxu0 0.0
  %3093 = vmatpush1.msra.mxu0 0.0
  %3094 = vmatprep.subr.mxu0 0.0
  %3095 = vmatpush1.msra.mxu0 0.0
  %3096 = vmatprep.subr.mxu0 0.0
  %3097 = vmatpush1.msra.mxu0 0.0
  %3098 = vmatprep.subr.mxu0 0.0
  %3099 = vmatpush1.msra.mxu0 0.0
  %3100 = vmatprep.subr.mxu0 0.0
  %3101 = vmatpush1.msra.mxu0 0.0
  %3102 = vmatprep.subr.mxu0 0.0
  %3103 = vmatpush1.msra.mxu0 0.0
  %3104 = vmatprep.subr.mxu0 0.0
  %3105 = vmatpush1.msra.mxu0 0.0
  %3106 = vmatprep.subr.mxu0 0.0
  %3107 = vmatpush1.msra.mxu0 0.0
  %3108 = vmatprep.subr.mxu0 0.0
  %3109 = vmatpush1.msra.mxu0 0.0
  %3110 = vmatprep.subr.mxu0 0.0
  %3111 = vmatpush1.msra.mxu0 0.0
  %3112 = vmatprep.subr.mxu0 0.0
  %3113 = vmatpush1.msra.mxu0 0.0
  %3114 = vmatprep.subr.mxu0 0.0
  %3115 = vmatpush1.msra.mxu0 0.0
  %3116 = vmatprep.mubr.f32.mxu0 0.0
  %3117 = vmatmul.mubr.f32.gmra.mrb[0].mxu0 %v3050
  %v3118 = vpop.f32.mrb[0].mxu0
  %v3119 = vadd.f32 0.0, %v3118
  %v3120 = vpop.f32.mrb[0].mxu0
  %3121 = vdwg.mxu0
  %3122 = vrot.lane.b32.xlu0 %v2439, 56
  %v3123 = vpop.permute.xlu0 %3122
  %v3126 = vsel %vm400, %v3045, 0
  %3128 = vmatprep.subr.mxu0 0.0
  %3129 = vmatpush1.msra.mxu0 %v3123
  %3130 = vmatprep.subr.mxu0 0.0
  %3131 = vmatpush1.msra.mxu0 0.0
  %3132 = vmatprep.subr.mxu0 0.0
  %3133 = vmatpush1.msra.mxu0 0.0
  %3134 = vmatprep.subr.mxu0 0.0
  %3135 = vmatpush1.msra.mxu0 0.0
  %3136 = vmatprep.subr.mxu0 0.0
  %3137 = vmatpush1.msra.mxu0 0.0
  %3138 = vmatprep.subr.mxu0 0.0
  %3139 = vmatpush1.msra.mxu0 0.0
  %3140 = vmatprep.subr.mxu0 0.0
  %3141 = vmatpush1.msra.mxu0 0.0
  %3142 = vmatprep.subr.mxu0 0.0
  %3143 = vmatpush1.msra.mxu0 0.0
  %3144 = vmatprep.subr.mxu0 0.0
  %3145 = vmatpush1.msra.mxu0 0.0
  %3146 = vmatprep.subr.mxu0 0.0
  %3147 = vmatpush1.msra.mxu0 0.0
  %3148 = vmatprep.subr.mxu0 0.0
  %3149 = vmatpush1.msra.mxu0 0.0
  %3150 = vmatprep.subr.mxu0 0.0
  %3151 = vmatpush1.msra.mxu0 0.0
  %3152 = vmatprep.subr.mxu0 0.0
  %3153 = vmatpush1.msra.mxu0 0.0
  %3154 = vmatprep.subr.mxu0 0.0
  %3155 = vmatpush1.msra.mxu0 0.0
  %3156 = vmatprep.subr.mxu0 0.0
  %3157 = vmatpush1.msra.mxu0 0.0
  %3158 = vmatprep.subr.mxu0 0.0
  %3159 = vmatpush1.msra.mxu0 0.0
  %3160 = vmatprep.subr.mxu0 0.0
  %3161 = vmatpush1.msra.mxu0 0.0
  %3162 = vmatprep.subr.mxu0 0.0
  %3163 = vmatpush1.msra.mxu0 0.0
  %3164 = vmatprep.subr.mxu0 0.0
  %3165 = vmatpush1.msra.mxu0 0.0
  %3166 = vmatprep.subr.mxu0 0.0
  %3167 = vmatpush1.msra.mxu0 0.0
  %3168 = vmatprep.subr.mxu0 0.0
  %3169 = vmatpush1.msra.mxu0 0.0
  %3170 = vmatprep.subr.mxu0 0.0
  %3171 = vmatpush1.msra.mxu0 0.0
  %3172 = vmatprep.subr.mxu0 0.0
  %3173 = vmatpush1.msra.mxu0 0.0
  %3174 = vmatprep.subr.mxu0 0.0
  %3175 = vmatpush1.msra.mxu0 0.0
  %3176 = vmatprep.subr.mxu0 0.0
  %3177 = vmatpush1.msra.mxu0 0.0
  %3178 = vmatprep.subr.mxu0 0.0
  %3179 = vmatpush1.msra.mxu0 0.0
  %3180 = vmatprep.subr.mxu0 0.0
  %3181 = vmatpush1.msra.mxu0 0.0
  %3182 = vmatprep.subr.mxu0 0.0
  %3183 = vmatpush1.msra.mxu0 0.0
  %3184 = vmatprep.subr.mxu0 0.0
  %3185 = vmatpush1.msra.mxu0 0.0
  %3186 = vmatprep.subr.mxu0 0.0
  %3187 = vmatpush1.msra.mxu0 0.0
  %3188 = vmatprep.subr.mxu0 0.0
  %3189 = vmatpush1.msra.mxu0 0.0
  %3190 = vmatprep.subr.mxu0 0.0
  %3191 = vmatpush1.msra.mxu0 0.0
  %3192 = vmatprep.mubr.f32.mxu0 0.0
  %3193 = vmatmul.mubr.f32.gmra.mrb[0].mxu0 %v3126
  %v3194 = vpop.f32.mrb[0].mxu0
  %v3195 = vadd.f32 0.0, %v3194
  %v3196 = vpop.f32.mrb[0].mxu0
  %3197 = vdwg.mxu0
  %v3199 = vsel %vm400, %v3119, 0
  %v3202 = vsel %vm400, %v3195, 0
  %3204 = vmatprep.subr.mxu0 0.0
  %3205 = vmatpush1.msra.mxu0 %v2291
  %3206 = vmatprep.subr.mxu0 0.0
  %3207 = vmatpush1.msra.mxu0 0.0
  %3208 = vmatprep.subr.mxu0 0.0
  %3209 = vmatpush1.msra.mxu0 0.0
  %3210 = vmatprep.subr.mxu0 0.0
  %3211 = vmatpush1.msra.mxu0 0.0
  %3212 = vmatprep.subr.mxu0 0.0
  %3213 = vmatpush1.msra.mxu0 0.0
  %3214 = vmatprep.subr.mxu0 0.0
  %3215 = vmatpush1.msra.mxu0 0.0
  %3216 = vmatprep.subr.mxu0 0.0
  %3217 = vmatpush1.msra.mxu0 0.0
  %3218 = vmatprep.subr.mxu0 0.0
  %3219 = vmatpush1.msra.mxu0 0.0
  %3220 = vmatprep.subr.mxu0 0.0
  %3221 = vmatpush1.msra.mxu0 0.0
  %3222 = vmatprep.subr.mxu0 0.0
  %3223 = vmatpush1.msra.mxu0 0.0
  %3224 = vmatprep.subr.mxu0 0.0
  %3225 = vmatpush1.msra.mxu0 0.0
  %3226 = vmatprep.subr.mxu0 0.0
  %3227 = vmatpush1.msra.mxu0 0.0
  %3228 = vmatprep.subr.mxu0 0.0
  %3229 = vmatpush1.msra.mxu0 0.0
  %3230 = vmatprep.subr.mxu0 0.0
  %3231 = vmatpush1.msra.mxu0 0.0
  %3232 = vmatprep.subr.mxu0 0.0
  %3233 = vmatpush1.msra.mxu0 0.0
  %3234 = vmatprep.subr.mxu0 0.0
  %3235 = vmatpush1.msra.mxu0 0.0
  %3236 = vmatprep.subr.mxu0 0.0
  %3237 = vmatpush1.msra.mxu0 0.0
  %3238 = vmatprep.subr.mxu0 0.0
  %3239 = vmatpush1.msra.mxu0 0.0
  %3240 = vmatprep.subr.mxu0 0.0
  %3241 = vmatpush1.msra.mxu0 0.0
  %3242 = vmatprep.subr.mxu0 0.0
  %3243 = vmatpush1.msra.mxu0 0.0
  %3244 = vmatprep.subr.mxu0 0.0
  %3245 = vmatpush1.msra.mxu0 0.0
  %3246 = vmatprep.subr.mxu0 0.0
  %3247 = vmatpush1.msra.mxu0 0.0
  %3248 = vmatprep.subr.mxu0 0.0
  %3249 = vmatpush1.msra.mxu0 0.0
  %3250 = vmatprep.subr.mxu0 0.0
  %3251 = vmatpush1.msra.mxu0 0.0
  %3252 = vmatprep.subr.mxu0 0.0
  %3253 = vmatpush1.msra.mxu0 0.0
  %3254 = vmatprep.subr.mxu0 0.0
  %3255 = vmatpush1.msra.mxu0 0.0
  %3256 = vmatprep.subr.mxu0 0.0
  %3257 = vmatpush1.msra.mxu0 0.0
  %3258 = vmatprep.subr.mxu0 0.0
  %3259 = vmatpush1.msra.mxu0 0.0
  %3260 = vmatprep.subr.mxu0 0.0
  %3261 = vmatpush1.msra.mxu0 0.0
  %3262 = vmatprep.subr.mxu0 0.0
  %3263 = vmatpush1.msra.mxu0 0.0
  %3264 = vmatprep.subr.mxu0 0.0
  %3265 = vmatpush1.msra.mxu0 0.0
  %3266 = vmatprep.subr.mxu0 0.0
  %3267 = vmatpush1.msra.mxu0 0.0
  %3268 = vmatprep.mubr.f32.mxu0 0.0
  %3269 = vmatmul.mubr.f32.gmra.mrb[0].mxu0 %v3199
  %v3270 = vpop.f32.mrb[0].mxu0
  %v3271 = vadd.f32 0.0, %v3270
  %v3272 = vpop.f32.mrb[0].mxu0
  %3273 = vmatprep.mubr.f32.mxu0 0.0
  %3274 = vmatmul.mubr.f32.gmra.mrb[0].mxu0 %v3202
  %v3275 = vpop.f32.mrb[0].mxu0
  %v3276 = vadd.f32 0.0, %v3275
  %v3277 = vpop.f32.mrb[0].mxu0
  %3278 = vdwg.mxu0
  %v3279 = vadd.f32 %v2862, %v3271
  %v3280 = vadd.f32 %v2863, %v3276
  %3281 = vrot.lane.b32.xlu0 %v2434, 112
  %v3282 = vpop.permute.xlu0 %3281
  %3283 = vrot.lane.b32.xlu0 %v2434, 80
  %v3284 = vpop.permute.xlu0 %3283
  %v3285 = vsel %vm400, %v3282, 0
  %v3287 = vsel %vm400, %v3284, 0
  %3289 = vmatprep.subr.mxu0 0.0
  %3290 = vmatpush1.xpose.msra.mxu0 %v3287
  %3291 = vmatprep.subr.mxu0 0.0
  %3292 = vmatpush1.xpose.msra.mxu0 0.0
  %3293 = vmatprep.subr.mxu0 0.0
  %3294 = vmatpush1.xpose.msra.mxu0 0.0
  %3295 = vmatprep.subr.mxu0 0.0
  %3296 = vmatpush1.xpose.msra.mxu0 0.0
  %3297 = vmatprep.subr.mxu0 0.0
  %3298 = vmatpush1.xpose.msra.mxu0 0.0
  %3299 = vmatprep.subr.mxu0 0.0
  %3300 = vmatpush1.xpose.msra.mxu0 0.0
  %3301 = vmatprep.subr.mxu0 0.0
  %3302 = vmatpush1.xpose.msra.mxu0 0.0
  %3303 = vmatprep.subr.mxu0 0.0
  %3304 = vmatpush1.xpose.msra.mxu0 0.0
  %3305 = vmatprep.subr.mxu0 0.0
  %3306 = vmatpush1.xpose.msra.mxu0 0.0
  %3307 = vmatprep.subr.mxu0 0.0
  %3308 = vmatpush1.xpose.msra.mxu0 0.0
  %3309 = vmatprep.subr.mxu0 0.0
  %3310 = vmatpush1.xpose.msra.mxu0 0.0
  %3311 = vmatprep.subr.mxu0 0.0
  %3312 = vmatpush1.xpose.msra.mxu0 0.0
  %3313 = vmatprep.subr.mxu0 0.0
  %3314 = vmatpush1.xpose.msra.mxu0 0.0
  %3315 = vmatprep.subr.mxu0 0.0
  %3316 = vmatpush1.xpose.msra.mxu0 0.0
  %3317 = vmatprep.subr.mxu0 0.0
  %3318 = vmatpush1.xpose.msra.mxu0 0.0
  %3319 = vmatprep.subr.mxu0 0.0
  %3320 = vmatpush1.xpose.msra.mxu0 0.0
  %3321 = vmatprep.subr.mxu0 0.0
  %3322 = vmatpush1.xpose.msra.mxu0 0.0
  %3323 = vmatprep.subr.mxu0 0.0
  %3324 = vmatpush1.xpose.msra.mxu0 0.0
  %3325 = vmatprep.subr.mxu0 0.0
  %3326 = vmatpush1.xpose.msra.mxu0 0.0
  %3327 = vmatprep.subr.mxu0 0.0
  %3328 = vmatpush1.xpose.msra.mxu0 0.0
  %3329 = vmatprep.subr.mxu0 0.0
  %3330 = vmatpush1.xpose.msra.mxu0 0.0
  %3331 = vmatprep.subr.mxu0 0.0
  %3332 = vmatpush1.xpose.msra.mxu0 0.0
  %3333 = vmatprep.subr.mxu0 0.0
  %3334 = vmatpush1.xpose.msra.mxu0 0.0
  %3335 = vmatprep.subr.mxu0 0.0
  %3336 = vmatpush1.xpose.msra.mxu0 0.0
  %3337 = vmatprep.subr.mxu0 0.0
  %3338 = vmatpush1.xpose.msra.mxu0 0.0
  %3339 = vmatprep.subr.mxu0 0.0
  %3340 = vmatpush1.xpose.msra.mxu0 0.0
  %3341 = vmatprep.subr.mxu0 0.0
  %3342 = vmatpush1.xpose.msra.mxu0 0.0
  %3343 = vmatprep.subr.mxu0 0.0
  %3344 = vmatpush1.xpose.msra.mxu0 0.0
  %3345 = vmatprep.subr.mxu0 0.0
  %3346 = vmatpush1.xpose.msra.mxu0 0.0
  %3347 = vmatprep.subr.mxu0 0.0
  %3348 = vmatpush1.xpose.msra.mxu0 0.0
  %3349 = vmatprep.subr.mxu0 0.0
  %3350 = vmatpush1.xpose.msra.mxu0 0.0
  %3351 = vmatprep.subr.mxu0 0.0
  %3352 = vmatpush1.xpose.msra.mxu0 0.0
  %3353 = vmatprep.mubr.f32.mxu0 0.0
  %3354 = vmatmul.mubr.f32.gmra.mrb[0].mxu0 %v3285
  %v3355 = vpop.f32.mrb[0].mxu0
  %v3356 = vadd.f32 0.0, %v3355
  %v3357 = vpop.f32.mrb[0].mxu0
  %3358 = vdwg.mxu0
  %3359 = vrot.lane.b32.xlu0 %v2439, 112
  %v3360 = vpop.permute.xlu0 %3359
  %3361 = vrot.lane.b32.xlu0 %v2439, 80
  %v3362 = vpop.permute.xlu0 %3361
  %v3363 = vsel %vm400, %v3360, 0
  %v3365 = vsel %vm400, %v3362, 0
  %3367 = vmatprep.subr.mxu0 0.0
  %3368 = vmatpush1.xpose.msra.mxu0 %v3365
  %3369 = vmatprep.subr.mxu0 0.0
  %3370 = vmatpush1.xpose.msra.mxu0 0.0
  %3371 = vmatprep.subr.mxu0 0.0
  %3372 = vmatpush1.xpose.msra.mxu0 0.0
  %3373 = vmatprep.subr.mxu0 0.0
  %3374 = vmatpush1.xpose.msra.mxu0 0.0
  %3375 = vmatprep.subr.mxu0 0.0
  %3376 = vmatpush1.xpose.msra.mxu0 0.0
  %3377 = vmatprep.subr.mxu0 0.0
  %3378 = vmatpush1.xpose.msra.mxu0 0.0
  %3379 = vmatprep.subr.mxu0 0.0
  %3380 = vmatpush1.xpose.msra.mxu0 0.0
  %3381 = vmatprep.subr.mxu0 0.0
  %3382 = vmatpush1.xpose.msra.mxu0 0.0
  %3383 = vmatprep.subr.mxu0 0.0
  %3384 = vmatpush1.xpose.msra.mxu0 0.0
  %3385 = vmatprep.subr.mxu0 0.0
  %3386 = vmatpush1.xpose.msra.mxu0 0.0
  %3387 = vmatprep.subr.mxu0 0.0
  %3388 = vmatpush1.xpose.msra.mxu0 0.0
  %3389 = vmatprep.subr.mxu0 0.0
  %3390 = vmatpush1.xpose.msra.mxu0 0.0
  %3391 = vmatprep.subr.mxu0 0.0
  %3392 = vmatpush1.xpose.msra.mxu0 0.0
  %3393 = vmatprep.subr.mxu0 0.0
  %3394 = vmatpush1.xpose.msra.mxu0 0.0
  %3395 = vmatprep.subr.mxu0 0.0
  %3396 = vmatpush1.xpose.msra.mxu0 0.0
  %3397 = vmatprep.subr.mxu0 0.0
  %3398 = vmatpush1.xpose.msra.mxu0 0.0
  %3399 = vmatprep.subr.mxu0 0.0
  %3400 = vmatpush1.xpose.msra.mxu0 0.0
  %3401 = vmatprep.subr.mxu0 0.0
  %3402 = vmatpush1.xpose.msra.mxu0 0.0
  %3403 = vmatprep.subr.mxu0 0.0
  %3404 = vmatpush1.xpose.msra.mxu0 0.0
  %3405 = vmatprep.subr.mxu0 0.0
  %3406 = vmatpush1.xpose.msra.mxu0 0.0
  %3407 = vmatprep.subr.mxu0 0.0
  %3408 = vmatpush1.xpose.msra.mxu0 0.0
  %3409 = vmatprep.subr.mxu0 0.0
  %3410 = vmatpush1.xpose.msra.mxu0 0.0
  %3411 = vmatprep.subr.mxu0 0.0
  %3412 = vmatpush1.xpose.msra.mxu0 0.0
  %3413 = vmatprep.subr.mxu0 0.0
  %3414 = vmatpush1.xpose.msra.mxu0 0.0
  %3415 = vmatprep.subr.mxu0 0.0
  %3416 = vmatpush1.xpose.msra.mxu0 0.0
  %3417 = vmatprep.subr.mxu0 0.0
  %3418 = vmatpush1.xpose.msra.mxu0 0.0
  %3419 = vmatprep.subr.mxu0 0.0
  %3420 = vmatpush1.xpose.msra.mxu0 0.0
  %3421 = vmatprep.subr.mxu0 0.0
  %3422 = vmatpush1.xpose.msra.mxu0 0.0
  %3423 = vmatprep.subr.mxu0 0.0
  %3424 = vmatpush1.xpose.msra.mxu0 0.0
  %3425 = vmatprep.subr.mxu0 0.0
  %3426 = vmatpush1.xpose.msra.mxu0 0.0
  %3427 = vmatprep.subr.mxu0 0.0
  %3428 = vmatpush1.xpose.msra.mxu0 0.0
  %3429 = vmatprep.subr.mxu0 0.0
  %3430 = vmatpush1.xpose.msra.mxu0 0.0
  %3431 = vmatprep.mubr.f32.mxu0 0.0
  %3432 = vmatmul.mubr.f32.gmra.mrb[0].mxu0 %v3363
  %v3433 = vpop.f32.mrb[0].mxu0
  %v3434 = vadd.f32 0.0, %v3433
  %v3435 = vpop.f32.mrb[0].mxu0
  %3436 = vdwg.mxu0
  %v3437 = vmul.f32 %v3356, 0.35355338
  %v3438 = vmul.f32 %v3434, 0.35355338
  %v3439 = vsel %vm555, %v3437, -1e+30
  %v3440 = vsel %vm555, %v3438, -1e+30
  %v3441 = vsel %vm400, %v3439, -inf
  %3442 = vmax.xlane.f32.xlu0 %v3441
  %v3443 = vpop.xlane.xlu0 %3442
  %v3444 = vsel %vm400, %v3440, -inf
  %3445 = vmax.xlane.f32.xlu0 %v3444
  %v3446 = vpop.xlane.xlu0 %3445
  %v3447 = vsub.f32 %v3439, %v3443
  %v3448 = vsub.f32 %v3440, %v3446
  %v3449 = vmul.f32 %v3447, 1.442695
  %v3450 = vpow.pop %v3449
  %v3451 = vmul.f32 %v3448, 1.442695
  %v3452 = vpow.pop %v3451
  %v3453 = vsel %vm400, %v3450, 0.0
  %3454 = vadd.xlane.f32.xlu0 %v3453
  %v3455 = vpop.xlane.xlu0 %3454
  %v3456 = vsel %vm400, %v3452, 0.0
  %3457 = vadd.xlane.f32.xlu0 %v3456
  %v3458 = vpop.xlane.xlu0 %3457
  %v3459 = vrcp.pop %v3455
  %v3460 = vrcp.pop %v3458
  %v3461 = vmul.f32 %v3450, %v3459
  %v3462 = vmul.f32 %v3452, %v3460
  %3463 = vrot.lane.b32.xlu0 %v2434, 48
  %v3464 = vpop.permute.xlu0 %3463
  %v3467 = vsel %vm400, %v3461, 0
  %3469 = vmatprep.subr.mxu0 0.0
  %3470 = vmatpush1.msra.mxu0 %v3464
  %3471 = vmatprep.subr.mxu0 0.0
  %3472 = vmatpush1.msra.mxu0 0.0
  %3473 = vmatprep.subr.mxu0 0.0
  %3474 = vmatpush1.msra.mxu0 0.0
  %3475 = vmatprep.subr.mxu0 0.0
  %3476 = vmatpush1.msra.mxu0 0.0
  %3477 = vmatprep.subr.mxu0 0.0
  %3478 = vmatpush1.msra.mxu0 0.0
  %3479 = vmatprep.subr.mxu0 0.0
  %3480 = vmatpush1.msra.mxu0 0.0
  %3481 = vmatprep.subr.mxu0 0.0
  %3482 = vmatpush1.msra.mxu0 0.0
  %3483 = vmatprep.subr.mxu0 0.0
  %3484 = vmatpush1.msra.mxu0 0.0
  %3485 = vmatprep.subr.mxu0 0.0
  %3486 = vmatpush1.msra.mxu0 0.0
  %3487 = vmatprep.subr.mxu0 0.0
  %3488 = vmatpush1.msra.mxu0 0.0
  %3489 = vmatprep.subr.mxu0 0.0
  %3490 = vmatpush1.msra.mxu0 0.0
  %3491 = vmatprep.subr.mxu0 0.0
  %3492 = vmatpush1.msra.mxu0 0.0
  %3493 = vmatprep.subr.mxu0 0.0
  %3494 = vmatpush1.msra.mxu0 0.0
  %3495 = vmatprep.subr.mxu0 0.0
  %3496 = vmatpush1.msra.mxu0 0.0
  %3497 = vmatprep.subr.mxu0 0.0
  %3498 = vmatpush1.msra.mxu0 0.0
  %3499 = vmatprep.subr.mxu0 0.0
  %3500 = vmatpush1.msra.mxu0 0.0
  %3501 = vmatprep.subr.mxu0 0.0
  %3502 = vmatpush1.msra.mxu0 0.0
  %3503 = vmatprep.subr.mxu0 0.0
  %3504 = vmatpush1.msra.mxu0 0.0
  %3505 = vmatprep.subr.mxu0 0.0
  %3506 = vmatpush1.msra.mxu0 0.0
  %3507 = vmatprep.subr.mxu0 0.0
  %3508 = vmatpush1.msra.mxu0 0.0
  %3509 = vmatprep.subr.mxu0 0.0
  %3510 = vmatpush1.msra.mxu0 0.0
  %3511 = vmatprep.subr.mxu0 0.0
  %3512 = vmatpush1.msra.mxu0 0.0
  %3513 = vmatprep.subr.mxu0 0.0
  %3514 = vmatpush1.msra.mxu0 0.0
  %3515 = vmatprep.subr.mxu0 0.0
  %3516 = vmatpush1.msra.mxu0 0.0
  %3517 = vmatprep.subr.mxu0 0.0
  %3518 = vmatpush1.msra.mxu0 0.0
  %3519 = vmatprep.subr.mxu0 0.0
  %3520 = vmatpush1.msra.mxu0 0.0
  %3521 = vmatprep.subr.mxu0 0.0
  %3522 = vmatpush1.msra.mxu0 0.0
  %3523 = vmatprep.subr.mxu0 0.0
  %3524 = vmatpush1.msra.mxu0 0.0
  %3525 = vmatprep.subr.mxu0 0.0
  %3526 = vmatpush1.msra.mxu0 0.0
  %3527 = vmatprep.subr.mxu0 0.0
  %3528 = vmatpush1.msra.mxu0 0.0
  %3529 = vmatprep.subr.mxu0 0.0
  %3530 = vmatpush1.msra.mxu0 0.0
  %3531 = vmatprep.subr.mxu0 0.0
  %3532 = vmatpush1.msra.mxu0 0.0
  %3533 = vmatprep.mubr.f32.mxu0 0.0
  %3534 = vmatmul.mubr.f32.gmra.mrb[0].mxu0 %v3467
  %v3535 = vpop.f32.mrb[0].mxu0
  %v3536 = vadd.f32 0.0, %v3535
  %v3537 = vpop.f32.mrb[0].mxu0
  %3538 = vdwg.mxu0
  %3539 = vrot.lane.b32.xlu0 %v2439, 48
  %v3540 = vpop.permute.xlu0 %3539
  %v3543 = vsel %vm400, %v3462, 0
  %3545 = vmatprep.subr.mxu0 0.0
  %3546 = vmatpush1.msra.mxu0 %v3540
  %3547 = vmatprep.subr.mxu0 0.0
  %3548 = vmatpush1.msra.mxu0 0.0
  %3549 = vmatprep.subr.mxu0 0.0
  %3550 = vmatpush1.msra.mxu0 0.0
  %3551 = vmatprep.subr.mxu0 0.0
  %3552 = vmatpush1.msra.mxu0 0.0
  %3553 = vmatprep.subr.mxu0 0.0
  %3554 = vmatpush1.msra.mxu0 0.0
  %3555 = vmatprep.subr.mxu0 0.0
  %3556 = vmatpush1.msra.mxu0 0.0
  %3557 = vmatprep.subr.mxu0 0.0
  %3558 = vmatpush1.msra.mxu0 0.0
  %3559 = vmatprep.subr.mxu0 0.0
  %3560 = vmatpush1.msra.mxu0 0.0
  %3561 = vmatprep.subr.mxu0 0.0
  %3562 = vmatpush1.msra.mxu0 0.0
  %3563 = vmatprep.subr.mxu0 0.0
  %3564 = vmatpush1.msra.mxu0 0.0
  %3565 = vmatprep.subr.mxu0 0.0
  %3566 = vmatpush1.msra.mxu0 0.0
  %3567 = vmatprep.subr.mxu0 0.0
  %3568 = vmatpush1.msra.mxu0 0.0
  %3569 = vmatprep.subr.mxu0 0.0
  %3570 = vmatpush1.msra.mxu0 0.0
  %3571 = vmatprep.subr.mxu0 0.0
  %3572 = vmatpush1.msra.mxu0 0.0
  %3573 = vmatprep.subr.mxu0 0.0
  %3574 = vmatpush1.msra.mxu0 0.0
  %3575 = vmatprep.subr.mxu0 0.0
  %3576 = vmatpush1.msra.mxu0 0.0
  %3577 = vmatprep.subr.mxu0 0.0
  %3578 = vmatpush1.msra.mxu0 0.0
  %3579 = vmatprep.subr.mxu0 0.0
  %3580 = vmatpush1.msra.mxu0 0.0
  %3581 = vmatprep.subr.mxu0 0.0
  %3582 = vmatpush1.msra.mxu0 0.0
  %3583 = vmatprep.subr.mxu0 0.0
  %3584 = vmatpush1.msra.mxu0 0.0
  %3585 = vmatprep.subr.mxu0 0.0
  %3586 = vmatpush1.msra.mxu0 0.0
  %3587 = vmatprep.subr.mxu0 0.0
  %3588 = vmatpush1.msra.mxu0 0.0
  %3589 = vmatprep.subr.mxu0 0.0
  %3590 = vmatpush1.msra.mxu0 0.0
  %3591 = vmatprep.subr.mxu0 0.0
  %3592 = vmatpush1.msra.mxu0 0.0
  %3593 = vmatprep.subr.mxu0 0.0
  %3594 = vmatpush1.msra.mxu0 0.0
  %3595 = vmatprep.subr.mxu0 0.0
  %3596 = vmatpush1.msra.mxu0 0.0
  %3597 = vmatprep.subr.mxu0 0.0
  %3598 = vmatpush1.msra.mxu0 0.0
  %3599 = vmatprep.subr.mxu0 0.0
  %3600 = vmatpush1.msra.mxu0 0.0
  %3601 = vmatprep.subr.mxu0 0.0
  %3602 = vmatpush1.msra.mxu0 0.0
  %3603 = vmatprep.subr.mxu0 0.0
  %3604 = vmatpush1.msra.mxu0 0.0
  %3605 = vmatprep.subr.mxu0 0.0
  %3606 = vmatpush1.msra.mxu0 0.0
  %3607 = vmatprep.subr.mxu0 0.0
  %3608 = vmatpush1.msra.mxu0 0.0
  %3609 = vmatprep.mubr.f32.mxu0 0.0
  %3610 = vmatmul.mubr.f32.gmra.mrb[0].mxu0 %v3543
  %v3611 = vpop.f32.mrb[0].mxu0
  %v3612 = vadd.f32 0.0, %v3611
  %v3613 = vpop.f32.mrb[0].mxu0
  %3614 = vdwg.mxu0
  %v3616 = vsel %vm400, %v3536, 0
  %v3619 = vsel %vm400, %v3612, 0
  %3621 = vmatprep.subr.mxu0 0.0
  %3622 = vmatpush1.msra.mxu0 %v2292
  %3623 = vmatprep.subr.mxu0 0.0
  %3624 = vmatpush1.msra.mxu0 0.0
  %3625 = vmatprep.subr.mxu0 0.0
  %3626 = vmatpush1.msra.mxu0 0.0
  %3627 = vmatprep.subr.mxu0 0.0
  %3628 = vmatpush1.msra.mxu0 0.0
  %3629 = vmatprep.subr.mxu0 0.0
  %3630 = vmatpush1.msra.mxu0 0.0
  %3631 = vmatprep.subr.mxu0 0.0
  %3632 = vmatpush1.msra.mxu0 0.0
  %3633 = vmatprep.subr.mxu0 0.0
  %3634 = vmatpush1.msra.mxu0 0.0
  %3635 = vmatprep.subr.mxu0 0.0
  %3636 = vmatpush1.msra.mxu0 0.0
  %3637 = vmatprep.subr.mxu0 0.0
  %3638 = vmatpush1.msra.mxu0 0.0
  %3639 = vmatprep.subr.mxu0 0.0
  %3640 = vmatpush1.msra.mxu0 0.0
  %3641 = vmatprep.subr.mxu0 0.0
  %3642 = vmatpush1.msra.mxu0 0.0
  %3643 = vmatprep.subr.mxu0 0.0
  %3644 = vmatpush1.msra.mxu0 0.0
  %3645 = vmatprep.subr.mxu0 0.0
  %3646 = vmatpush1.msra.mxu0 0.0
  %3647 = vmatprep.subr.mxu0 0.0
  %3648 = vmatpush1.msra.mxu0 0.0
  %3649 = vmatprep.subr.mxu0 0.0
  %3650 = vmatpush1.msra.mxu0 0.0
  %3651 = vmatprep.subr.mxu0 0.0
  %3652 = vmatpush1.msra.mxu0 0.0
  %3653 = vmatprep.subr.mxu0 0.0
  %3654 = vmatpush1.msra.mxu0 0.0
  %3655 = vmatprep.subr.mxu0 0.0
  %3656 = vmatpush1.msra.mxu0 0.0
  %3657 = vmatprep.subr.mxu0 0.0
  %3658 = vmatpush1.msra.mxu0 0.0
  %3659 = vmatprep.subr.mxu0 0.0
  %3660 = vmatpush1.msra.mxu0 0.0
  %3661 = vmatprep.subr.mxu0 0.0
  %3662 = vmatpush1.msra.mxu0 0.0
  %3663 = vmatprep.subr.mxu0 0.0
  %3664 = vmatpush1.msra.mxu0 0.0
  %3665 = vmatprep.subr.mxu0 0.0
  %3666 = vmatpush1.msra.mxu0 0.0
  %3667 = vmatprep.subr.mxu0 0.0
  %3668 = vmatpush1.msra.mxu0 0.0
  %3669 = vmatprep.subr.mxu0 0.0
  %3670 = vmatpush1.msra.mxu0 0.0
  %3671 = vmatprep.subr.mxu0 0.0
  %3672 = vmatpush1.msra.mxu0 0.0
  %3673 = vmatprep.subr.mxu0 0.0
  %3674 = vmatpush1.msra.mxu0 0.0
  %3675 = vmatprep.subr.mxu0 0.0
  %3676 = vmatpush1.msra.mxu0 0.0
  %3677 = vmatprep.subr.mxu0 0.0
  %3678 = vmatpush1.msra.mxu0 0.0
  %3679 = vmatprep.subr.mxu0 0.0
  %3680 = vmatpush1.msra.mxu0 0.0
  %3681 = vmatprep.subr.mxu0 0.0
  %3682 = vmatpush1.msra.mxu0 0.0
  %3683 = vmatprep.subr.mxu0 0.0
  %3684 = vmatpush1.msra.mxu0 0.0
  %3685 = vmatprep.mubr.f32.mxu0 0.0
  %3686 = vmatmul.mubr.f32.gmra.mrb[0].mxu0 %v3616
  %v3687 = vpop.f32.mrb[0].mxu0
  %v3688 = vadd.f32 0.0, %v3687
  %v3689 = vpop.f32.mrb[0].mxu0
  %3690 = vmatprep.mubr.f32.mxu0 0.0
  %3691 = vmatmul.mubr.f32.gmra.mrb[0].mxu0 %v3619
  %v3692 = vpop.f32.mrb[0].mxu0
  %v3693 = vadd.f32 0.0, %v3692
  %v3694 = vpop.f32.mrb[0].mxu0
  %3695 = vdwg.mxu0
  %v3696 = vadd.f32 %v3279, %v3688
  %v3697 = vadd.f32 %v3280, %v3693
  %3698 = vrot.lane.b32.xlu0 %v2434, 104
  %v3699 = vpop.permute.xlu0 %3698
  %3700 = vrot.lane.b32.xlu0 %v2434, 72
  %v3701 = vpop.permute.xlu0 %3700
  %v3702 = vsel %vm400, %v3699, 0
  %v3704 = vsel %vm400, %v3701, 0
  %3706 = vmatprep.subr.mxu0 0.0
  %3707 = vmatpush1.xpose.msra.mxu0 %v3704
  %3708 = vmatprep.subr.mxu0 0.0
  %3709 = vmatpush1.xpose.msra.mxu0 0.0
  %3710 = vmatprep.subr.mxu0 0.0
  %3711 = vmatpush1.xpose.msra.mxu0 0.0
  %3712 = vmatprep.subr.mxu0 0.0
  %3713 = vmatpush1.xpose.msra.mxu0 0.0
  %3714 = vmatprep.subr.mxu0 0.0
  %3715 = vmatpush1.xpose.msra.mxu0 0.0
  %3716 = vmatprep.subr.mxu0 0.0
  %3717 = vmatpush1.xpose.msra.mxu0 0.0
  %3718 = vmatprep.subr.mxu0 0.0
  %3719 = vmatpush1.xpose.msra.mxu0 0.0
  %3720 = vmatprep.subr.mxu0 0.0
  %3721 = vmatpush1.xpose.msra.mxu0 0.0
  %3722 = vmatprep.subr.mxu0 0.0
  %3723 = vmatpush1.xpose.msra.mxu0 0.0
  %3724 = vmatprep.subr.mxu0 0.0
  %3725 = vmatpush1.xpose.msra.mxu0 0.0
  %3726 = vmatprep.subr.mxu0 0.0
  %3727 = vmatpush1.xpose.msra.mxu0 0.0
  %3728 = vmatprep.subr.mxu0 0.0
  %3729 = vmatpush1.xpose.msra.mxu0 0.0
  %3730 = vmatprep.subr.mxu0 0.0
  %3731 = vmatpush1.xpose.msra.mxu0 0.0
  %3732 = vmatprep.subr.mxu0 0.0
  %3733 = vmatpush1.xpose.msra.mxu0 0.0
  %3734 = vmatprep.subr.mxu0 0.0
  %3735 = vmatpush1.xpose.msra.mxu0 0.0
  %3736 = vmatprep.subr.mxu0 0.0
  %3737 = vmatpush1.xpose.msra.mxu0 0.0
  %3738 = vmatprep.subr.mxu0 0.0
  %3739 = vmatpush1.xpose.msra.mxu0 0.0
  %3740 = vmatprep.subr.mxu0 0.0
  %3741 = vmatpush1.xpose.msra.mxu0 0.0
  %3742 = vmatprep.subr.mxu0 0.0
  %3743 = vmatpush1.xpose.msra.mxu0 0.0
  %3744 = vmatprep.subr.mxu0 0.0
  %3745 = vmatpush1.xpose.msra.mxu0 0.0
  %3746 = vmatprep.subr.mxu0 0.0
  %3747 = vmatpush1.xpose.msra.mxu0 0.0
  %3748 = vmatprep.subr.mxu0 0.0
  %3749 = vmatpush1.xpose.msra.mxu0 0.0
  %3750 = vmatprep.subr.mxu0 0.0
  %3751 = vmatpush1.xpose.msra.mxu0 0.0
  %3752 = vmatprep.subr.mxu0 0.0
  %3753 = vmatpush1.xpose.msra.mxu0 0.0
  %3754 = vmatprep.subr.mxu0 0.0
  %3755 = vmatpush1.xpose.msra.mxu0 0.0
  %3756 = vmatprep.subr.mxu0 0.0
  %3757 = vmatpush1.xpose.msra.mxu0 0.0
  %3758 = vmatprep.subr.mxu0 0.0
  %3759 = vmatpush1.xpose.msra.mxu0 0.0
  %3760 = vmatprep.subr.mxu0 0.0
  %3761 = vmatpush1.xpose.msra.mxu0 0.0
  %3762 = vmatprep.subr.mxu0 0.0
  %3763 = vmatpush1.xpose.msra.mxu0 0.0
  %3764 = vmatprep.subr.mxu0 0.0
  %3765 = vmatpush1.xpose.msra.mxu0 0.0
  %3766 = vmatprep.subr.mxu0 0.0
  %3767 = vmatpush1.xpose.msra.mxu0 0.0
  %3768 = vmatprep.subr.mxu0 0.0
  %3769 = vmatpush1.xpose.msra.mxu0 0.0
  %3770 = vmatprep.mubr.f32.mxu0 0.0
  %3771 = vmatmul.mubr.f32.gmra.mrb[0].mxu0 %v3702
  %v3772 = vpop.f32.mrb[0].mxu0
  %v3773 = vadd.f32 0.0, %v3772
  %v3774 = vpop.f32.mrb[0].mxu0
  %3775 = vdwg.mxu0
  %3776 = vrot.lane.b32.xlu0 %v2439, 104
  %v3777 = vpop.permute.xlu0 %3776
  %3778 = vrot.lane.b32.xlu0 %v2439, 72
  %v3779 = vpop.permute.xlu0 %3778
  %v3780 = vsel %vm400, %v3777, 0
  %v3782 = vsel %vm400, %v3779, 0
  %3784 = vmatprep.subr.mxu0 0.0
  %3785 = vmatpush1.xpose.msra.mxu0 %v3782
  %3786 = vmatprep.subr.mxu0 0.0
  %3787 = vmatpush1.xpose.msra.mxu0 0.0
  %3788 = vmatprep.subr.mxu0 0.0
  %3789 = vmatpush1.xpose.msra.mxu0 0.0
  %3790 = vmatprep.subr.mxu0 0.0
  %3791 = vmatpush1.xpose.msra.mxu0 0.0
  %3792 = vmatprep.subr.mxu0 0.0
  %3793 = vmatpush1.xpose.msra.mxu0 0.0
  %3794 = vmatprep.subr.mxu0 0.0
  %3795 = vmatpush1.xpose.msra.mxu0 0.0
  %3796 = vmatprep.subr.mxu0 0.0
  %3797 = vmatpush1.xpose.msra.mxu0 0.0
  %3798 = vmatprep.subr.mxu0 0.0
  %3799 = vmatpush1.xpose.msra.mxu0 0.0
  %3800 = vmatprep.subr.mxu0 0.0
  %3801 = vmatpush1.xpose.msra.mxu0 0.0
  %3802 = vmatprep.subr.mxu0 0.0
  %3803 = vmatpush1.xpose.msra.mxu0 0.0
  %3804 = vmatprep.subr.mxu0 0.0
  %3805 = vmatpush1.xpose.msra.mxu0 0.0
  %3806 = vmatprep.subr.mxu0 0.0
  %3807 = vmatpush1.xpose.msra.mxu0 0.0
  %3808 = vmatprep.subr.mxu0 0.0
  %3809 = vmatpush1.xpose.msra.mxu0 0.0
  %3810 = vmatprep.subr.mxu0 0.0
  %3811 = vmatpush1.xpose.msra.mxu0 0.0
  %3812 = vmatprep.subr.mxu0 0.0
  %3813 = vmatpush1.xpose.msra.mxu0 0.0
  %3814 = vmatprep.subr.mxu0 0.0
  %3815 = vmatpush1.xpose.msra.mxu0 0.0
  %3816 = vmatprep.subr.mxu0 0.0
  %3817 = vmatpush1.xpose.msra.mxu0 0.0
  %3818 = vmatprep.subr.mxu0 0.0
  %3819 = vmatpush1.xpose.msra.mxu0 0.0
  %3820 = vmatprep.subr.mxu0 0.0
  %3821 = vmatpush1.xpose.msra.mxu0 0.0
  %3822 = vmatprep.subr.mxu0 0.0
  %3823 = vmatpush1.xpose.msra.mxu0 0.0
  %3824 = vmatprep.subr.mxu0 0.0
  %3825 = vmatpush1.xpose.msra.mxu0 0.0
  %3826 = vmatprep.subr.mxu0 0.0
  %3827 = vmatpush1.xpose.msra.mxu0 0.0
  %3828 = vmatprep.subr.mxu0 0.0
  %3829 = vmatpush1.xpose.msra.mxu0 0.0
  %3830 = vmatprep.subr.mxu0 0.0
  %3831 = vmatpush1.xpose.msra.mxu0 0.0
  %3832 = vmatprep.subr.mxu0 0.0
  %3833 = vmatpush1.xpose.msra.mxu0 0.0
  %3834 = vmatprep.subr.mxu0 0.0
  %3835 = vmatpush1.xpose.msra.mxu0 0.0
  %3836 = vmatprep.subr.mxu0 0.0
  %3837 = vmatpush1.xpose.msra.mxu0 0.0
  %3838 = vmatprep.subr.mxu0 0.0
  %3839 = vmatpush1.xpose.msra.mxu0 0.0
  %3840 = vmatprep.subr.mxu0 0.0
  %3841 = vmatpush1.xpose.msra.mxu0 0.0
  %3842 = vmatprep.subr.mxu0 0.0
  %3843 = vmatpush1.xpose.msra.mxu0 0.0
  %3844 = vmatprep.subr.mxu0 0.0
  %3845 = vmatpush1.xpose.msra.mxu0 0.0
  %3846 = vmatprep.subr.mxu0 0.0
  %3847 = vmatpush1.xpose.msra.mxu0 0.0
  %3848 = vmatprep.mubr.f32.mxu0 0.0
  %3849 = vmatmul.mubr.f32.gmra.mrb[0].mxu0 %v3780
  %v3850 = vpop.f32.mrb[0].mxu0
  %v3851 = vadd.f32 0.0, %v3850
  %v3852 = vpop.f32.mrb[0].mxu0
  %3853 = vdwg.mxu0
  %v3854 = vmul.f32 %v3773, 0.35355338
  %v3855 = vmul.f32 %v3851, 0.35355338
  %v3856 = vsel %vm555, %v3854, -1e+30
  %v3857 = vsel %vm555, %v3855, -1e+30
  %v3858 = vsel %vm400, %v3856, -inf
  %3859 = vmax.xlane.f32.xlu0 %v3858
  %v3860 = vpop.xlane.xlu0 %3859
  %v3861 = vsel %vm400, %v3857, -inf
  %3862 = vmax.xlane.f32.xlu0 %v3861
  %v3863 = vpop.xlane.xlu0 %3862
  %v3864 = vsub.f32 %v3856, %v3860
  %v3865 = vsub.f32 %v3857, %v3863
  %v3866 = vmul.f32 %v3864, 1.442695
  %v3867 = vpow.pop %v3866
  %v3868 = vmul.f32 %v3865, 1.442695
  %v3869 = vpow.pop %v3868
  %v3870 = vsel %vm400, %v3867, 0.0
  %3871 = vadd.xlane.f32.xlu0 %v3870
  %v3872 = vpop.xlane.xlu0 %3871
  %v3873 = vsel %vm400, %v3869, 0.0
  %3874 = vadd.xlane.f32.xlu0 %v3873
  %v3875 = vpop.xlane.xlu0 %3874
  %v3876 = vrcp.pop %v3872
  %v3877 = vrcp.pop %v3875
  %v3878 = vmul.f32 %v3867, %v3876
  %v3879 = vmul.f32 %v3869, %v3877
  %3880 = vrot.lane.b32.xlu0 %v2434, 40
  %v3881 = vpop.permute.xlu0 %3880
  %v3884 = vsel %vm400, %v3878, 0
  %3886 = vmatprep.subr.mxu0 0.0
  %3887 = vmatpush1.msra.mxu0 %v3881
  %3888 = vmatprep.subr.mxu0 0.0
  %3889 = vmatpush1.msra.mxu0 0.0
  %3890 = vmatprep.subr.mxu0 0.0
  %3891 = vmatpush1.msra.mxu0 0.0
  %3892 = vmatprep.subr.mxu0 0.0
  %3893 = vmatpush1.msra.mxu0 0.0
  %3894 = vmatprep.subr.mxu0 0.0
  %3895 = vmatpush1.msra.mxu0 0.0
  %3896 = vmatprep.subr.mxu0 0.0
  %3897 = vmatpush1.msra.mxu0 0.0
  %3898 = vmatprep.subr.mxu0 0.0
  %3899 = vmatpush1.msra.mxu0 0.0
  %3900 = vmatprep.subr.mxu0 0.0
  %3901 = vmatpush1.msra.mxu0 0.0
  %3902 = vmatprep.subr.mxu0 0.0
  %3903 = vmatpush1.msra.mxu0 0.0
  %3904 = vmatprep.subr.mxu0 0.0
  %3905 = vmatpush1.msra.mxu0 0.0
  %3906 = vmatprep.subr.mxu0 0.0
  %3907 = vmatpush1.msra.mxu0 0.0
  %3908 = vmatprep.subr.mxu0 0.0
  %3909 = vmatpush1.msra.mxu0 0.0
  %3910 = vmatprep.subr.mxu0 0.0
  %3911 = vmatpush1.msra.mxu0 0.0
  %3912 = vmatprep.subr.mxu0 0.0
  %3913 = vmatpush1.msra.mxu0 0.0
  %3914 = vmatprep.subr.mxu0 0.0
  %3915 = vmatpush1.msra.mxu0 0.0
  %3916 = vmatprep.subr.mxu0 0.0
  %3917 = vmatpush1.msra.mxu0 0.0
  %3918 = vmatprep.subr.mxu0 0.0
  %3919 = vmatpush1.msra.mxu0 0.0
  %3920 = vmatprep.subr.mxu0 0.0
  %3921 = vmatpush1.msra.mxu0 0.0
  %3922 = vmatprep.subr.mxu0 0.0
  %3923 = vmatpush1.msra.mxu0 0.0
  %3924 = vmatprep.subr.mxu0 0.0
  %3925 = vmatpush1.msra.mxu0 0.0
  %3926 = vmatprep.subr.mxu0 0.0
  %3927 = vmatpush1.msra.mxu0 0.0
  %3928 = vmatprep.subr.mxu0 0.0
  %3929 = vmatpush1.msra.mxu0 0.0
  %3930 = vmatprep.subr.mxu0 0.0
  %3931 = vmatpush1.msra.mxu0 0.0
  %3932 = vmatprep.subr.mxu0 0.0
  %3933 = vmatpush1.msra.mxu0 0.0
  %3934 = vmatprep.subr.mxu0 0.0
  %3935 = vmatpush1.msra.mxu0 0.0
  %3936 = vmatprep.subr.mxu0 0.0
  %3937 = vmatpush1.msra.mxu0 0.0
  %3938 = vmatprep.subr.mxu0 0.0
  %3939 = vmatpush1.msra.mxu0 0.0
  %3940 = vmatprep.subr.mxu0 0.0
  %3941 = vmatpush1.msra.mxu0 0.0
  %3942 = vmatprep.subr.mxu0 0.0
  %3943 = vmatpush1.msra.mxu0 0.0
  %3944 = vmatprep.subr.mxu0 0.0
  %3945 = vmatpush1.msra.mxu0 0.0
  %3946 = vmatprep.subr.mxu0 0.0
  %3947 = vmatpush1.msra.mxu0 0.0
  %3948 = vmatprep.subr.mxu0 0.0
  %3949 = vmatpush1.msra.mxu0 0.0
  %3950 = vmatprep.mubr.f32.mxu0 0.0
  %3951 = vmatmul.mubr.f32.gmra.mrb[0].mxu0 %v3884
  %v3952 = vpop.f32.mrb[0].mxu0
  %v3953 = vadd.f32 0.0, %v3952
  %v3954 = vpop.f32.mrb[0].mxu0
  %3955 = vdwg.mxu0
  %3956 = vrot.lane.b32.xlu0 %v2439, 40
  %v3957 = vpop.permute.xlu0 %3956
  %v3960 = vsel %vm400, %v3879, 0
  %3962 = vmatprep.subr.mxu0 0.0
  %3963 = vmatpush1.msra.mxu0 %v3957
  %3964 = vmatprep.subr.mxu0 0.0
  %3965 = vmatpush1.msra.mxu0 0.0
  %3966 = vmatprep.subr.mxu0 0.0
  %3967 = vmatpush1.msra.mxu0 0.0
  %3968 = vmatprep.subr.mxu0 0.0
  %3969 = vmatpush1.msra.mxu0 0.0
  %3970 = vmatprep.subr.mxu0 0.0
  %3971 = vmatpush1.msra.mxu0 0.0
  %3972 = vmatprep.subr.mxu0 0.0
  %3973 = vmatpush1.msra.mxu0 0.0
  %3974 = vmatprep.subr.mxu0 0.0
  %3975 = vmatpush1.msra.mxu0 0.0
  %3976 = vmatprep.subr.mxu0 0.0
  %3977 = vmatpush1.msra.mxu0 0.0
  %3978 = vmatprep.subr.mxu0 0.0
  %3979 = vmatpush1.msra.mxu0 0.0
  %3980 = vmatprep.subr.mxu0 0.0
  %3981 = vmatpush1.msra.mxu0 0.0
  %3982 = vmatprep.subr.mxu0 0.0
  %3983 = vmatpush1.msra.mxu0 0.0
  %3984 = vmatprep.subr.mxu0 0.0
  %3985 = vmatpush1.msra.mxu0 0.0
  %3986 = vmatprep.subr.mxu0 0.0
  %3987 = vmatpush1.msra.mxu0 0.0
  %3988 = vmatprep.subr.mxu0 0.0
  %3989 = vmatpush1.msra.mxu0 0.0
  %3990 = vmatprep.subr.mxu0 0.0
  %3991 = vmatpush1.msra.mxu0 0.0
  %3992 = vmatprep.subr.mxu0 0.0
  %3993 = vmatpush1.msra.mxu0 0.0
  %3994 = vmatprep.subr.mxu0 0.0
  %3995 = vmatpush1.msra.mxu0 0.0
  %3996 = vmatprep.subr.mxu0 0.0
  %3997 = vmatpush1.msra.mxu0 0.0
  %3998 = vmatprep.subr.mxu0 0.0
  %3999 = vmatpush1.msra.mxu0 0.0
  %4000 = vmatprep.subr.mxu0 0.0
  %4001 = vmatpush1.msra.mxu0 0.0
  %4002 = vmatprep.subr.mxu0 0.0
  %4003 = vmatpush1.msra.mxu0 0.0
  %4004 = vmatprep.subr.mxu0 0.0
  %4005 = vmatpush1.msra.mxu0 0.0
  %4006 = vmatprep.subr.mxu0 0.0
  %4007 = vmatpush1.msra.mxu0 0.0
  %4008 = vmatprep.subr.mxu0 0.0
  %4009 = vmatpush1.msra.mxu0 0.0
  %4010 = vmatprep.subr.mxu0 0.0
  %4011 = vmatpush1.msra.mxu0 0.0
  %4012 = vmatprep.subr.mxu0 0.0
  %4013 = vmatpush1.msra.mxu0 0.0
  %4014 = vmatprep.subr.mxu0 0.0
  %4015 = vmatpush1.msra.mxu0 0.0
  %4016 = vmatprep.subr.mxu0 0.0
  %4017 = vmatpush1.msra.mxu0 0.0
  %4018 = vmatprep.subr.mxu0 0.0
  %4019 = vmatpush1.msra.mxu0 0.0
  %4020 = vmatprep.subr.mxu0 0.0
  %4021 = vmatpush1.msra.mxu0 0.0
  %4022 = vmatprep.subr.mxu0 0.0
  %4023 = vmatpush1.msra.mxu0 0.0
  %4024 = vmatprep.subr.mxu0 0.0
  %4025 = vmatpush1.msra.mxu0 0.0
  %4026 = vmatprep.mubr.f32.mxu0 0.0
  %4027 = vmatmul.mubr.f32.gmra.mrb[0].mxu0 %v3960
  %v4028 = vpop.f32.mrb[0].mxu0
  %v4029 = vadd.f32 0.0, %v4028
  %v4030 = vpop.f32.mrb[0].mxu0
  %4031 = vdwg.mxu0
  %v4033 = vsel %vm400, %v3953, 0
  %v4036 = vsel %vm400, %v4029, 0
  %4038 = vmatprep.subr.mxu0 0.0
  %4039 = vmatpush1.msra.mxu0 %v2293
  %4040 = vmatprep.subr.mxu0 0.0
  %4041 = vmatpush1.msra.mxu0 0.0
  %4042 = vmatprep.subr.mxu0 0.0
  %4043 = vmatpush1.msra.mxu0 0.0
  %4044 = vmatprep.subr.mxu0 0.0
  %4045 = vmatpush1.msra.mxu0 0.0
  %4046 = vmatprep.subr.mxu0 0.0
  %4047 = vmatpush1.msra.mxu0 0.0
  %4048 = vmatprep.subr.mxu0 0.0
  %4049 = vmatpush1.msra.mxu0 0.0
  %4050 = vmatprep.subr.mxu0 0.0
  %4051 = vmatpush1.msra.mxu0 0.0
  %4052 = vmatprep.subr.mxu0 0.0
  %4053 = vmatpush1.msra.mxu0 0.0
  %4054 = vmatprep.subr.mxu0 0.0
  %4055 = vmatpush1.msra.mxu0 0.0
  %4056 = vmatprep.subr.mxu0 0.0
  %4057 = vmatpush1.msra.mxu0 0.0
  %4058 = vmatprep.subr.mxu0 0.0
  %4059 = vmatpush1.msra.mxu0 0.0
  %4060 = vmatprep.subr.mxu0 0.0
  %4061 = vmatpush1.msra.mxu0 0.0
  %4062 = vmatprep.subr.mxu0 0.0
  %4063 = vmatpush1.msra.mxu0 0.0
  %4064 = vmatprep.subr.mxu0 0.0
  %4065 = vmatpush1.msra.mxu0 0.0
  %4066 = vmatprep.subr.mxu0 0.0
  %4067 = vmatpush1.msra.mxu0 0.0
  %4068 = vmatprep.subr.mxu0 0.0
  %4069 = vmatpush1.msra.mxu0 0.0
  %4070 = vmatprep.subr.mxu0 0.0
  %4071 = vmatpush1.msra.mxu0 0.0
  %4072 = vmatprep.subr.mxu0 0.0
  %4073 = vmatpush1.msra.mxu0 0.0
  %4074 = vmatprep.subr.mxu0 0.0
  %4075 = vmatpush1.msra.mxu0 0.0
  %4076 = vmatprep.subr.mxu0 0.0
  %4077 = vmatpush1.msra.mxu0 0.0
  %4078 = vmatprep.subr.mxu0 0.0
  %4079 = vmatpush1.msra.mxu0 0.0
  %4080 = vmatprep.subr.mxu0 0.0
  %4081 = vmatpush1.msra.mxu0 0.0
  %4082 = vmatprep.subr.mxu0 0.0
  %4083 = vmatpush1.msra.mxu0 0.0
  %4084 = vmatprep.subr.mxu0 0.0
  %4085 = vmatpush1.msra.mxu0 0.0
  %4086 = vmatprep.subr.mxu0 0.0
  %4087 = vmatpush1.msra.mxu0 0.0
  %4088 = vmatprep.subr.mxu0 0.0
  %4089 = vmatpush1.msra.mxu0 0.0
  %4090 = vmatprep.subr.mxu0 0.0
  %4091 = vmatpush1.msra.mxu0 0.0
  %4092 = vmatprep.subr.mxu0 0.0
  %4093 = vmatpush1.msra.mxu0 0.0
  %4094 = vmatprep.subr.mxu0 0.0
  %4095 = vmatpush1.msra.mxu0 0.0
  %4096 = vmatprep.subr.mxu0 0.0
  %4097 = vmatpush1.msra.mxu0 0.0
  %4098 = vmatprep.subr.mxu0 0.0
  %4099 = vmatpush1.msra.mxu0 0.0
  %4100 = vmatprep.subr.mxu0 0.0
  %4101 = vmatpush1.msra.mxu0 0.0
  %4102 = vmatprep.mubr.f32.mxu0 0.0
  %4103 = vmatmul.mubr.f32.gmra.mrb[0].mxu0 %v4033
  %v4104 = vpop.f32.mrb[0].mxu0
  %v4105 = vadd.f32 0.0, %v4104
  %v4106 = vpop.f32.mrb[0].mxu0
  %4107 = vmatprep.mubr.f32.mxu0 0.0
  %4108 = vmatmul.mubr.f32.gmra.mrb[0].mxu0 %v4036
  %v4109 = vpop.f32.mrb[0].mxu0
  %v4110 = vadd.f32 0.0, %v4109
  %v4111 = vpop.f32.mrb[0].mxu0
  %4112 = vdwg.mxu0
  %v4113 = vadd.f32 %v3696, %v4105
  %v4114 = vadd.f32 %v3697, %v4110
  %v4115 = vadd.f32 %v2282, %v4113
  %v4116 = vadd.f32 %v2283, %v4114
  %v4117 = vsel %vm260, %v4115, 0.0
  %4118 = vadd.xlane.f32.xlu0 %v4117
  %v4119 = vpop.xlane.xlu0 %4118
  %v4120 = vsel %vm260, %v4116, 0.0
  %4121 = vadd.xlane.f32.xlu0 %v4120
  %v4122 = vpop.xlane.xlu0 %4121
  %v4123 = vmul.f32 %v4119, %v267
  %v4124 = vmul.f32 %v4122, %v267
  %v4125 = vsub.f32 %v4115, %v4123
  %v4126 = vsub.f32 %v4116, %v4124
  %v4127 = vmul.f32 %v4125, %v4125
  %v4128 = vmul.f32 %v4126, %v4126
  %v4129 = vsel %vm260, %v4127, 0.0
  %4130 = vadd.xlane.f32.xlu0 %v4129
  %v4131 = vpop.xlane.xlu0 %4130
  %v4132 = vsel %vm260, %v4128, 0.0
  %4133 = vadd.xlane.f32.xlu0 %v4132
  %v4134 = vpop.xlane.xlu0 %4133
  %v4135 = vmul.f32 %v4131, %v267
  %v4136 = vmul.f32 %v4134, %v267
  %v4137 = vadd.f32 %v4135, 1e-05
  %v4138 = vadd.f32 %v4136, 1e-05
  %v4139 = vrsqrt.pop %v4137
  %v4140 = vrsqrt.pop %v4138
  %v4141 = vmul.f32 %v4125, %v4139
  %v4142 = vmul.f32 %v4126, %v4140
  %v4144 = vlaneseq
  %v4145 = vshrl.u32 %v4144, 7
  %v4146 = vsub.s32 0, %v4145
  %v4147 = vrot.slane %v2295, %v4146
  %v4149 = vmul.f32 %v4141, %v4147
  %v4150 = vmul.f32 %v4142, %v4147
  %v4152 = vlaneseq
  %v4153 = vshrl.u32 %v4152, 7
  %v4154 = vsub.s32 0, %v4153
  %v4155 = vrot.slane %v2296, %v4154
  %v4157 = vadd.f32 %v4149, %v4155
  %v4158 = vadd.f32 %v4150, %v4155
  %v4160 = vlaneseq
  %v4161 = vshrl.u32 %v4160, 7
  %v4162 = vsub.s32 0, %v4161
  %v4163 = vrot.slane %v2301, %v4162
  %v4166 = vsel %vm260, %v4157, 0
  %v4169 = vsel %vm260, %v4158, 0
  %4171 = vmatprep.subr.mxu0 0.0
  %4172 = vmatpush1.msra.mxu0 %v2297
  %4173 = vmatprep.subr.mxu0 0.0
  %4174 = vmatpush1.msra.mxu0 %v2298
  %4175 = vmatprep.subr.mxu0 0.0
  %4176 = vmatpush1.msra.mxu0 %v2299
  %4177 = vmatprep.subr.mxu0 0.0
  %4178 = vmatpush1.msra.mxu0 %v2300
  %4179 = vmatprep.subr.mxu0 0.0
  %4180 = vmatpush1.msra.mxu0 0.0
  %4181 = vmatprep.subr.mxu0 0.0
  %4182 = vmatpush1.msra.mxu0 0.0
  %4183 = vmatprep.subr.mxu0 0.0
  %4184 = vmatpush1.msra.mxu0 0.0
  %4185 = vmatprep.subr.mxu0 0.0
  %4186 = vmatpush1.msra.mxu0 0.0
  %4187 = vmatprep.subr.mxu0 0.0
  %4188 = vmatpush1.msra.mxu0 0.0
  %4189 = vmatprep.subr.mxu0 0.0
  %4190 = vmatpush1.msra.mxu0 0.0
  %4191 = vmatprep.subr.mxu0 0.0
  %4192 = vmatpush1.msra.mxu0 0.0
  %4193 = vmatprep.subr.mxu0 0.0
  %4194 = vmatpush1.msra.mxu0 0.0
  %4195 = vmatprep.subr.mxu0 0.0
  %4196 = vmatpush1.msra.mxu0 0.0
  %4197 = vmatprep.subr.mxu0 0.0
  %4198 = vmatpush1.msra.mxu0 0.0
  %4199 = vmatprep.subr.mxu0 0.0
  %4200 = vmatpush1.msra.mxu0 0.0
  %4201 = vmatprep.subr.mxu0 0.0
  %4202 = vmatpush1.msra.mxu0 0.0
  %4203 = vmatprep.subr.mxu0 0.0
  %4204 = vmatpush1.msra.mxu0 0.0
  %4205 = vmatprep.subr.mxu0 0.0
  %4206 = vmatpush1.msra.mxu0 0.0
  %4207 = vmatprep.subr.mxu0 0.0
  %4208 = vmatpush1.msra.mxu0 0.0
  %4209 = vmatprep.subr.mxu0 0.0
  %4210 = vmatpush1.msra.mxu0 0.0
  %4211 = vmatprep.subr.mxu0 0.0
  %4212 = vmatpush1.msra.mxu0 0.0
  %4213 = vmatprep.subr.mxu0 0.0
  %4214 = vmatpush1.msra.mxu0 0.0
  %4215 = vmatprep.subr.mxu0 0.0
  %4216 = vmatpush1.msra.mxu0 0.0
  %4217 = vmatprep.subr.mxu0 0.0
  %4218 = vmatpush1.msra.mxu0 0.0
  %4219 = vmatprep.subr.mxu0 0.0
  %4220 = vmatpush1.msra.mxu0 0.0
  %4221 = vmatprep.subr.mxu0 0.0
  %4222 = vmatpush1.msra.mxu0 0.0
  %4223 = vmatprep.subr.mxu0 0.0
  %4224 = vmatpush1.msra.mxu0 0.0
  %4225 = vmatprep.subr.mxu0 0.0
  %4226 = vmatpush1.msra.mxu0 0.0
  %4227 = vmatprep.subr.mxu0 0.0
  %4228 = vmatpush1.msra.mxu0 0.0
  %4229 = vmatprep.subr.mxu0 0.0
  %4230 = vmatpush1.msra.mxu0 0.0
  %4231 = vmatprep.subr.mxu0 0.0
  %4232 = vmatpush1.msra.mxu0 0.0
  %4233 = vmatprep.subr.mxu0 0.0
  %4234 = vmatpush1.msra.mxu0 0.0
  %4235 = vmatprep.mubr.f32.mxu0 0.0
  %4236 = vmatmul.mubr.f32.gmra.mrb[0].mxu0 %v4166
  %v4237 = vpop.f32.mrb[0].mxu0
  %v4238 = vadd.f32 %v4163, %v4237
  %v4239 = vpop.f32.mrb[0].mxu0
  %4240 = vmatprep.mubr.f32.mxu0 0.0
  %4241 = vmatmul.mubr.f32.gmra.mrb[0].mxu0 %v4169
  %v4242 = vpop.f32.mrb[0].mxu0
  %v4243 = vadd.f32 %v4163, %v4242
  %v4244 = vpop.f32.mrb[0].mxu0
  %4245 = vdwg.mxu0
  %v4246 = vmax.f32 %v4238, 0.0
  %v4247 = vmax.f32 %v4243, 0.0
  %4248 = vmatprep.subr.mxu0 0.0
  %4249 = vmatpush1.msra.mxu0 %v2302
  %4250 = vmatprep.subr.mxu0 0.0
  %4251 = vmatpush1.msra.mxu0 %v2303
  %4252 = vmatprep.subr.mxu0 0.0
  %4253 = vmatpush1.msra.mxu0 %v2304
  %4254 = vmatprep.subr.mxu0 0.0
  %4255 = vmatpush1.msra.mxu0 %v2305
  %4256 = vmatprep.subr.mxu0 0.0
  %4257 = vmatpush1.msra.mxu0 %v2306
  %4258 = vmatprep.subr.mxu0 0.0
  %4259 = vmatpush1.msra.mxu0 %v2307
  %4260 = vmatprep.subr.mxu0 0.0
  %4261 = vmatpush1.msra.mxu0 %v2308
  %4262 = vmatprep.subr.mxu0 0.0
  %4263 = vmatpush1.msra.mxu0 %v2309
  %4264 = vmatprep.subr.mxu0 0.0
  %4265 = vmatpush1.msra.mxu0 %v2310
  %4266 = vmatprep.subr.mxu0 0.0
  %4267 = vmatpush1.msra.mxu0 %v2311
  %4268 = vmatprep.subr.mxu0 0.0
  %4269 = vmatpush1.msra.mxu0 %v2312
  %4270 = vmatprep.subr.mxu0 0.0
  %4271 = vmatpush1.msra.mxu0 %v2313
  %4272 = vmatprep.subr.mxu0 0.0
  %4273 = vmatpush1.msra.mxu0 %v2314
  %4274 = vmatprep.subr.mxu0 0.0
  %4275 = vmatpush1.msra.mxu0 %v2315
  %4276 = vmatprep.subr.mxu0 0.0
  %4277 = vmatpush1.msra.mxu0 %v2316
  %4278 = vmatprep.subr.mxu0 0.0
  %4279 = vmatpush1.msra.mxu0 %v2317
  %4280 = vmatprep.subr.mxu0 0.0
  %4281 = vmatpush1.msra.mxu0 0.0
  %4282 = vmatprep.subr.mxu0 0.0
  %4283 = vmatpush1.msra.mxu0 0.0
  %4284 = vmatprep.subr.mxu0 0.0
  %4285 = vmatpush1.msra.mxu0 0.0
  %4286 = vmatprep.subr.mxu0 0.0
  %4287 = vmatpush1.msra.mxu0 0.0
  %4288 = vmatprep.subr.mxu0 0.0
  %4289 = vmatpush1.msra.mxu0 0.0
  %4290 = vmatprep.subr.mxu0 0.0
  %4291 = vmatpush1.msra.mxu0 0.0
  %4292 = vmatprep.subr.mxu0 0.0
  %4293 = vmatpush1.msra.mxu0 0.0
  %4294 = vmatprep.subr.mxu0 0.0
  %4295 = vmatpush1.msra.mxu0 0.0
  %4296 = vmatprep.subr.mxu0 0.0
  %4297 = vmatpush1.msra.mxu0 0.0
  %4298 = vmatprep.subr.mxu0 0.0
  %4299 = vmatpush1.msra.mxu0 0.0
  %4300 = vmatprep.subr.mxu0 0.0
  %4301 = vmatpush1.msra.mxu0 0.0
  %4302 = vmatprep.subr.mxu0 0.0
  %4303 = vmatpush1.msra.mxu0 0.0
  %4304 = vmatprep.subr.mxu0 0.0
  %4305 = vmatpush1.msra.mxu0 0.0
  %4306 = vmatprep.subr.mxu0 0.0
  %4307 = vmatpush1.msra.mxu0 0.0
  %4308 = vmatprep.subr.mxu0 0.0
  %4309 = vmatpush1.msra.mxu0 0.0
  %4310 = vmatprep.subr.mxu0 0.0
  %4311 = vmatpush1.msra.mxu0 0.0
  %4312 = vmatprep.mubr.f32.mxu0 0.0
  %4313 = vmatmul.mubr.f32.gmra.mrb[0].mxu0 %v4246
  %v4314 = vpop.f32.mrb[0].mxu0
  %v4315 = vadd.f32 0.0, %v4314
  %v4316 = vpop.f32.mrb[0].mxu0
  %4317 = vmatprep.mubr.f32.mxu0 0.0
  %4318 = vmatmul.mubr.f32.gmra.mrb[0].mxu0 %v4247
  %v4319 = vpop.f32.mrb[0].mxu0
  %v4320 = vadd.f32 0.0, %v4319
  %v4321 = vpop.f32.mrb[0].mxu0
  %4322 = vdwg.mxu0
  %v4323 = vadd.f32 %v4115, %v4315
  %v4324 = vadd.f32 %v4116, %v4320
  %v4326 = vlaneseq
  %v4327 = vshrl.u32 %v4326, 7
  %v4328 = vsub.s32 0, %v4327
  %v4329 = vrot.slane %v2318, %v4328
  %v4331 = vadd.f32 %v4323, %v4329
  %v4332 = vadd.f32 %v4324, %v4329
  %v4333 = vld [vmem:[%s51] sm:$0x1]
  %v4334 = vld [vmem:[%s53] sm:$0x1]
  %v4335 = vsel %vm260, %v4331, 0.0
  %4336 = vadd.xlane.f32.xlu0 %v4335
  %v4337 = vpop.xlane.xlu0 %4336
  %v4338 = vsel %vm260, %v4332, 0.0
  %4339 = vadd.xlane.f32.xlu0 %v4338
  %v4340 = vpop.xlane.xlu0 %4339
  %v4341 = vmul.f32 %v4337, %v267
  %v4342 = vmul.f32 %v4340, %v267
  %v4343 = vsub.f32 %v4331, %v4341
  %v4344 = vsub.f32 %v4332, %v4342
  %v4345 = vmul.f32 %v4343, %v4343
  %v4346 = vmul.f32 %v4344, %v4344
  %v4347 = vsel %vm260, %v4345, 0.0
  %4348 = vadd.xlane.f32.xlu0 %v4347
  %v4349 = vpop.xlane.xlu0 %4348
  %v4350 = vsel %vm260, %v4346, 0.0
  %4351 = vadd.xlane.f32.xlu0 %v4350
  %v4352 = vpop.xlane.xlu0 %4351
  %v4353 = vmul.f32 %v4349, %v267
  %v4354 = vmul.f32 %v4352, %v267
  %v4355 = vadd.f32 %v4353, 1e-05
  %v4356 = vadd.f32 %v4354, 1e-05
  %v4357 = vrsqrt.pop %v4355
  %v4358 = vrsqrt.pop %v4356
  %v4359 = vmul.f32 %v4343, %v4357
  %v4360 = vmul.f32 %v4344, %v4358
  %v4362 = vlaneseq
  %v4363 = vshrl.u32 %v4362, 7
  %v4364 = vsub.s32 0, %v4363
  %v4365 = vrot.slane %v4333, %v4364
  %v4367 = vmul.f32 %v4359, %v4365
  %v4368 = vmul.f32 %v4360, %v4365
  %v4370 = vlaneseq
  %v4371 = vshrl.u32 %v4370, 7
  %v4372 = vsub.s32 0, %v4371
  %v4373 = vrot.slane %v4334, %v4372
  %v4375 = vadd.f32 %v4367, %v4373
  %v4376 = vadd.f32 %v4368, %v4373
  %v4377 = vld [vmem:[%s55] sm:$0xff]
  %v4378 = vld [vmem:[%s55 + $0x8] sm:$0xff]
  %v4379 = vld [vmem:[%s55 + $0x10] sm:$0xff]
  %v4380 = vld [vmem:[%s55 + $0x18] sm:$0xff]
  %v4381 = vld [vmem:[%s57] sm:$0x1]
  %v4383 = vlaneseq
  %v4384 = vshrl.u32 %v4383, 7
  %v4385 = vsub.s32 0, %v4384
  %v4386 = vrot.slane %v4381, %v4385
  %v4389 = vsel %vm260, %v4375, 0
  %v4392 = vsel %vm260, %v4376, 0
  %4394 = vmatprep.subr.mxu0 0.0
  %4395 = vmatpush1.msra.mxu0 %v4377
  %4396 = vmatprep.subr.mxu0 0.0
  %4397 = vmatpush1.msra.mxu0 %v4378
  %4398 = vmatprep.subr.mxu0 0.0
  %4399 = vmatpush1.msra.mxu0 %v4379
  %4400 = vmatprep.subr.mxu0 0.0
  %4401 = vmatpush1.msra.mxu0 %v4380
  %4402 = vmatprep.subr.mxu0 0.0
  %4403 = vmatpush1.msra.mxu0 0.0
  %4404 = vmatprep.subr.mxu0 0.0
  %4405 = vmatpush1.msra.mxu0 0.0
  %4406 = vmatprep.subr.mxu0 0.0
  %4407 = vmatpush1.msra.mxu0 0.0
  %4408 = vmatprep.subr.mxu0 0.0
  %4409 = vmatpush1.msra.mxu0 0.0
  %4410 = vmatprep.subr.mxu0 0.0
  %4411 = vmatpush1.msra.mxu0 0.0
  %4412 = vmatprep.subr.mxu0 0.0
  %4413 = vmatpush1.msra.mxu0 0.0
  %4414 = vmatprep.subr.mxu0 0.0
  %4415 = vmatpush1.msra.mxu0 0.0
  %4416 = vmatprep.subr.mxu0 0.0
  %4417 = vmatpush1.msra.mxu0 0.0
  %4418 = vmatprep.subr.mxu0 0.0
  %4419 = vmatpush1.msra.mxu0 0.0
  %4420 = vmatprep.subr.mxu0 0.0
  %4421 = vmatpush1.msra.mxu0 0.0
  %4422 = vmatprep.subr.mxu0 0.0
  %4423 = vmatpush1.msra.mxu0 0.0
  %4424 = vmatprep.subr.mxu0 0.0
  %4425 = vmatpush1.msra.mxu0 0.0
  %4426 = vmatprep.subr.mxu0 0.0
  %4427 = vmatpush1.msra.mxu0 0.0
  %4428 = vmatprep.subr.mxu0 0.0
  %4429 = vmatpush1.msra.mxu0 0.0
  %4430 = vmatprep.subr.mxu0 0.0
  %4431 = vmatpush1.msra.mxu0 0.0
  %4432 = vmatprep.subr.mxu0 0.0
  %4433 = vmatpush1.msra.mxu0 0.0
  %4434 = vmatprep.subr.mxu0 0.0
  %4435 = vmatpush1.msra.mxu0 0.0
  %4436 = vmatprep.subr.mxu0 0.0
  %4437 = vmatpush1.msra.mxu0 0.0
  %4438 = vmatprep.subr.mxu0 0.0
  %4439 = vmatpush1.msra.mxu0 0.0
  %4440 = vmatprep.subr.mxu0 0.0
  %4441 = vmatpush1.msra.mxu0 0.0
  %4442 = vmatprep.subr.mxu0 0.0
  %4443 = vmatpush1.msra.mxu0 0.0
  %4444 = vmatprep.subr.mxu0 0.0
  %4445 = vmatpush1.msra.mxu0 0.0
  %4446 = vmatprep.subr.mxu0 0.0
  %4447 = vmatpush1.msra.mxu0 0.0
  %4448 = vmatprep.subr.mxu0 0.0
  %4449 = vmatpush1.msra.mxu0 0.0
  %4450 = vmatprep.subr.mxu0 0.0
  %4451 = vmatpush1.msra.mxu0 0.0
  %4452 = vmatprep.subr.mxu0 0.0
  %4453 = vmatpush1.msra.mxu0 0.0
  %4454 = vmatprep.subr.mxu0 0.0
  %4455 = vmatpush1.msra.mxu0 0.0
  %4456 = vmatprep.subr.mxu0 0.0
  %4457 = vmatpush1.msra.mxu0 0.0
  %4458 = vmatprep.mubr.f32.mxu0 0.0
  %4459 = vmatmul.mubr.f32.gmra.mrb[0].mxu0 %v4389
  %v4460 = vpop.f32.mrb[0].mxu0
  %v4461 = vadd.f32 %v4386, %v4460
  %v4462 = vpop.f32.mrb[0].mxu0
  %4463 = vmatprep.mubr.f32.mxu0 0.0
  %4464 = vmatmul.mubr.f32.gmra.mrb[0].mxu0 %v4392
  %v4465 = vpop.f32.mrb[0].mxu0
  %v4466 = vadd.f32 %v4386, %v4465
  %v4467 = vpop.f32.mrb[0].mxu0
  %4468 = vdwg.mxu0
  %4469 = vst [vmem:[%s59] sm:$0xff] %v4461
  %4470 = vst [vmem:[%s59 + $0x8] sm:$0xff] %v4466
  // Predicated region
  $region114: #{transformer_forward.1} parent=0 // pred_check
    _
  $region115: #{transformer_forward.1} parent=0 // pred_check_branch
    %4472 = sbr.rel (0) target = $region117
  $region116: #{transformer_forward.1} parent=0 // pred_region
    _
  $region117: #{transformer_forward.1} parent=0 // pred_fallthru
    _
  // Predicated region
  $region118: #{transformer_forward.1} parent=0 // pred_check
    _
  $region119: #{transformer_forward.1} parent=0 // pred_check_branch
    %4474 = sbr.rel (0) target = $region121
  $region120: #{transformer_forward.1} parent=0 // pred_region
    _
  $region121: #{transformer_forward.1} parent=0 // pred_fallthru
    _

</llo_original>
